<compile_context>
chip_gen: v6e
topology: v6e:2x2x1
jax: 0.10.0
libtpu: 0.0.40
codegen_flags: <defaults>
</compile_context>

<pallas_src>
import jax
import jax.numpy as jnp
from jax.experimental import pallas as pl
from jax.experimental.pallas import tpu as pltpu

_SUB_OFF = 8     # sublane-aligned offset of the pooled map inside the padded scratch
_LANE_OFF = 128  # lane-aligned offset


def _make_kernel(c_total, h, w, k):
    """Builds the fused pooling + conv + sigmoid kernel for static shapes."""
    halo = k // 2

    def kernel(x_ref, w_ref, o_ref, sum_ref, max_ref, pad_ref):
        # x_ref  : (1, tc, H, W)  VMEM  -- one channel tile of one batch image
        # w_ref  : (2*k*k,)       SMEM  -- conv weight, flat (cin, kh, kw) order
        # o_ref  : (1, 1, H, W)   VMEM
        # sum_ref, max_ref : (H, W) f32 VMEM scratch (channel-reduction accumulators)
        # pad_ref: (2, SUB+H+halo, LANE+W+halo) f32 VMEM scratch (zero-haloed pooled maps)
        ci = pl.program_id(1)
        nc = pl.num_programs(1)
        tc = x_ref.shape[1]

        @pl.when(ci == 0)
        def _init():
            sum_ref[...] = jnp.zeros(sum_ref.shape, sum_ref.dtype)
            max_ref[...] = jnp.full(max_ref.shape, -jnp.inf, max_ref.dtype)

        # One-pass streaming mean/max over this channel tile (unrolled 2-D loads,
        # fp32 accumulation regardless of input dtype).
        v = x_ref[0, 0].astype(jnp.float32)
        s = v
        m = v
        for c in range(1, tc):
            v = x_ref[0, c].astype(jnp.float32)
            s = s + v
            m = jnp.maximum(m, v)
        sum_ref[...] = sum_ref[...] + s
        max_ref[...] = jnp.maximum(max_ref[...], m)

        @pl.when(ci == nc - 1)
        def _finalize():
            avg = sum_ref[...] * (1.0 / c_total)
            mx = max_ref[...]
            # Zero-haloed copies of the two pooled maps, entirely in VMEM
            # (no im2col, no HBM intermediate).  Interior is stored at
            # tile-aligned offsets so the stores are unmasked/aligned.
            pad_ref[...] = jnp.zeros(pad_ref.shape, pad_ref.dtype)
            pad_ref[0, _SUB_OFF:_SUB_OFF + h, _LANE_OFF:_LANE_OFF + w] = avg
            pad_ref[1, _SUB_OFF:_SUB_OFF + h, _LANE_OFF:_LANE_OFF + w] = mx
            # KxK conv over 2 channels as 2*K*K scalar-weighted shifted windows.
            acc = jnp.zeros((h, w), jnp.float32)
            for c in range(2):
                for kh in range(k):
                    for kw in range(k):
                        wv = w_ref[c * k * k + kh * k + kw]
                        r0 = _SUB_OFF + kh - halo
                        c0 = _LANE_OFF + kw - halo
                        acc = acc + wv * pad_ref[c, r0:r0 + h, c0:c0 + w]
            o_ref[0, 0] = (1.0 / (1.0 + jnp.exp(-acc))).astype(o_ref.dtype)

    return kernel


def spatial_attention(x, conv_w, *, c_tile=32):
    """Forward of SpatialAttention.  x: (N, C, H, W); conv_w: (1, 2, K, K)."""
    n, c, h, w = x.shape
    cout, cin, k, k2 = conv_w.shape
    assert cout == 1 and cin == 2 and k == k2 and k in (3, 7)
    halo = k // 2

    # Largest channel-tile that divides C (keeps the reduction grid exact).
    tc = max(d for d in range(1, min(c_tile, c) + 1) if c % d == 0)

    w_flat = conv_w.reshape(-1).astype(jnp.float32)  # (2*K*K,), (cin, kh, kw) order
    kernel = _make_kernel(c, h, w, k)

    return pl.pallas_call(
        kernel,
        out_shape=jax.ShapeDtypeStruct((n, 1, h, w), x.dtype),
        grid_spec=pltpu.PrefetchScalarGridSpec(
            num_scalar_prefetch=0,
            grid=(n, c // tc),
            in_specs=[
                pl.BlockSpec((1, tc, h, w), lambda b, ci: (b, ci, 0, 0)),
                pl.BlockSpec(memory_space=pltpu.MemorySpace.SMEM),
            ],
            out_specs=pl.BlockSpec((1, 1, h, w), lambda b, ci: (b, 0, 0, 0)),
            scratch_shapes=[
                pltpu.VMEM((h, w), jnp.float32),
                pltpu.VMEM((h, w), jnp.float32),
                pltpu.VMEM((2, _SUB_OFF + h + halo, _LANE_OFF + w + halo),
                           jnp.float32),
            ],
        ),
        compiler_params=pltpu.CompilerParams(
            dimension_semantics=("parallel", "arbitrary")),
    )(x, w_flat)


# ---------------------------------------------------------------------------
# Pure-JAX reference (matches the PyTorch module) for a sanity check
# ---------------------------------------------------------------------------
def _ref_forward(x, conv_w):
    k = conv_w.shape[-1]
    pad = k // 2
    avg = jnp.mean(x, axis=1, keepdims=True)
    mx = jnp.max(x, axis=1, keepdims=True)
    xm = jnp.concatenate([avg, mx], axis=1)
    y = jax.lax.conv_general_dilated(
        xm, conv_w, (1, 1), ((pad, pad), (pad, pad)),
        dimension_numbers=("NCHW", "OIHW", "NCHW"))
    return jax.nn.sigmoid(y)


# ---------------------------------------------------------------------------
if __name__ == "__main__":
    N, C, H, W = 2, 4, 16, 16
    K = 7  # SpatialAttention default kernel_size

    key = jax.random.PRNGKey(0)
    kx, kw = jax.random.split(key)
    x = jax.random.normal(kx, (N, C, H, W), jnp.float32)
    # Conv2d(2, 1, 7, bias=False) deterministic synthetic init
    bound = 1.0 / float(2 * K * K) ** 0.5
    conv_w = jax.random.uniform(kw, (1, 2, K, K), jnp.float32, -bound, bound)

    out = jax.block_until_ready(spatial_attention(x, conv_w))
    ref = jax.block_until_ready(_ref_forward(x, conv_w))

    assert out.shape == (N, 1, H, W)
    err = jnp.max(jnp.abs(out - ref))
    assert jnp.allclose(out, ref, atol=1e-5, rtol=1e-5), f"max abs err {err}"

    print("KERNEL_OK")
</pallas_src>

<mosaic_0001>
module attributes {stable_mosaic.version = 11 : i64} {
  func.func @kernel(%arg0: i32, %arg1: i32, %arg2: memref<1x4x16x16xf32, #tpu.memory_space<vmem>>, %arg3: memref<98xf32, #tpu.memory_space<smem>>, %arg4: memref<1x1x16x16xf32, #tpu.memory_space<vmem>>, %arg5: memref<16x16xf32, #tpu.memory_space<vmem>>, %arg6: memref<16x16xf32, #tpu.memory_space<vmem>>, %arg7: memref<2x27x147xf32, #tpu.memory_space<vmem>>) attributes {dimension_semantics = [#tpu.dimension_semantics<parallel>, #tpu.dimension_semantics<arbitrary>], iteration_bounds = array<i64: 2, 1>, scalar_prefetch = 0 : i64, scratch_operands = 3 : i64, tpu.core_type = #tpu.core_type<tc>, window_params = [{transform_indices = @transform_0, window_bounds = array<i64: 1, 4, 16, 16>}, {transform_indices = @transform_1, window_bounds = array<i64: 98>}, {transform_indices = @transform_2, window_bounds = array<i64: 1, 1, 16, 16>}]} {
    %c0_i32 = arith.constant 0 : i32
    %0 = arith.cmpi eq, %arg1, %c0_i32 : i32
    %1 = arith.extui %0 : i1 to i32
    %c0_i32_0 = arith.constant 0 : i32
    %2 = arith.cmpi ne, %1, %c0_i32_0 : i32
    scf.if %2 {
      %cst = arith.constant 0.000000e+00 : f32
      %26 = vector.broadcast %cst : f32 to vector<16x16xf32>
      %c0_23 = arith.constant 0 : index
      %c0_24 = arith.constant 0 : index
      %27 = vector.load %arg5[%c0_23, %c0_24] : memref<16x16xf32, #tpu.memory_space<vmem>>, vector<16x16xf32>
      tpu.vector_store %arg5[%c0_23, %c0_24], %26 {strides = array<i32>} : memref<16x16xf32, #tpu.memory_space<vmem>>, vector<16x16xf32>,
      %cst_25 = arith.constant 0xFF800000 : f32
      %28 = vector.broadcast %cst_25 : f32 to vector<16x16xf32>
      %c0_26 = arith.constant 0 : index
      %c0_27 = arith.constant 0 : index
      %29 = vector.load %arg6[%c0_26, %c0_27] : memref<16x16xf32, #tpu.memory_space<vmem>>, vector<16x16xf32>
      tpu.vector_store %arg6[%c0_26, %c0_27], %28 {strides = array<i32>} : memref<16x16xf32, #tpu.memory_space<vmem>>, vector<16x16xf32>,
    } else {
    }
    %c0 = arith.constant 0 : index
    %c0_1 = arith.constant 0 : index
    %c0_2 = arith.constant 0 : index
    %c0_3 = arith.constant 0 : index
    %3 = vector.load %arg2[%c0, %c0_1, %c0_2, %c0_3] : memref<1x4x16x16xf32, #tpu.memory_space<vmem>>, vector<1x1x16x16xf32>
    %4 = vector.shape_cast %3 : vector<1x1x16x16xf32> to vector<16x16xf32>
    %c0_4 = arith.constant 0 : index
    %c1 = arith.constant 1 : index
    %c0_5 = arith.constant 0 : index
    %c0_6 = arith.constant 0 : index
    %5 = vector.load %arg2[%c0_4, %c1, %c0_5, %c0_6] : memref<1x4x16x16xf32, #tpu.memory_space<vmem>>, vector<1x1x16x16xf32>
    %6 = vector.shape_cast %5 : vector<1x1x16x16xf32> to vector<16x16xf32>
    %7 = arith.addf %4, %6 : vector<16x16xf32>
    %8 = arith.maximumf %4, %6 : vector<16x16xf32>
    %c0_7 = arith.constant 0 : index
    %c2 = arith.constant 2 : index
    %c0_8 = arith.constant 0 : index
    %c0_9 = arith.constant 0 : index
    %9 = vector.load %arg2[%c0_7, %c2, %c0_8, %c0_9] : memref<1x4x16x16xf32, #tpu.memory_space<vmem>>, vector<1x1x16x16xf32>
    %10 = vector.shape_cast %9 : vector<1x1x16x16xf32> to vector<16x16xf32>
    %11 = arith.addf %7, %10 : vector<16x16xf32>
    %12 = arith.maximumf %8, %10 : vector<16x16xf32>
    %c0_10 = arith.constant 0 : index
    %c3 = arith.constant 3 : index
    %c0_11 = arith.constant 0 : index
    %c0_12 = arith.constant 0 : index
    %13 = vector.load %arg2[%c0_10, %c3, %c0_11, %c0_12] : memref<1x4x16x16xf32, #tpu.memory_space<vmem>>, vector<1x1x16x16xf32>
    %14 = vector.shape_cast %13 : vector<1x1x16x16xf32> to vector<16x16xf32>
    %15 = arith.addf %11, %14 : vector<16x16xf32>
    %16 = arith.maximumf %12, %14 : vector<16x16xf32>
    %c0_13 = arith.constant 0 : index
    %c0_14 = arith.constant 0 : index
    %17 = vector.load %arg5[%c0_13, %c0_14] : memref<16x16xf32, #tpu.memory_space<vmem>>, vector<16x16xf32>
    %18 = arith.addf %17, %15 : vector<16x16xf32>
    %c0_15 = arith.constant 0 : index
    %c0_16 = arith.constant 0 : index
    %19 = vector.load %arg5[%c0_15, %c0_16] : memref<16x16xf32, #tpu.memory_space<vmem>>, vector<16x16xf32>
    tpu.vector_store %arg5[%c0_15, %c0_16], %18 {strides = array<i32>} : memref<16x16xf32, #tpu.memory_space<vmem>>, vector<16x16xf32>,
    %c0_17 = arith.constant 0 : index
    %c0_18 = arith.constant 0 : index
    %20 = vector.load %arg6[%c0_17, %c0_18] : memref<16x16xf32, #tpu.memory_space<vmem>>, vector<16x16xf32>
    %21 = arith.maximumf %20, %16 : vector<16x16xf32>
    %c0_19 = arith.constant 0 : index
    %c0_20 = arith.constant 0 : index
    %22 = vector.load %arg6[%c0_19, %c0_20] : memref<16x16xf32, #tpu.memory_space<vmem>>, vector<16x16xf32>
    tpu.vector_store %arg6[%c0_19, %c0_20], %21 {strides = array<i32>} : memref<16x16xf32, #tpu.memory_space<vmem>>, vector<16x16xf32>,
    %c0_i32_21 = arith.constant 0 : i32
    %23 = arith.cmpi eq, %arg1, %c0_i32_21 : i32
    %24 = arith.extui %23 : i1 to i32
    %c0_i32_22 = arith.constant 0 : i32
    %25 = arith.cmpi ne, %24, %c0_i32_22 : i32
    scf.if %25 {
      %c0_23 = arith.constant 0 : index
      %c0_24 = arith.constant 0 : index
      %26 = vector.load %arg5[%c0_23, %c0_24] : memref<16x16xf32, #tpu.memory_space<vmem>>, vector<16x16xf32>
      %cst = arith.constant 2.500000e-01 : f32
      %27 = vector.broadcast %cst : f32 to vector<16x16xf32>
      %28 = arith.mulf %26, %27 : vector<16x16xf32>
      %c0_25 = arith.constant 0 : index
      %c0_26 = arith.constant 0 : index
      %29 = vector.load %arg6[%c0_25, %c0_26] : memref<16x16xf32, #tpu.memory_space<vmem>>, vector<16x16xf32>
      %cst_27 = arith.constant 0.000000e+00 : f32
      %30 = vector.broadcast %cst_27 : f32 to vector<2x27x147xf32>
      %c0_28 = arith.constant 0 : index
      %c0_29 = arith.constant 0 : index
      %c0_30 = arith.constant 0 : index
      %31 = vector.load %arg7[%c0_28, %c0_29, %c0_30] : memref<2x27x147xf32, #tpu.memory_space<vmem>>, vector<2x27x147xf32>
      tpu.vector_store %arg7[%c0_28, %c0_29, %c0_30], %30 {strides = array<i32>} : memref<2x27x147xf32, #tpu.memory_space<vmem>>, vector<2x27x147xf32>,
      %c0_31 = arith.constant 0 : index
      %c8 = arith.constant 8 : index
      %c128 = arith.constant 128 : index
      %32 = vector.load %arg7[%c0_31, %c8, %c128] : memref<2x27x147xf32, #tpu.memory_space<vmem>>, vector<1x16x16xf32>
      %33 = vector.shape_cast %32 : vector<1x16x16xf32> to vector<16x16xf32>
      %34 = vector.shape_cast %28 : vector<16x16xf32> to vector<1x16x16xf32>
      tpu.vector_store %arg7[%c0_31, %c8, %c128], %34 {strides = array<i32>} : memref<2x27x147xf32, #tpu.memory_space<vmem>>, vector<1x16x16xf32>,
      %c1_32 = arith.constant 1 : index
      %c8_33 = arith.constant 8 : index
      %c128_34 = arith.constant 128 : index
      %35 = vector.load %arg7[%c1_32, %c8_33, %c128_34] : memref<2x27x147xf32, #tpu.memory_space<vmem>>, vector<1x16x16xf32>
      %36 = vector.shape_cast %35 : vector<1x16x16xf32> to vector<16x16xf32>
      %37 = vector.shape_cast %29 : vector<16x16xf32> to vector<1x16x16xf32>
      tpu.vector_store %arg7[%c1_32, %c8_33, %c128_34], %37 {strides = array<i32>} : memref<2x27x147xf32, #tpu.memory_space<vmem>>, vector<1x16x16xf32>,
      %cst_35 = arith.constant 0.000000e+00 : f32
      %38 = vector.broadcast %cst_35 : f32 to vector<16x16xf32>
      %c0_36 = arith.constant 0 : index
      %39 = memref.load %arg3[%c0_36] : memref<98xf32, #tpu.memory_space<smem>>
      %c0_37 = arith.constant 0 : index
      %c5 = arith.constant 5 : index
      %c125 = arith.constant 125 : index
      %40 = vector.load %arg7[%c0_37, %c5, %c125] : memref<2x27x147xf32, #tpu.memory_space<vmem>>, vector<1x16x16xf32>
      %41 = vector.shape_cast %40 : vector<1x16x16xf32> to vector<16x16xf32>
      %42 = vector.broadcast %39 : f32 to vector<16x16xf32>
      %43 = arith.mulf %42, %41 : vector<16x16xf32>
      %44 = arith.addf %38, %43 : vector<16x16xf32>
      %c1_38 = arith.constant 1 : index
      %45 = memref.load %arg3[%c1_38] : memref<98xf32, #tpu.memory_space<smem>>
      %c0_39 = arith.constant 0 : index
      %c5_40 = arith.constant 5 : index
      %c126 = arith.constant 126 : index
      %46 = vector.load %arg7[%c0_39, %c5_40, %c126] : memref<2x27x147xf32, #tpu.memory_space<vmem>>, vector<1x16x16xf32>
      %47 = vector.shape_cast %46 : vector<1x16x16xf32> to vector<16x16xf32>
      %48 = vector.broadcast %45 : f32 to vector<16x16xf32>
      %49 = arith.mulf %48, %47 : vector<16x16xf32>
      %50 = arith.addf %44, %49 : vector<16x16xf32>
      %c2_41 = arith.constant 2 : index
      %51 = memref.load %arg3[%c2_41] : memref<98xf32, #tpu.memory_space<smem>>
      %c0_42 = arith.constant 0 : index
      %c5_43 = arith.constant 5 : index
      %c127 = arith.constant 127 : index
      %52 = vector.load %arg7[%c0_42, %c5_43, %c127] : memref<2x27x147xf32, #tpu.memory_space<vmem>>, vector<1x16x16xf32>
      %53 = vector.shape_cast %52 : vector<1x16x16xf32> to vector<16x16xf32>
      %54 = vector.broadcast %51 : f32 to vector<16x16xf32>
      %55 = arith.mulf %54, %53 : vector<16x16xf32>
      %56 = arith.addf %50, %55 : vector<16x16xf32>
      %c3_44 = arith.constant 3 : index
      %57 = memref.load %arg3[%c3_44] : memref<98xf32, #tpu.memory_space<smem>>
      %c0_45 = arith.constant 0 : index
      %c5_46 = arith.constant 5 : index
      %c128_47 = arith.constant 128 : index
      %58 = vector.load %arg7[%c0_45, %c5_46, %c128_47] : memref<2x27x147xf32, #tpu.memory_space<vmem>>, vector<1x16x16xf32>
      %59 = vector.shape_cast %58 : vector<1x16x16xf32> to vector<16x16xf32>
      %60 = vector.broadcast %57 : f32 to vector<16x16xf32>
      %61 = arith.mulf %60, %59 : vector<16x16xf32>
      %62 = arith.addf %56, %61 : vector<16x16xf32>
      %c4 = arith.constant 4 : index
      %63 = memref.load %arg3[%c4] : memref<98xf32, #tpu.memory_space<smem>>
      %c0_48 = arith.constant 0 : index
      %c5_49 = arith.constant 5 : index
      %c129 = arith.constant 129 : index
      %64 = vector.load %arg7[%c0_48, %c5_49, %c129] : memref<2x27x147xf32, #tpu.memory_space<vmem>>, vector<1x16x16xf32>
      %65 = vector.shape_cast %64 : vector<1x16x16xf32> to vector<16x16xf32>
      %66 = vector.broadcast %63 : f32 to vector<16x16xf32>
      %67 = arith.mulf %66, %65 : vector<16x16xf32>
      %68 = arith.addf %62, %67 : vector<16x16xf32>
      %c5_50 = arith.constant 5 : index
      %69 = memref.load %arg3[%c5_50] : memref<98xf32, #tpu.memory_space<smem>>
      %c0_51 = arith.constant 0 : index
      %c5_52 = arith.constant 5 : index
      %c130 = arith.constant 130 : index
      %70 = vector.load %arg7[%c0_51, %c5_52, %c130] : memref<2x27x147xf32, #tpu.memory_space<vmem>>, vector<1x16x16xf32>
      %71 = vector.shape_cast %70 : vector<1x16x16xf32> to vector<16x16xf32>
      %72 = vector.broadcast %69 : f32 to vector<16x16xf32>
      %73 = arith.mulf %72, %71 : vector<16x16xf32>
      %74 = arith.addf %68, %73 : vector<16x16xf32>
      %c6 = arith.constant 6 : index
      %75 = memref.load %arg3[%c6] : memref<98xf32, #tpu.memory_space<smem>>
      %c0_53 = arith.constant 0 : index
      %c5_54 = arith.constant 5 : index
      %c131 = arith.constant 131 : index
      %76 = vector.load %arg7[%c0_53, %c5_54, %c131] : memref<2x27x147xf32, #tpu.memory_space<vmem>>, vector<1x16x16xf32>
      %77 = vector.shape_cast %76 : vector<1x16x16xf32> to vector<16x16xf32>
      %78 = vector.broadcast %75 : f32 to vector<16x16xf32>
      %79 = arith.mulf %78, %77 : vector<16x16xf32>
      %80 = arith.addf %74, %79 : vector<16x16xf32>
      %c7 = arith.constant 7 : index
      %81 = memref.load %arg3[%c7] : memref<98xf32, #tpu.memory_space<smem>>
      %c0_55 = arith.constant 0 : index
      %c6_56 = arith.constant 6 : index
      %c125_57 = arith.constant 125 : index
      %82 = vector.load %arg7[%c0_55, %c6_56, %c125_57] : memref<2x27x147xf32, #tpu.memory_space<vmem>>, vector<1x16x16xf32>
      %83 = vector.shape_cast %82 : vector<1x16x16xf32> to vector<16x16xf32>
      %84 = vector.broadcast %81 : f32 to vector<16x16xf32>
      %85 = arith.mulf %84, %83 : vector<16x16xf32>
      %86 = arith.addf %80, %85 : vector<16x16xf32>
      %c8_58 = arith.constant 8 : index
      %87 = memref.load %arg3[%c8_58] : memref<98xf32, #tpu.memory_space<smem>>
      %c0_59 = arith.constant 0 : index
      %c6_60 = arith.constant 6 : index
      %c126_61 = arith.constant 126 : index
      %88 = vector.load %arg7[%c0_59, %c6_60, %c126_61] : memref<2x27x147xf32, #tpu.memory_space<vmem>>, vector<1x16x16xf32>
      %89 = vector.shape_cast %88 : vector<1x16x16xf32> to vector<16x16xf32>
      %90 = vector.broadcast %87 : f32 to vector<16x16xf32>
      %91 = arith.mulf %90, %89 : vector<16x16xf32>
      %92 = arith.addf %86, %91 : vector<16x16xf32>
      %c9 = arith.constant 9 : index
      %93 = memref.load %arg3[%c9] : memref<98xf32, #tpu.memory_space<smem>>
      %c0_62 = arith.constant 0 : index
      %c6_63 = arith.constant 6 : index
      %c127_64 = arith.constant 127 : index
      %94 = vector.load %arg7[%c0_62, %c6_63, %c127_64] : memref<2x27x147xf32, #tpu.memory_space<vmem>>, vector<1x16x16xf32>
      %95 = vector.shape_cast %94 : vector<1x16x16xf32> to vector<16x16xf32>
      %96 = vector.broadcast %93 : f32 to vector<16x16xf32>
      %97 = arith.mulf %96, %95 : vector<16x16xf32>
      %98 = arith.addf %92, %97 : vector<16x16xf32>
      %c10 = arith.constant 10 : index
      %99 = memref.load %arg3[%c10] : memref<98xf32, #tpu.memory_space<smem>>
      %c0_65 = arith.constant 0 : index
      %c6_66 = arith.constant 6 : index
      %c128_67 = arith.constant 128 : index
      %100 = vector.load %arg7[%c0_65, %c6_66, %c128_67] : memref<2x27x147xf32, #tpu.memory_space<vmem>>, vector<1x16x16xf32>
      %101 = vector.shape_cast %100 : vector<1x16x16xf32> to vector<16x16xf32>
      %102 = vector.broadcast %99 : f32 to vector<16x16xf32>
      %103 = arith.mulf %102, %101 : vector<16x16xf32>
      %104 = arith.addf %98, %103 : vector<16x16xf32>
      %c11 = arith.constant 11 : index
      %105 = memref.load %arg3[%c11] : memref<98xf32, #tpu.memory_space<smem>>
      %c0_68 = arith.constant 0 : index
      %c6_69 = arith.constant 6 : index
      %c129_70 = arith.constant 129 : index
      %106 = vector.load %arg7[%c0_68, %c6_69, %c129_70] : memref<2x27x147xf32, #tpu.memory_space<vmem>>, vector<1x16x16xf32>
      %107 = vector.shape_cast %106 : vector<1x16x16xf32> to vector<16x16xf32>
      %108 = vector.broadcast %105 : f32 to vector<16x16xf32>
      %109 = arith.mulf %108, %107 : vector<16x16xf32>
      %110 = arith.addf %104, %109 : vector<16x16xf32>
      %c12 = arith.constant 12 : index
      %111 = memref.load %arg3[%c12] : memref<98xf32, #tpu.memory_space<smem>>
      %c0_71 = arith.constant 0 : index
      %c6_72 = arith.constant 6 : index
      %c130_73 = arith.constant 130 : index
      %112 = vector.load %arg7[%c0_71, %c6_72, %c130_73] : memref<2x27x147xf32, #tpu.memory_space<vmem>>, vector<1x16x16xf32>
      %113 = vector.shape_cast %112 : vector<1x16x16xf32> to vector<16x16xf32>
      %114 = vector.broadcast %111 : f32 to vector<16x16xf32>
      %115 = arith.mulf %114, %113 : vector<16x16xf32>
      %116 = arith.addf %110, %115 : vector<16x16xf32>
      %c13 = arith.constant 13 : index
      %117 = memref.load %arg3[%c13] : memref<98xf32, #tpu.memory_space<smem>>
      %c0_74 = arith.constant 0 : index
      %c6_75 = arith.constant 6 : index
      %c131_76 = arith.constant 131 : index
      %118 = vector.load %arg7[%c0_74, %c6_75, %c131_76] : memref<2x27x147xf32, #tpu.memory_space<vmem>>, vector<1x16x16xf32>
      %119 = vector.shape_cast %118 : vector<1x16x16xf32> to vector<16x16xf32>
      %120 = vector.broadcast %117 : f32 to vector<16x16xf32>
      %121 = arith.mulf %120, %119 : vector<16x16xf32>
      %122 = arith.addf %116, %121 : vector<16x16xf32>
      %c14 = arith.constant 14 : index
      %123 = memref.load %arg3[%c14] : memref<98xf32, #tpu.memory_space<smem>>
      %c0_77 = arith.constant 0 : index
      %c7_78 = arith.constant 7 : index
      %c125_79 = arith.constant 125 : index
      %124 = vector.load %arg7[%c0_77, %c7_78, %c125_79] : memref<2x27x147xf32, #tpu.memory_space<vmem>>, vector<1x16x16xf32>
      %125 = vector.shape_cast %124 : vector<1x16x16xf32> to vector<16x16xf32>
      %126 = vector.broadcast %123 : f32 to vector<16x16xf32>
      %127 = arith.mulf %126, %125 : vector<16x16xf32>
      %128 = arith.addf %122, %127 : vector<16x16xf32>
      %c15 = arith.constant 15 : index
      %129 = memref.load %arg3[%c15] : memref<98xf32, #tpu.memory_space<smem>>
      %c0_80 = arith.constant 0 : index
      %c7_81 = arith.constant 7 : index
      %c126_82 = arith.constant 126 : index
      %130 = vector.load %arg7[%c0_80, %c7_81, %c126_82] : memref<2x27x147xf32, #tpu.memory_space<vmem>>, vector<1x16x16xf32>
      %131 = vector.shape_cast %130 : vector<1x16x16xf32> to vector<16x16xf32>
      %132 = vector.broadcast %129 : f32 to vector<16x16xf32>
      %133 = arith.mulf %132, %131 : vector<16x16xf32>
      %134 = arith.addf %128, %133 : vector<16x16xf32>
      %c16 = arith.constant 16 : index
      %135 = memref.load %arg3[%c16] : memref<98xf32, #tpu.memory_space<smem>>
      %c0_83 = arith.constant 0 : index
      %c7_84 = arith.constant 7 : index
      %c127_85 = arith.constant 127 : index
      %136 = vector.load %arg7[%c0_83, %c7_84, %c127_85] : memref<2x27x147xf32, #tpu.memory_space<vmem>>, vector<1x16x16xf32>
      %137 = vector.shape_cast %136 : vector<1x16x16xf32> to vector<16x16xf32>
      %138 = vector.broadcast %135 : f32 to vector<16x16xf32>
      %139 = arith.mulf %138, %137 : vector<16x16xf32>
      %140 = arith.addf %134, %139 : vector<16x16xf32>
      %c17 = arith.constant 17 : index
      %141 = memref.load %arg3[%c17] : memref<98xf32, #tpu.memory_space<smem>>
      %c0_86 = arith.constant 0 : index
      %c7_87 = arith.constant 7 : index
      %c128_88 = arith.constant 128 : index
      %142 = vector.load %arg7[%c0_86, %c7_87, %c128_88] : memref<2x27x147xf32, #tpu.memory_space<vmem>>, vector<1x16x16xf32>
      %143 = vector.shape_cast %142 : vector<1x16x16xf32> to vector<16x16xf32>
      %144 = vector.broadcast %141 : f32 to vector<16x16xf32>
      %145 = arith.mulf %144, %143 : vector<16x16xf32>
      %146 = arith.addf %140, %145 : vector<16x16xf32>
      %c18 = arith.constant 18 : index
      %147 = memref.load %arg3[%c18] : memref<98xf32, #tpu.memory_space<smem>>
      %c0_89 = arith.constant 0 : index
      %c7_90 = arith.constant 7 : index
      %c129_91 = arith.constant 129 : index
      %148 = vector.load %arg7[%c0_89, %c7_90, %c129_91] : memref<2x27x147xf32, #tpu.memory_space<vmem>>, vector<1x16x16xf32>
      %149 = vector.shape_cast %148 : vector<1x16x16xf32> to vector<16x16xf32>
      %150 = vector.broadcast %147 : f32 to vector<16x16xf32>
      %151 = arith.mulf %150, %149 : vector<16x16xf32>
      %152 = arith.addf %146, %151 : vector<16x16xf32>
      %c19 = arith.constant 19 : index
      %153 = memref.load %arg3[%c19] : memref<98xf32, #tpu.memory_space<smem>>
      %c0_92 = arith.constant 0 : index
      %c7_93 = arith.constant 7 : index
      %c130_94 = arith.constant 130 : index
      %154 = vector.load %arg7[%c0_92, %c7_93, %c130_94] : memref<2x27x147xf32, #tpu.memory_space<vmem>>, vector<1x16x16xf32>
      %155 = vector.shape_cast %154 : vector<1x16x16xf32> to vector<16x16xf32>
      %156 = vector.broadcast %153 : f32 to vector<16x16xf32>
      %157 = arith.mulf %156, %155 : vector<16x16xf32>
      %158 = arith.addf %152, %157 : vector<16x16xf32>
      %c20 = arith.constant 20 : index
      %159 = memref.load %arg3[%c20] : memref<98xf32, #tpu.memory_space<smem>>
      %c0_95 = arith.constant 0 : index
      %c7_96 = arith.constant 7 : index
      %c131_97 = arith.constant 131 : index
      %160 = vector.load %arg7[%c0_95, %c7_96, %c131_97] : memref<2x27x147xf32, #tpu.memory_space<vmem>>, vector<1x16x16xf32>
      %161 = vector.shape_cast %160 : vector<1x16x16xf32> to vector<16x16xf32>
      %162 = vector.broadcast %159 : f32 to vector<16x16xf32>
      %163 = arith.mulf %162, %161 : vector<16x16xf32>
      %164 = arith.addf %158, %163 : vector<16x16xf32>
      %c21 = arith.constant 21 : index
      %165 = memref.load %arg3[%c21] : memref<98xf32, #tpu.memory_space<smem>>
      %c0_98 = arith.constant 0 : index
      %c8_99 = arith.constant 8 : index
      %c125_100 = arith.constant 125 : index
      %166 = vector.load %arg7[%c0_98, %c8_99, %c125_100] : memref<2x27x147xf32, #tpu.memory_space<vmem>>, vector<1x16x16xf32>
      %167 = vector.shape_cast %166 : vector<1x16x16xf32> to vector<16x16xf32>
      %168 = vector.broadcast %165 : f32 to vector<16x16xf32>
      %169 = arith.mulf %168, %167 : vector<16x16xf32>
      %170 = arith.addf %164, %169 : vector<16x16xf32>
      %c22 = arith.constant 22 : index
      %171 = memref.load %arg3[%c22] : memref<98xf32, #tpu.memory_space<smem>>
      %c0_101 = arith.constant 0 : index
      %c8_102 = arith.constant 8 : index
      %c126_103 = arith.constant 126 : index
      %172 = vector.load %arg7[%c0_101, %c8_102, %c126_103] : memref<2x27x147xf32, #tpu.memory_space<vmem>>, vector<1x16x16xf32>
      %173 = vector.shape_cast %172 : vector<1x16x16xf32> to vector<16x16xf32>
      %174 = vector.broadcast %171 : f32 to vector<16x16xf32>
      %175 = arith.mulf %174, %173 : vector<16x16xf32>
      %176 = arith.addf %170, %175 : vector<16x16xf32>
      %c23 = arith.constant 23 : index
      %177 = memref.load %arg3[%c23] : memref<98xf32, #tpu.memory_space<smem>>
      %c0_104 = arith.constant 0 : index
      %c8_105 = arith.constant 8 : index
      %c127_106 = arith.constant 127 : index
      %178 = vector.load %arg7[%c0_104, %c8_105, %c127_106] : memref<2x27x147xf32, #tpu.memory_space<vmem>>, vector<1x16x16xf32>
      %179 = vector.shape_cast %178 : vector<1x16x16xf32> to vector<16x16xf32>
      %180 = vector.broadcast %177 : f32 to vector<16x16xf32>
      %181 = arith.mulf %180, %179 : vector<16x16xf32>
      %182 = arith.addf %176, %181 : vector<16x16xf32>
      %c24 = arith.constant 24 : index
      %183 = memref.load %arg3[%c24] : memref<98xf32, #tpu.memory_space<smem>>
      %c0_107 = arith.constant 0 : index
      %c8_108 = arith.constant 8 : index
      %c128_109 = arith.constant 128 : index
      %184 = vector.load %arg7[%c0_107, %c8_108, %c128_109] : memref<2x27x147xf32, #tpu.memory_space<vmem>>, vector<1x16x16xf32>
      %185 = vector.shape_cast %184 : vector<1x16x16xf32> to vector<16x16xf32>
      %186 = vector.broadcast %183 : f32 to vector<16x16xf32>
      %187 = arith.mulf %186, %185 : vector<16x16xf32>
      %188 = arith.addf %182, %187 : vector<16x16xf32>
      %c25 = arith.constant 25 : index
      %189 = memref.load %arg3[%c25] : memref<98xf32, #tpu.memory_space<smem>>
      %c0_110 = arith.constant 0 : index
      %c8_111 = arith.constant 8 : index
      %c129_112 = arith.constant 129 : index
      %190 = vector.load %arg7[%c0_110, %c8_111, %c129_112] : memref<2x27x147xf32, #tpu.memory_space<vmem>>, vector<1x16x16xf32>
      %191 = vector.shape_cast %190 : vector<1x16x16xf32> to vector<16x16xf32>
      %192 = vector.broadcast %189 : f32 to vector<16x16xf32>
      %193 = arith.mulf %192, %191 : vector<16x16xf32>
      %194 = arith.addf %188, %193 : vector<16x16xf32>
      %c26 = arith.constant 26 : index
      %195 = memref.load %arg3[%c26] : memref<98xf32, #tpu.memory_space<smem>>
      %c0_113 = arith.constant 0 : index
      %c8_114 = arith.constant 8 : index
      %c130_115 = arith.constant 130 : index
      %196 = vector.load %arg7[%c0_113, %c8_114, %c130_115] : memref<2x27x147xf32, #tpu.memory_space<vmem>>, vector<1x16x16xf32>
      %197 = vector.shape_cast %196 : vector<1x16x16xf32> to vector<16x16xf32>
      %198 = vector.broadcast %195 : f32 to vector<16x16xf32>
      %199 = arith.mulf %198, %197 : vector<16x16xf32>
      %200 = arith.addf %194, %199 : vector<16x16xf32>
      %c27 = arith.constant 27 : index
      %201 = memref.load %arg3[%c27] : memref<98xf32, #tpu.memory_space<smem>>
      %c0_116 = arith.constant 0 : index
      %c8_117 = arith.constant 8 : index
      %c131_118 = arith.constant 131 : index
      %202 = vector.load %arg7[%c0_116, %c8_117, %c131_118] : memref<2x27x147xf32, #tpu.memory_space<vmem>>, vector<1x16x16xf32>
      %203 = vector.shape_cast %202 : vector<1x16x16xf32> to vector<16x16xf32>
      %204 = vector.broadcast %201 : f32 to vector<16x16xf32>
      %205 = arith.mulf %204, %203 : vector<16x16xf32>
      %206 = arith.addf %200, %205 : vector<16x16xf32>
      %c28 = arith.constant 28 : index
      %207 = memref.load %arg3[%c28] : memref<98xf32, #tpu.memory_space<smem>>
      %c0_119 = arith.constant 0 : index
      %c9_120 = arith.constant 9 : index
      %c125_121 = arith.constant 125 : index
      %208 = vector.load %arg7[%c0_119, %c9_120, %c125_121] : memref<2x27x147xf32, #tpu.memory_space<vmem>>, vector<1x16x16xf32>
      %209 = vector.shape_cast %208 : vector<1x16x16xf32> to vector<16x16xf32>
      %210 = vector.broadcast %207 : f32 to vector<16x16xf32>
      %211 = arith.mulf %210, %209 : vector<16x16xf32>
      %212 = arith.addf %206, %211 : vector<16x16xf32>
      %c29 = arith.constant 29 : index
      %213 = memref.load %arg3[%c29] : memref<98xf32, #tpu.memory_space<smem>>
      %c0_122 = arith.constant 0 : index
      %c9_123 = arith.constant 9 : index
      %c126_124 = arith.constant 126 : index
      %214 = vector.load %arg7[%c0_122, %c9_123, %c126_124] : memref<2x27x147xf32, #tpu.memory_space<vmem>>, vector<1x16x16xf32>
      %215 = vector.shape_cast %214 : vector<1x16x16xf32> to vector<16x16xf32>
      %216 = vector.broadcast %213 : f32 to vector<16x16xf32>
      %217 = arith.mulf %216, %215 : vector<16x16xf32>
      %218 = arith.addf %212, %217 : vector<16x16xf32>
      %c30 = arith.constant 30 : index
      %219 = memref.load %arg3[%c30] : memref<98xf32, #tpu.memory_space<smem>>
      %c0_125 = arith.constant 0 : index
      %c9_126 = arith.constant 9 : index
      %c127_127 = arith.constant 127 : index
      %220 = vector.load %arg7[%c0_125, %c9_126, %c127_127] : memref<2x27x147xf32, #tpu.memory_space<vmem>>, vector<1x16x16xf32>
      %221 = vector.shape_cast %220 : vector<1x16x16xf32> to vector<16x16xf32>
      %222 = vector.broadcast %219 : f32 to vector<16x16xf32>
      %223 = arith.mulf %222, %221 : vector<16x16xf32>
      %224 = arith.addf %218, %223 : vector<16x16xf32>
      %c31 = arith.constant 31 : index
      %225 = memref.load %arg3[%c31] : memref<98xf32, #tpu.memory_space<smem>>
      %c0_128 = arith.constant 0 : index
      %c9_129 = arith.constant 9 : index
      %c128_130 = arith.constant 128 : index
      %226 = vector.load %arg7[%c0_128, %c9_129, %c128_130] : memref<2x27x147xf32, #tpu.memory_space<vmem>>, vector<1x16x16xf32>
      %227 = vector.shape_cast %226 : vector<1x16x16xf32> to vector<16x16xf32>
      %228 = vector.broadcast %225 : f32 to vector<16x16xf32>
      %229 = arith.mulf %228, %227 : vector<16x16xf32>
      %230 = arith.addf %224, %229 : vector<16x16xf32>
      %c32 = arith.constant 32 : index
      %231 = memref.load %arg3[%c32] : memref<98xf32, #tpu.memory_space<smem>>
      %c0_131 = arith.constant 0 : index
      %c9_132 = arith.constant 9 : index
      %c129_133 = arith.constant 129 : index
      %232 = vector.load %arg7[%c0_131, %c9_132, %c129_133] : memref<2x27x147xf32, #tpu.memory_space<vmem>>, vector<1x16x16xf32>
      %233 = vector.shape_cast %232 : vector<1x16x16xf32> to vector<16x16xf32>
      %234 = vector.broadcast %231 : f32 to vector<16x16xf32>
      %235 = arith.mulf %234, %233 : vector<16x16xf32>
      %236 = arith.addf %230, %235 : vector<16x16xf32>
      %c33 = arith.constant 33 : index
      %237 = memref.load %arg3[%c33] : memref<98xf32, #tpu.memory_space<smem>>
      %c0_134 = arith.constant 0 : index
      %c9_135 = arith.constant 9 : index
      %c130_136 = arith.constant 130 : index
      %238 = vector.load %arg7[%c0_134, %c9_135, %c130_136] : memref<2x27x147xf32, #tpu.memory_space<vmem>>, vector<1x16x16xf32>
      %239 = vector.shape_cast %238 : vector<1x16x16xf32> to vector<16x16xf32>
      %240 = vector.broadcast %237 : f32 to vector<16x16xf32>
      %241 = arith.mulf %240, %239 : vector<16x16xf32>
      %242 = arith.addf %236, %241 : vector<16x16xf32>
      %c34 = arith.constant 34 : index
      %243 = memref.load %arg3[%c34] : memref<98xf32, #tpu.memory_space<smem>>
      %c0_137 = arith.constant 0 : index
      %c9_138 = arith.constant 9 : index
      %c131_139 = arith.constant 131 : index
      %244 = vector.load %arg7[%c0_137, %c9_138, %c131_139] : memref<2x27x147xf32, #tpu.memory_space<vmem>>, vector<1x16x16xf32>
      %245 = vector.shape_cast %244 : vector<1x16x16xf32> to vector<16x16xf32>
      %246 = vector.broadcast %243 : f32 to vector<16x16xf32>
      %247 = arith.mulf %246, %245 : vector<16x16xf32>
      %248 = arith.addf %242, %247 : vector<16x16xf32>
      %c35 = arith.constant 35 : index
      %249 = memref.load %arg3[%c35] : memref<98xf32, #tpu.memory_space<smem>>
      %c0_140 = arith.constant 0 : index
      %c10_141 = arith.constant 10 : index
      %c125_142 = arith.constant 125 : index
      %250 = vector.load %arg7[%c0_140, %c10_141, %c125_142] : memref<2x27x147xf32, #tpu.memory_space<vmem>>, vector<1x16x16xf32>
      %251 = vector.shape_cast %250 : vector<1x16x16xf32> to vector<16x16xf32>
      %252 = vector.broadcast %249 : f32 to vector<16x16xf32>
      %253 = arith.mulf %252, %251 : vector<16x16xf32>
      %254 = arith.addf %248, %253 : vector<16x16xf32>
      %c36 = arith.constant 36 : index
      %255 = memref.load %arg3[%c36] : memref<98xf32, #tpu.memory_space<smem>>
      %c0_143 = arith.constant 0 : index
      %c10_144 = arith.constant 10 : index
      %c126_145 = arith.constant 126 : index
      %256 = vector.load %arg7[%c0_143, %c10_144, %c126_145] : memref<2x27x147xf32, #tpu.memory_space<vmem>>, vector<1x16x16xf32>
      %257 = vector.shape_cast %256 : vector<1x16x16xf32> to vector<16x16xf32>
      %258 = vector.broadcast %255 : f32 to vector<16x16xf32>
      %259 = arith.mulf %258, %257 : vector<16x16xf32>
      %260 = arith.addf %254, %259 : vector<16x16xf32>
      %c37 = arith.constant 37 : index
      %261 = memref.load %arg3[%c37] : memref<98xf32, #tpu.memory_space<smem>>
      %c0_146 = arith.constant 0 : index
      %c10_147 = arith.constant 10 : index
      %c127_148 = arith.constant 127 : index
      %262 = vector.load %arg7[%c0_146, %c10_147, %c127_148] : memref<2x27x147xf32, #tpu.memory_space<vmem>>, vector<1x16x16xf32>
      %263 = vector.shape_cast %262 : vector<1x16x16xf32> to vector<16x16xf32>
      %264 = vector.broadcast %261 : f32 to vector<16x16xf32>
      %265 = arith.mulf %264, %263 : vector<16x16xf32>
      %266 = arith.addf %260, %265 : vector<16x16xf32>
      %c38 = arith.constant 38 : index
      %267 = memref.load %arg3[%c38] : memref<98xf32, #tpu.memory_space<smem>>
      %c0_149 = arith.constant 0 : index
      %c10_150 = arith.constant 10 : index
      %c128_151 = arith.constant 128 : index
      %268 = vector.load %arg7[%c0_149, %c10_150, %c128_151] : memref<2x27x147xf32, #tpu.memory_space<vmem>>, vector<1x16x16xf32>
      %269 = vector.shape_cast %268 : vector<1x16x16xf32> to vector<16x16xf32>
      %270 = vector.broadcast %267 : f32 to vector<16x16xf32>
      %271 = arith.mulf %270, %269 : vector<16x16xf32>
      %272 = arith.addf %266, %271 : vector<16x16xf32>
      %c39 = arith.constant 39 : index
      %273 = memref.load %arg3[%c39] : memref<98xf32, #tpu.memory_space<smem>>
      %c0_152 = arith.constant 0 : index
      %c10_153 = arith.constant 10 : index
      %c129_154 = arith.constant 129 : index
      %274 = vector.load %arg7[%c0_152, %c10_153, %c129_154] : memref<2x27x147xf32, #tpu.memory_space<vmem>>, vector<1x16x16xf32>
      %275 = vector.shape_cast %274 : vector<1x16x16xf32> to vector<16x16xf32>
      %276 = vector.broadcast %273 : f32 to vector<16x16xf32>
      %277 = arith.mulf %276, %275 : vector<16x16xf32>
      %278 = arith.addf %272, %277 : vector<16x16xf32>
      %c40 = arith.constant 40 : index
      %279 = memref.load %arg3[%c40] : memref<98xf32, #tpu.memory_space<smem>>
      %c0_155 = arith.constant 0 : index
      %c10_156 = arith.constant 10 : index
      %c130_157 = arith.constant 130 : index
      %280 = vector.load %arg7[%c0_155, %c10_156, %c130_157] : memref<2x27x147xf32, #tpu.memory_space<vmem>>, vector<1x16x16xf32>
      %281 = vector.shape_cast %280 : vector<1x16x16xf32> to vector<16x16xf32>
      %282 = vector.broadcast %279 : f32 to vector<16x16xf32>
      %283 = arith.mulf %282, %281 : vector<16x16xf32>
      %284 = arith.addf %278, %283 : vector<16x16xf32>
      %c41 = arith.constant 41 : index
      %285 = memref.load %arg3[%c41] : memref<98xf32, #tpu.memory_space<smem>>
      %c0_158 = arith.constant 0 : index
      %c10_159 = arith.constant 10 : index
      %c131_160 = arith.constant 131 : index
      %286 = vector.load %arg7[%c0_158, %c10_159, %c131_160] : memref<2x27x147xf32, #tpu.memory_space<vmem>>, vector<1x16x16xf32>
      %287 = vector.shape_cast %286 : vector<1x16x16xf32> to vector<16x16xf32>
      %288 = vector.broadcast %285 : f32 to vector<16x16xf32>
      %289 = arith.mulf %288, %287 : vector<16x16xf32>
      %290 = arith.addf %284, %289 : vector<16x16xf32>
      %c42 = arith.constant 42 : index
      %291 = memref.load %arg3[%c42] : memref<98xf32, #tpu.memory_space<smem>>
      %c0_161 = arith.constant 0 : index
      %c11_162 = arith.constant 11 : index
      %c125_163 = arith.constant 125 : index
      %292 = vector.load %arg7[%c0_161, %c11_162, %c125_163] : memref<2x27x147xf32, #tpu.memory_space<vmem>>, vector<1x16x16xf32>
      %293 = vector.shape_cast %292 : vector<1x16x16xf32> to vector<16x16xf32>
      %294 = vector.broadcast %291 : f32 to vector<16x16xf32>
      %295 = arith.mulf %294, %293 : vector<16x16xf32>
      %296 = arith.addf %290, %295 : vector<16x16xf32>
      %c43 = arith.constant 43 : index
      %297 = memref.load %arg3[%c43] : memref<98xf32, #tpu.memory_space<smem>>
      %c0_164 = arith.constant 0 : index
      %c11_165 = arith.constant 11 : index
      %c126_166 = arith.constant 126 : index
      %298 = vector.load %arg7[%c0_164, %c11_165, %c126_166] : memref<2x27x147xf32, #tpu.memory_space<vmem>>, vector<1x16x16xf32>
      %299 = vector.shape_cast %298 : vector<1x16x16xf32> to vector<16x16xf32>
      %300 = vector.broadcast %297 : f32 to vector<16x16xf32>
      %301 = arith.mulf %300, %299 : vector<16x16xf32>
      %302 = arith.addf %296, %301 : vector<16x16xf32>
      %c44 = arith.constant 44 : index
      %303 = memref.load %arg3[%c44] : memref<98xf32, #tpu.memory_space<smem>>
      %c0_167 = arith.constant 0 : index
      %c11_168 = arith.constant 11 : index
      %c127_169 = arith.constant 127 : index
      %304 = vector.load %arg7[%c0_167, %c11_168, %c127_169] : memref<2x27x147xf32, #tpu.memory_space<vmem>>, vector<1x16x16xf32>
      %305 = vector.shape_cast %304 : vector<1x16x16xf32> to vector<16x16xf32>
      %306 = vector.broadcast %303 : f32 to vector<16x16xf32>
      %307 = arith.mulf %306, %305 : vector<16x16xf32>
      %308 = arith.addf %302, %307 : vector<16x16xf32>
      %c45 = arith.constant 45 : index
      %309 = memref.load %arg3[%c45] : memref<98xf32, #tpu.memory_space<smem>>
      %c0_170 = arith.constant 0 : index
      %c11_171 = arith.constant 11 : index
      %c128_172 = arith.constant 128 : index
      %310 = vector.load %arg7[%c0_170, %c11_171, %c128_172] : memref<2x27x147xf32, #tpu.memory_space<vmem>>, vector<1x16x16xf32>
      %311 = vector.shape_cast %310 : vector<1x16x16xf32> to vector<16x16xf32>
      %312 = vector.broadcast %309 : f32 to vector<16x16xf32>
      %313 = arith.mulf %312, %311 : vector<16x16xf32>
      %314 = arith.addf %308, %313 : vector<16x16xf32>
      %c46 = arith.constant 46 : index
      %315 = memref.load %arg3[%c46] : memref<98xf32, #tpu.memory_space<smem>>
      %c0_173 = arith.constant 0 : index
      %c11_174 = arith.constant 11 : index
      %c129_175 = arith.constant 129 : index
      %316 = vector.load %arg7[%c0_173, %c11_174, %c129_175] : memref<2x27x147xf32, #tpu.memory_space<vmem>>, vector<1x16x16xf32>
      %317 = vector.shape_cast %316 : vector<1x16x16xf32> to vector<16x16xf32>
      %318 = vector.broadcast %315 : f32 to vector<16x16xf32>
      %319 = arith.mulf %318, %317 : vector<16x16xf32>
      %320 = arith.addf %314, %319 : vector<16x16xf32>
      %c47 = arith.constant 47 : index
      %321 = memref.load %arg3[%c47] : memref<98xf32, #tpu.memory_space<smem>>
      %c0_176 = arith.constant 0 : index
      %c11_177 = arith.constant 11 : index
      %c130_178 = arith.constant 130 : index
      %322 = vector.load %arg7[%c0_176, %c11_177, %c130_178] : memref<2x27x147xf32, #tpu.memory_space<vmem>>, vector<1x16x16xf32>
      %323 = vector.shape_cast %322 : vector<1x16x16xf32> to vector<16x16xf32>
      %324 = vector.broadcast %321 : f32 to vector<16x16xf32>
      %325 = arith.mulf %324, %323 : vector<16x16xf32>
      %326 = arith.addf %320, %325 : vector<16x16xf32>
      %c48 = arith.constant 48 : index
      %327 = memref.load %arg3[%c48] : memref<98xf32, #tpu.memory_space<smem>>
      %c0_179 = arith.constant 0 : index
      %c11_180 = arith.constant 11 : index
      %c131_181 = arith.constant 131 : index
      %328 = vector.load %arg7[%c0_179, %c11_180, %c131_181] : memref<2x27x147xf32, #tpu.memory_space<vmem>>, vector<1x16x16xf32>
      %329 = vector.shape_cast %328 : vector<1x16x16xf32> to vector<16x16xf32>
      %330 = vector.broadcast %327 : f32 to vector<16x16xf32>
      %331 = arith.mulf %330, %329 : vector<16x16xf32>
      %332 = arith.addf %326, %331 : vector<16x16xf32>
      %c49 = arith.constant 49 : index
      %333 = memref.load %arg3[%c49] : memref<98xf32, #tpu.memory_space<smem>>
      %c1_182 = arith.constant 1 : index
      %c5_183 = arith.constant 5 : index
      %c125_184 = arith.constant 125 : index
      %334 = vector.load %arg7[%c1_182, %c5_183, %c125_184] : memref<2x27x147xf32, #tpu.memory_space<vmem>>, vector<1x16x16xf32>
      %335 = vector.shape_cast %334 : vector<1x16x16xf32> to vector<16x16xf32>
      %336 = vector.broadcast %333 : f32 to vector<16x16xf32>
      %337 = arith.mulf %336, %335 : vector<16x16xf32>
      %338 = arith.addf %332, %337 : vector<16x16xf32>
      %c50 = arith.constant 50 : index
      %339 = memref.load %arg3[%c50] : memref<98xf32, #tpu.memory_space<smem>>
      %c1_185 = arith.constant 1 : index
      %c5_186 = arith.constant 5 : index
      %c126_187 = arith.constant 126 : index
      %340 = vector.load %arg7[%c1_185, %c5_186, %c126_187] : memref<2x27x147xf32, #tpu.memory_space<vmem>>, vector<1x16x16xf32>
      %341 = vector.shape_cast %340 : vector<1x16x16xf32> to vector<16x16xf32>
      %342 = vector.broadcast %339 : f32 to vector<16x16xf32>
      %343 = arith.mulf %342, %341 : vector<16x16xf32>
      %344 = arith.addf %338, %343 : vector<16x16xf32>
      %c51 = arith.constant 51 : index
      %345 = memref.load %arg3[%c51] : memref<98xf32, #tpu.memory_space<smem>>
      %c1_188 = arith.constant 1 : index
      %c5_189 = arith.constant 5 : index
      %c127_190 = arith.constant 127 : index
      %346 = vector.load %arg7[%c1_188, %c5_189, %c127_190] : memref<2x27x147xf32, #tpu.memory_space<vmem>>, vector<1x16x16xf32>
      %347 = vector.shape_cast %346 : vector<1x16x16xf32> to vector<16x16xf32>
      %348 = vector.broadcast %345 : f32 to vector<16x16xf32>
      %349 = arith.mulf %348, %347 : vector<16x16xf32>
      %350 = arith.addf %344, %349 : vector<16x16xf32>
      %c52 = arith.constant 52 : index
      %351 = memref.load %arg3[%c52] : memref<98xf32, #tpu.memory_space<smem>>
      %c1_191 = arith.constant 1 : index
      %c5_192 = arith.constant 5 : index
      %c128_193 = arith.constant 128 : index
      %352 = vector.load %arg7[%c1_191, %c5_192, %c128_193] : memref<2x27x147xf32, #tpu.memory_space<vmem>>, vector<1x16x16xf32>
      %353 = vector.shape_cast %352 : vector<1x16x16xf32> to vector<16x16xf32>
      %354 = vector.broadcast %351 : f32 to vector<16x16xf32>
      %355 = arith.mulf %354, %353 : vector<16x16xf32>
      %356 = arith.addf %350, %355 : vector<16x16xf32>
      %c53 = arith.constant 53 : index
      %357 = memref.load %arg3[%c53] : memref<98xf32, #tpu.memory_space<smem>>
      %c1_194 = arith.constant 1 : index
      %c5_195 = arith.constant 5 : index
      %c129_196 = arith.constant 129 : index
      %358 = vector.load %arg7[%c1_194, %c5_195, %c129_196] : memref<2x27x147xf32, #tpu.memory_space<vmem>>, vector<1x16x16xf32>
      %359 = vector.shape_cast %358 : vector<1x16x16xf32> to vector<16x16xf32>
      %360 = vector.broadcast %357 : f32 to vector<16x16xf32>
      %361 = arith.mulf %360, %359 : vector<16x16xf32>
      %362 = arith.addf %356, %361 : vector<16x16xf32>
      %c54 = arith.constant 54 : index
      %363 = memref.load %arg3[%c54] : memref<98xf32, #tpu.memory_space<smem>>
      %c1_197 = arith.constant 1 : index
      %c5_198 = arith.constant 5 : index
      %c130_199 = arith.constant 130 : index
      %364 = vector.load %arg7[%c1_197, %c5_198, %c130_199] : memref<2x27x147xf32, #tpu.memory_space<vmem>>, vector<1x16x16xf32>
      %365 = vector.shape_cast %364 : vector<1x16x16xf32> to vector<16x16xf32>
      %366 = vector.broadcast %363 : f32 to vector<16x16xf32>
      %367 = arith.mulf %366, %365 : vector<16x16xf32>
      %368 = arith.addf %362, %367 : vector<16x16xf32>
      %c55 = arith.constant 55 : index
      %369 = memref.load %arg3[%c55] : memref<98xf32, #tpu.memory_space<smem>>
      %c1_200 = arith.constant 1 : index
      %c5_201 = arith.constant 5 : index
      %c131_202 = arith.constant 131 : index
      %370 = vector.load %arg7[%c1_200, %c5_201, %c131_202] : memref<2x27x147xf32, #tpu.memory_space<vmem>>, vector<1x16x16xf32>
      %371 = vector.shape_cast %370 : vector<1x16x16xf32> to vector<16x16xf32>
      %372 = vector.broadcast %369 : f32 to vector<16x16xf32>
      %373 = arith.mulf %372, %371 : vector<16x16xf32>
      %374 = arith.addf %368, %373 : vector<16x16xf32>
      %c56 = arith.constant 56 : index
      %375 = memref.load %arg3[%c56] : memref<98xf32, #tpu.memory_space<smem>>
      %c1_203 = arith.constant 1 : index
      %c6_204 = arith.constant 6 : index
      %c125_205 = arith.constant 125 : index
      %376 = vector.load %arg7[%c1_203, %c6_204, %c125_205] : memref<2x27x147xf32, #tpu.memory_space<vmem>>, vector<1x16x16xf32>
      %377 = vector.shape_cast %376 : vector<1x16x16xf32> to vector<16x16xf32>
      %378 = vector.broadcast %375 : f32 to vector<16x16xf32>
      %379 = arith.mulf %378, %377 : vector<16x16xf32>
      %380 = arith.addf %374, %379 : vector<16x16xf32>
      %c57 = arith.constant 57 : index
      %381 = memref.load %arg3[%c57] : memref<98xf32, #tpu.memory_space<smem>>
      %c1_206 = arith.constant 1 : index
      %c6_207 = arith.constant 6 : index
      %c126_208 = arith.constant 126 : index
      %382 = vector.load %arg7[%c1_206, %c6_207, %c126_208] : memref<2x27x147xf32, #tpu.memory_space<vmem>>, vector<1x16x16xf32>
      %383 = vector.shape_cast %382 : vector<1x16x16xf32> to vector<16x16xf32>
      %384 = vector.broadcast %381 : f32 to vector<16x16xf32>
      %385 = arith.mulf %384, %383 : vector<16x16xf32>
      %386 = arith.addf %380, %385 : vector<16x16xf32>
      %c58 = arith.constant 58 : index
      %387 = memref.load %arg3[%c58] : memref<98xf32, #tpu.memory_space<smem>>
      %c1_209 = arith.constant 1 : index
      %c6_210 = arith.constant 6 : index
      %c127_211 = arith.constant 127 : index
      %388 = vector.load %arg7[%c1_209, %c6_210, %c127_211] : memref<2x27x147xf32, #tpu.memory_space<vmem>>, vector<1x16x16xf32>
      %389 = vector.shape_cast %388 : vector<1x16x16xf32> to vector<16x16xf32>
      %390 = vector.broadcast %387 : f32 to vector<16x16xf32>
      %391 = arith.mulf %390, %389 : vector<16x16xf32>
      %392 = arith.addf %386, %391 : vector<16x16xf32>
      %c59 = arith.constant 59 : index
      %393 = memref.load %arg3[%c59] : memref<98xf32, #tpu.memory_space<smem>>
      %c1_212 = arith.constant 1 : index
      %c6_213 = arith.constant 6 : index
      %c128_214 = arith.constant 128 : index
      %394 = vector.load %arg7[%c1_212, %c6_213, %c128_214] : memref<2x27x147xf32, #tpu.memory_space<vmem>>, vector<1x16x16xf32>
      %395 = vector.shape_cast %394 : vector<1x16x16xf32> to vector<16x16xf32>
      %396 = vector.broadcast %393 : f32 to vector<16x16xf32>
      %397 = arith.mulf %396, %395 : vector<16x16xf32>
      %398 = arith.addf %392, %397 : vector<16x16xf32>
      %c60 = arith.constant 60 : index
      %399 = memref.load %arg3[%c60] : memref<98xf32, #tpu.memory_space<smem>>
      %c1_215 = arith.constant 1 : index
      %c6_216 = arith.constant 6 : index
      %c129_217 = arith.constant 129 : index
      %400 = vector.load %arg7[%c1_215, %c6_216, %c129_217] : memref<2x27x147xf32, #tpu.memory_space<vmem>>, vector<1x16x16xf32>
      %401 = vector.shape_cast %400 : vector<1x16x16xf32> to vector<16x16xf32>
      %402 = vector.broadcast %399 : f32 to vector<16x16xf32>
      %403 = arith.mulf %402, %401 : vector<16x16xf32>
      %404 = arith.addf %398, %403 : vector<16x16xf32>
      %c61 = arith.constant 61 : index
      %405 = memref.load %arg3[%c61] : memref<98xf32, #tpu.memory_space<smem>>
      %c1_218 = arith.constant 1 : index
      %c6_219 = arith.constant 6 : index
      %c130_220 = arith.constant 130 : index
      %406 = vector.load %arg7[%c1_218, %c6_219, %c130_220] : memref<2x27x147xf32, #tpu.memory_space<vmem>>, vector<1x16x16xf32>
      %407 = vector.shape_cast %406 : vector<1x16x16xf32> to vector<16x16xf32>
      %408 = vector.broadcast %405 : f32 to vector<16x16xf32>
      %409 = arith.mulf %408, %407 : vector<16x16xf32>
      %410 = arith.addf %404, %409 : vector<16x16xf32>
      %c62 = arith.constant 62 : index
      %411 = memref.load %arg3[%c62] : memref<98xf32, #tpu.memory_space<smem>>
      %c1_221 = arith.constant 1 : index
      %c6_222 = arith.constant 6 : index
      %c131_223 = arith.constant 131 : index
      %412 = vector.load %arg7[%c1_221, %c6_222, %c131_223] : memref<2x27x147xf32, #tpu.memory_space<vmem>>, vector<1x16x16xf32>
      %413 = vector.shape_cast %412 : vector<1x16x16xf32> to vector<16x16xf32>
      %414 = vector.broadcast %411 : f32 to vector<16x16xf32>
      %415 = arith.mulf %414, %413 : vector<16x16xf32>
      %416 = arith.addf %410, %415 : vector<16x16xf32>
      %c63 = arith.constant 63 : index
      %417 = memref.load %arg3[%c63] : memref<98xf32, #tpu.memory_space<smem>>
      %c1_224 = arith.constant 1 : index
      %c7_225 = arith.constant 7 : index
      %c125_226 = arith.constant 125 : index
      %418 = vector.load %arg7[%c1_224, %c7_225, %c125_226] : memref<2x27x147xf32, #tpu.memory_space<vmem>>, vector<1x16x16xf32>
      %419 = vector.shape_cast %418 : vector<1x16x16xf32> to vector<16x16xf32>
      %420 = vector.broadcast %417 : f32 to vector<16x16xf32>
      %421 = arith.mulf %420, %419 : vector<16x16xf32>
      %422 = arith.addf %416, %421 : vector<16x16xf32>
      %c64 = arith.constant 64 : index
      %423 = memref.load %arg3[%c64] : memref<98xf32, #tpu.memory_space<smem>>
      %c1_227 = arith.constant 1 : index
      %c7_228 = arith.constant 7 : index
      %c126_229 = arith.constant 126 : index
      %424 = vector.load %arg7[%c1_227, %c7_228, %c126_229] : memref<2x27x147xf32, #tpu.memory_space<vmem>>, vector<1x16x16xf32>
      %425 = vector.shape_cast %424 : vector<1x16x16xf32> to vector<16x16xf32>
      %426 = vector.broadcast %423 : f32 to vector<16x16xf32>
      %427 = arith.mulf %426, %425 : vector<16x16xf32>
      %428 = arith.addf %422, %427 : vector<16x16xf32>
      %c65 = arith.constant 65 : index
      %429 = memref.load %arg3[%c65] : memref<98xf32, #tpu.memory_space<smem>>
      %c1_230 = arith.constant 1 : index
      %c7_231 = arith.constant 7 : index
      %c127_232 = arith.constant 127 : index
      %430 = vector.load %arg7[%c1_230, %c7_231, %c127_232] : memref<2x27x147xf32, #tpu.memory_space<vmem>>, vector<1x16x16xf32>
      %431 = vector.shape_cast %430 : vector<1x16x16xf32> to vector<16x16xf32>
      %432 = vector.broadcast %429 : f32 to vector<16x16xf32>
      %433 = arith.mulf %432, %431 : vector<16x16xf32>
      %434 = arith.addf %428, %433 : vector<16x16xf32>
      %c66 = arith.constant 66 : index
      %435 = memref.load %arg3[%c66] : memref<98xf32, #tpu.memory_space<smem>>
      %c1_233 = arith.constant 1 : index
      %c7_234 = arith.constant 7 : index
      %c128_235 = arith.constant 128 : index
      %436 = vector.load %arg7[%c1_233, %c7_234, %c128_235] : memref<2x27x147xf32, #tpu.memory_space<vmem>>, vector<1x16x16xf32>
      %437 = vector.shape_cast %436 : vector<1x16x16xf32> to vector<16x16xf32>
      %438 = vector.broadcast %435 : f32 to vector<16x16xf32>
      %439 = arith.mulf %438, %437 : vector<16x16xf32>
      %440 = arith.addf %434, %439 : vector<16x16xf32>
      %c67 = arith.constant 67 : index
      %441 = memref.load %arg3[%c67] : memref<98xf32, #tpu.memory_space<smem>>
      %c1_236 = arith.constant 1 : index
      %c7_237 = arith.constant 7 : index
      %c129_238 = arith.constant 129 : index
      %442 = vector.load %arg7[%c1_236, %c7_237, %c129_238] : memref<2x27x147xf32, #tpu.memory_space<vmem>>, vector<1x16x16xf32>
      %443 = vector.shape_cast %442 : vector<1x16x16xf32> to vector<16x16xf32>
      %444 = vector.broadcast %441 : f32 to vector<16x16xf32>
      %445 = arith.mulf %444, %443 : vector<16x16xf32>
      %446 = arith.addf %440, %445 : vector<16x16xf32>
      %c68 = arith.constant 68 : index
      %447 = memref.load %arg3[%c68] : memref<98xf32, #tpu.memory_space<smem>>
      %c1_239 = arith.constant 1 : index
      %c7_240 = arith.constant 7 : index
      %c130_241 = arith.constant 130 : index
      %448 = vector.load %arg7[%c1_239, %c7_240, %c130_241] : memref<2x27x147xf32, #tpu.memory_space<vmem>>, vector<1x16x16xf32>
      %449 = vector.shape_cast %448 : vector<1x16x16xf32> to vector<16x16xf32>
      %450 = vector.broadcast %447 : f32 to vector<16x16xf32>
      %451 = arith.mulf %450, %449 : vector<16x16xf32>
      %452 = arith.addf %446, %451 : vector<16x16xf32>
      %c69 = arith.constant 69 : index
      %453 = memref.load %arg3[%c69] : memref<98xf32, #tpu.memory_space<smem>>
      %c1_242 = arith.constant 1 : index
      %c7_243 = arith.constant 7 : index
      %c131_244 = arith.constant 131 : index
      %454 = vector.load %arg7[%c1_242, %c7_243, %c131_244] : memref<2x27x147xf32, #tpu.memory_space<vmem>>, vector<1x16x16xf32>
      %455 = vector.shape_cast %454 : vector<1x16x16xf32> to vector<16x16xf32>
      %456 = vector.broadcast %453 : f32 to vector<16x16xf32>
      %457 = arith.mulf %456, %455 : vector<16x16xf32>
      %458 = arith.addf %452, %457 : vector<16x16xf32>
      %c70 = arith.constant 70 : index
      %459 = memref.load %arg3[%c70] : memref<98xf32, #tpu.memory_space<smem>>
      %c1_245 = arith.constant 1 : index
      %c8_246 = arith.constant 8 : index
      %c125_247 = arith.constant 125 : index
      %460 = vector.load %arg7[%c1_245, %c8_246, %c125_247] : memref<2x27x147xf32, #tpu.memory_space<vmem>>, vector<1x16x16xf32>
      %461 = vector.shape_cast %460 : vector<1x16x16xf32> to vector<16x16xf32>
      %462 = vector.broadcast %459 : f32 to vector<16x16xf32>
      %463 = arith.mulf %462, %461 : vector<16x16xf32>
      %464 = arith.addf %458, %463 : vector<16x16xf32>
      %c71 = arith.constant 71 : index
      %465 = memref.load %arg3[%c71] : memref<98xf32, #tpu.memory_space<smem>>
      %c1_248 = arith.constant 1 : index
      %c8_249 = arith.constant 8 : index
      %c126_250 = arith.constant 126 : index
      %466 = vector.load %arg7[%c1_248, %c8_249, %c126_250] : memref<2x27x147xf32, #tpu.memory_space<vmem>>, vector<1x16x16xf32>
      %467 = vector.shape_cast %466 : vector<1x16x16xf32> to vector<16x16xf32>
      %468 = vector.broadcast %465 : f32 to vector<16x16xf32>
      %469 = arith.mulf %468, %467 : vector<16x16xf32>
      %470 = arith.addf %464, %469 : vector<16x16xf32>
      %c72 = arith.constant 72 : index
      %471 = memref.load %arg3[%c72] : memref<98xf32, #tpu.memory_space<smem>>
      %c1_251 = arith.constant 1 : index
      %c8_252 = arith.constant 8 : index
      %c127_253 = arith.constant 127 : index
      %472 = vector.load %arg7[%c1_251, %c8_252, %c127_253] : memref<2x27x147xf32, #tpu.memory_space<vmem>>, vector<1x16x16xf32>
      %473 = vector.shape_cast %472 : vector<1x16x16xf32> to vector<16x16xf32>
      %474 = vector.broadcast %471 : f32 to vector<16x16xf32>
      %475 = arith.mulf %474, %473 : vector<16x16xf32>
      %476 = arith.addf %470, %475 : vector<16x16xf32>
      %c73 = arith.constant 73 : index
      %477 = memref.load %arg3[%c73] : memref<98xf32, #tpu.memory_space<smem>>
      %c1_254 = arith.constant 1 : index
      %c8_255 = arith.constant 8 : index
      %c128_256 = arith.constant 128 : index
      %478 = vector.load %arg7[%c1_254, %c8_255, %c128_256] : memref<2x27x147xf32, #tpu.memory_space<vmem>>, vector<1x16x16xf32>
      %479 = vector.shape_cast %478 : vector<1x16x16xf32> to vector<16x16xf32>
      %480 = vector.broadcast %477 : f32 to vector<16x16xf32>
      %481 = arith.mulf %480, %479 : vector<16x16xf32>
      %482 = arith.addf %476, %481 : vector<16x16xf32>
      %c74 = arith.constant 74 : index
      %483 = memref.load %arg3[%c74] : memref<98xf32, #tpu.memory_space<smem>>
      %c1_257 = arith.constant 1 : index
      %c8_258 = arith.constant 8 : index
      %c129_259 = arith.constant 129 : index
      %484 = vector.load %arg7[%c1_257, %c8_258, %c129_259] : memref<2x27x147xf32, #tpu.memory_space<vmem>>, vector<1x16x16xf32>
      %485 = vector.shape_cast %484 : vector<1x16x16xf32> to vector<16x16xf32>
      %486 = vector.broadcast %483 : f32 to vector<16x16xf32>
      %487 = arith.mulf %486, %485 : vector<16x16xf32>
      %488 = arith.addf %482, %487 : vector<16x16xf32>
      %c75 = arith.constant 75 : index
      %489 = memref.load %arg3[%c75] : memref<98xf32, #tpu.memory_space<smem>>
      %c1_260 = arith.constant 1 : index
      %c8_261 = arith.constant 8 : index
      %c130_262 = arith.constant 130 : index
      %490 = vector.load %arg7[%c1_260, %c8_261, %c130_262] : memref<2x27x147xf32, #tpu.memory_space<vmem>>, vector<1x16x16xf32>
      %491 = vector.shape_cast %490 : vector<1x16x16xf32> to vector<16x16xf32>
      %492 = vector.broadcast %489 : f32 to vector<16x16xf32>
      %493 = arith.mulf %492, %491 : vector<16x16xf32>
      %494 = arith.addf %488, %493 : vector<16x16xf32>
      %c76 = arith.constant 76 : index
      %495 = memref.load %arg3[%c76] : memref<98xf32, #tpu.memory_space<smem>>
      %c1_263 = arith.constant 1 : index
      %c8_264 = arith.constant 8 : index
      %c131_265 = arith.constant 131 : index
      %496 = vector.load %arg7[%c1_263, %c8_264, %c131_265] : memref<2x27x147xf32, #tpu.memory_space<vmem>>, vector<1x16x16xf32>
      %497 = vector.shape_cast %496 : vector<1x16x16xf32> to vector<16x16xf32>
      %498 = vector.broadcast %495 : f32 to vector<16x16xf32>
      %499 = arith.mulf %498, %497 : vector<16x16xf32>
      %500 = arith.addf %494, %499 : vector<16x16xf32>
      %c77 = arith.constant 77 : index
      %501 = memref.load %arg3[%c77] : memref<98xf32, #tpu.memory_space<smem>>
      %c1_266 = arith.constant 1 : index
      %c9_267 = arith.constant 9 : index
      %c125_268 = arith.constant 125 : index
      %502 = vector.load %arg7[%c1_266, %c9_267, %c125_268] : memref<2x27x147xf32, #tpu.memory_space<vmem>>, vector<1x16x16xf32>
      %503 = vector.shape_cast %502 : vector<1x16x16xf32> to vector<16x16xf32>
      %504 = vector.broadcast %501 : f32 to vector<16x16xf32>
      %505 = arith.mulf %504, %503 : vector<16x16xf32>
      %506 = arith.addf %500, %505 : vector<16x16xf32>
      %c78 = arith.constant 78 : index
      %507 = memref.load %arg3[%c78] : memref<98xf32, #tpu.memory_space<smem>>
      %c1_269 = arith.constant 1 : index
      %c9_270 = arith.constant 9 : index
      %c126_271 = arith.constant 126 : index
      %508 = vector.load %arg7[%c1_269, %c9_270, %c126_271] : memref<2x27x147xf32, #tpu.memory_space<vmem>>, vector<1x16x16xf32>
      %509 = vector.shape_cast %508 : vector<1x16x16xf32> to vector<16x16xf32>
      %510 = vector.broadcast %507 : f32 to vector<16x16xf32>
      %511 = arith.mulf %510, %509 : vector<16x16xf32>
      %512 = arith.addf %506, %511 : vector<16x16xf32>
      %c79 = arith.constant 79 : index
      %513 = memref.load %arg3[%c79] : memref<98xf32, #tpu.memory_space<smem>>
      %c1_272 = arith.constant 1 : index
      %c9_273 = arith.constant 9 : index
      %c127_274 = arith.constant 127 : index
      %514 = vector.load %arg7[%c1_272, %c9_273, %c127_274] : memref<2x27x147xf32, #tpu.memory_space<vmem>>, vector<1x16x16xf32>
      %515 = vector.shape_cast %514 : vector<1x16x16xf32> to vector<16x16xf32>
      %516 = vector.broadcast %513 : f32 to vector<16x16xf32>
      %517 = arith.mulf %516, %515 : vector<16x16xf32>
      %518 = arith.addf %512, %517 : vector<16x16xf32>
      %c80 = arith.constant 80 : index
      %519 = memref.load %arg3[%c80] : memref<98xf32, #tpu.memory_space<smem>>
      %c1_275 = arith.constant 1 : index
      %c9_276 = arith.constant 9 : index
      %c128_277 = arith.constant 128 : index
      %520 = vector.load %arg7[%c1_275, %c9_276, %c128_277] : memref<2x27x147xf32, #tpu.memory_space<vmem>>, vector<1x16x16xf32>
      %521 = vector.shape_cast %520 : vector<1x16x16xf32> to vector<16x16xf32>
      %522 = vector.broadcast %519 : f32 to vector<16x16xf32>
      %523 = arith.mulf %522, %521 : vector<16x16xf32>
      %524 = arith.addf %518, %523 : vector<16x16xf32>
      %c81 = arith.constant 81 : index
      %525 = memref.load %arg3[%c81] : memref<98xf32, #tpu.memory_space<smem>>
      %c1_278 = arith.constant 1 : index
      %c9_279 = arith.constant 9 : index
      %c129_280 = arith.constant 129 : index
      %526 = vector.load %arg7[%c1_278, %c9_279, %c129_280] : memref<2x27x147xf32, #tpu.memory_space<vmem>>, vector<1x16x16xf32>
      %527 = vector.shape_cast %526 : vector<1x16x16xf32> to vector<16x16xf32>
      %528 = vector.broadcast %525 : f32 to vector<16x16xf32>
      %529 = arith.mulf %528, %527 : vector<16x16xf32>
      %530 = arith.addf %524, %529 : vector<16x16xf32>
      %c82 = arith.constant 82 : index
      %531 = memref.load %arg3[%c82] : memref<98xf32, #tpu.memory_space<smem>>
      %c1_281 = arith.constant 1 : index
      %c9_282 = arith.constant 9 : index
      %c130_283 = arith.constant 130 : index
      %532 = vector.load %arg7[%c1_281, %c9_282, %c130_283] : memref<2x27x147xf32, #tpu.memory_space<vmem>>, vector<1x16x16xf32>
      %533 = vector.shape_cast %532 : vector<1x16x16xf32> to vector<16x16xf32>
      %534 = vector.broadcast %531 : f32 to vector<16x16xf32>
      %535 = arith.mulf %534, %533 : vector<16x16xf32>
      %536 = arith.addf %530, %535 : vector<16x16xf32>
      %c83 = arith.constant 83 : index
      %537 = memref.load %arg3[%c83] : memref<98xf32, #tpu.memory_space<smem>>
      %c1_284 = arith.constant 1 : index
      %c9_285 = arith.constant 9 : index
      %c131_286 = arith.constant 131 : index
      %538 = vector.load %arg7[%c1_284, %c9_285, %c131_286] : memref<2x27x147xf32, #tpu.memory_space<vmem>>, vector<1x16x16xf32>
      %539 = vector.shape_cast %538 : vector<1x16x16xf32> to vector<16x16xf32>
      %540 = vector.broadcast %537 : f32 to vector<16x16xf32>
      %541 = arith.mulf %540, %539 : vector<16x16xf32>
      %542 = arith.addf %536, %541 : vector<16x16xf32>
      %c84 = arith.constant 84 : index
      %543 = memref.load %arg3[%c84] : memref<98xf32, #tpu.memory_space<smem>>
      %c1_287 = arith.constant 1 : index
      %c10_288 = arith.constant 10 : index
      %c125_289 = arith.constant 125 : index
      %544 = vector.load %arg7[%c1_287, %c10_288, %c125_289] : memref<2x27x147xf32, #tpu.memory_space<vmem>>, vector<1x16x16xf32>
      %545 = vector.shape_cast %544 : vector<1x16x16xf32> to vector<16x16xf32>
      %546 = vector.broadcast %543 : f32 to vector<16x16xf32>
      %547 = arith.mulf %546, %545 : vector<16x16xf32>
      %548 = arith.addf %542, %547 : vector<16x16xf32>
      %c85 = arith.constant 85 : index
      %549 = memref.load %arg3[%c85] : memref<98xf32, #tpu.memory_space<smem>>
      %c1_290 = arith.constant 1 : index
      %c10_291 = arith.constant 10 : index
      %c126_292 = arith.constant 126 : index
      %550 = vector.load %arg7[%c1_290, %c10_291, %c126_292] : memref<2x27x147xf32, #tpu.memory_space<vmem>>, vector<1x16x16xf32>
      %551 = vector.shape_cast %550 : vector<1x16x16xf32> to vector<16x16xf32>
      %552 = vector.broadcast %549 : f32 to vector<16x16xf32>
      %553 = arith.mulf %552, %551 : vector<16x16xf32>
      %554 = arith.addf %548, %553 : vector<16x16xf32>
      %c86 = arith.constant 86 : index
      %555 = memref.load %arg3[%c86] : memref<98xf32, #tpu.memory_space<smem>>
      %c1_293 = arith.constant 1 : index
      %c10_294 = arith.constant 10 : index
      %c127_295 = arith.constant 127 : index
      %556 = vector.load %arg7[%c1_293, %c10_294, %c127_295] : memref<2x27x147xf32, #tpu.memory_space<vmem>>, vector<1x16x16xf32>
      %557 = vector.shape_cast %556 : vector<1x16x16xf32> to vector<16x16xf32>
      %558 = vector.broadcast %555 : f32 to vector<16x16xf32>
      %559 = arith.mulf %558, %557 : vector<16x16xf32>
      %560 = arith.addf %554, %559 : vector<16x16xf32>
      %c87 = arith.constant 87 : index
      %561 = memref.load %arg3[%c87] : memref<98xf32, #tpu.memory_space<smem>>
      %c1_296 = arith.constant 1 : index
      %c10_297 = arith.constant 10 : index
      %c128_298 = arith.constant 128 : index
      %562 = vector.load %arg7[%c1_296, %c10_297, %c128_298] : memref<2x27x147xf32, #tpu.memory_space<vmem>>, vector<1x16x16xf32>
      %563 = vector.shape_cast %562 : vector<1x16x16xf32> to vector<16x16xf32>
      %564 = vector.broadcast %561 : f32 to vector<16x16xf32>
      %565 = arith.mulf %564, %563 : vector<16x16xf32>
      %566 = arith.addf %560, %565 : vector<16x16xf32>
      %c88 = arith.constant 88 : index
      %567 = memref.load %arg3[%c88] : memref<98xf32, #tpu.memory_space<smem>>
      %c1_299 = arith.constant 1 : index
      %c10_300 = arith.constant 10 : index
      %c129_301 = arith.constant 129 : index
      %568 = vector.load %arg7[%c1_299, %c10_300, %c129_301] : memref<2x27x147xf32, #tpu.memory_space<vmem>>, vector<1x16x16xf32>
      %569 = vector.shape_cast %568 : vector<1x16x16xf32> to vector<16x16xf32>
      %570 = vector.broadcast %567 : f32 to vector<16x16xf32>
      %571 = arith.mulf %570, %569 : vector<16x16xf32>
      %572 = arith.addf %566, %571 : vector<16x16xf32>
      %c89 = arith.constant 89 : index
      %573 = memref.load %arg3[%c89] : memref<98xf32, #tpu.memory_space<smem>>
      %c1_302 = arith.constant 1 : index
      %c10_303 = arith.constant 10 : index
      %c130_304 = arith.constant 130 : index
      %574 = vector.load %arg7[%c1_302, %c10_303, %c130_304] : memref<2x27x147xf32, #tpu.memory_space<vmem>>, vector<1x16x16xf32>
      %575 = vector.shape_cast %574 : vector<1x16x16xf32> to vector<16x16xf32>
      %576 = vector.broadcast %573 : f32 to vector<16x16xf32>
      %577 = arith.mulf %576, %575 : vector<16x16xf32>
      %578 = arith.addf %572, %577 : vector<16x16xf32>
      %c90 = arith.constant 90 : index
      %579 = memref.load %arg3[%c90] : memref<98xf32, #tpu.memory_space<smem>>
      %c1_305 = arith.constant 1 : index
      %c10_306 = arith.constant 10 : index
      %c131_307 = arith.constant 131 : index
      %580 = vector.load %arg7[%c1_305, %c10_306, %c131_307] : memref<2x27x147xf32, #tpu.memory_space<vmem>>, vector<1x16x16xf32>
      %581 = vector.shape_cast %580 : vector<1x16x16xf32> to vector<16x16xf32>
      %582 = vector.broadcast %579 : f32 to vector<16x16xf32>
      %583 = arith.mulf %582, %581 : vector<16x16xf32>
      %584 = arith.addf %578, %583 : vector<16x16xf32>
      %c91 = arith.constant 91 : index
      %585 = memref.load %arg3[%c91] : memref<98xf32, #tpu.memory_space<smem>>
      %c1_308 = arith.constant 1 : index
      %c11_309 = arith.constant 11 : index
      %c125_310 = arith.constant 125 : index
      %586 = vector.load %arg7[%c1_308, %c11_309, %c125_310] : memref<2x27x147xf32, #tpu.memory_space<vmem>>, vector<1x16x16xf32>
      %587 = vector.shape_cast %586 : vector<1x16x16xf32> to vector<16x16xf32>
      %588 = vector.broadcast %585 : f32 to vector<16x16xf32>
      %589 = arith.mulf %588, %587 : vector<16x16xf32>
      %590 = arith.addf %584, %589 : vector<16x16xf32>
      %c92 = arith.constant 92 : index
      %591 = memref.load %arg3[%c92] : memref<98xf32, #tpu.memory_space<smem>>
      %c1_311 = arith.constant 1 : index
      %c11_312 = arith.constant 11 : index
      %c126_313 = arith.constant 126 : index
      %592 = vector.load %arg7[%c1_311, %c11_312, %c126_313] : memref<2x27x147xf32, #tpu.memory_space<vmem>>, vector<1x16x16xf32>
      %593 = vector.shape_cast %592 : vector<1x16x16xf32> to vector<16x16xf32>
      %594 = vector.broadcast %591 : f32 to vector<16x16xf32>
      %595 = arith.mulf %594, %593 : vector<16x16xf32>
      %596 = arith.addf %590, %595 : vector<16x16xf32>
      %c93 = arith.constant 93 : index
      %597 = memref.load %arg3[%c93] : memref<98xf32, #tpu.memory_space<smem>>
      %c1_314 = arith.constant 1 : index
      %c11_315 = arith.constant 11 : index
      %c127_316 = arith.constant 127 : index
      %598 = vector.load %arg7[%c1_314, %c11_315, %c127_316] : memref<2x27x147xf32, #tpu.memory_space<vmem>>, vector<1x16x16xf32>
      %599 = vector.shape_cast %598 : vector<1x16x16xf32> to vector<16x16xf32>
      %600 = vector.broadcast %597 : f32 to vector<16x16xf32>
      %601 = arith.mulf %600, %599 : vector<16x16xf32>
      %602 = arith.addf %596, %601 : vector<16x16xf32>
      %c94 = arith.constant 94 : index
      %603 = memref.load %arg3[%c94] : memref<98xf32, #tpu.memory_space<smem>>
      %c1_317 = arith.constant 1 : index
      %c11_318 = arith.constant 11 : index
      %c128_319 = arith.constant 128 : index
      %604 = vector.load %arg7[%c1_317, %c11_318, %c128_319] : memref<2x27x147xf32, #tpu.memory_space<vmem>>, vector<1x16x16xf32>
      %605 = vector.shape_cast %604 : vector<1x16x16xf32> to vector<16x16xf32>
      %606 = vector.broadcast %603 : f32 to vector<16x16xf32>
      %607 = arith.mulf %606, %605 : vector<16x16xf32>
      %608 = arith.addf %602, %607 : vector<16x16xf32>
      %c95 = arith.constant 95 : index
      %609 = memref.load %arg3[%c95] : memref<98xf32, #tpu.memory_space<smem>>
      %c1_320 = arith.constant 1 : index
      %c11_321 = arith.constant 11 : index
      %c129_322 = arith.constant 129 : index
      %610 = vector.load %arg7[%c1_320, %c11_321, %c129_322] : memref<2x27x147xf32, #tpu.memory_space<vmem>>, vector<1x16x16xf32>
      %611 = vector.shape_cast %610 : vector<1x16x16xf32> to vector<16x16xf32>
      %612 = vector.broadcast %609 : f32 to vector<16x16xf32>
      %613 = arith.mulf %612, %611 : vector<16x16xf32>
      %614 = arith.addf %608, %613 : vector<16x16xf32>
      %c96 = arith.constant 96 : index
      %615 = memref.load %arg3[%c96] : memref<98xf32, #tpu.memory_space<smem>>
      %c1_323 = arith.constant 1 : index
      %c11_324 = arith.constant 11 : index
      %c130_325 = arith.constant 130 : index
      %616 = vector.load %arg7[%c1_323, %c11_324, %c130_325] : memref<2x27x147xf32, #tpu.memory_space<vmem>>, vector<1x16x16xf32>
      %617 = vector.shape_cast %616 : vector<1x16x16xf32> to vector<16x16xf32>
      %618 = vector.broadcast %615 : f32 to vector<16x16xf32>
      %619 = arith.mulf %618, %617 : vector<16x16xf32>
      %620 = arith.addf %614, %619 : vector<16x16xf32>
      %c97 = arith.constant 97 : index
      %621 = memref.load %arg3[%c97] : memref<98xf32, #tpu.memory_space<smem>>
      %c1_326 = arith.constant 1 : index
      %c11_327 = arith.constant 11 : index
      %c131_328 = arith.constant 131 : index
      %622 = vector.load %arg7[%c1_326, %c11_327, %c131_328] : memref<2x27x147xf32, #tpu.memory_space<vmem>>, vector<1x16x16xf32>
      %623 = vector.shape_cast %622 : vector<1x16x16xf32> to vector<16x16xf32>
      %624 = vector.broadcast %621 : f32 to vector<16x16xf32>
      %625 = arith.mulf %624, %623 : vector<16x16xf32>
      %626 = arith.addf %620, %625 : vector<16x16xf32>
      %cst_329 = arith.constant 0.000000e+00 : f32
      %627 = vector.broadcast %cst_329 : f32 to vector<16x16xf32>
      %628 = arith.subf %627, %626 : vector<16x16xf32>
      %629 = math.exp %628 : vector<16x16xf32>
      %cst_330 = arith.constant 1.000000e+00 : f32
      %630 = vector.broadcast %cst_330 : f32 to vector<16x16xf32>
      %631 = arith.addf %630, %629 : vector<16x16xf32>
      %cst_331 = arith.constant 1.000000e+00 : f32
      %632 = vector.broadcast %cst_331 : f32 to vector<16x16xf32>
      %633 = arith.divf %632, %631 : vector<16x16xf32>
      %c0_332 = arith.constant 0 : index
      %c0_333 = arith.constant 0 : index
      %c0_334 = arith.constant 0 : index
      %c0_335 = arith.constant 0 : index
      %634 = vector.load %arg4[%c0_332, %c0_333, %c0_334, %c0_335] : memref<1x1x16x16xf32, #tpu.memory_space<vmem>>, vector<1x1x16x16xf32>
      %635 = vector.shape_cast %634 : vector<1x1x16x16xf32> to vector<16x16xf32>
      %636 = vector.shape_cast %633 : vector<16x16xf32> to vector<1x1x16x16xf32>
      tpu.vector_store %arg4[%c0_332, %c0_333, %c0_334, %c0_335], %636 {strides = array<i32>} : memref<1x1x16x16xf32, #tpu.memory_space<vmem>>, vector<1x1x16x16xf32>,
    } else {
    }
    return
  }
  func.func @transform_0(%arg0: i32, %arg1: i32) -> (i32, i32, i32, i32) {
    %c0_i32 = arith.constant 0 : i32
    %c0_i32_0 = arith.constant 0 : i32
    %c0_i32_1 = arith.constant 0 : i32
    return %arg0, %arg1, %c0_i32, %c0_i32_0 : i32, i32, i32, i32
  }
  func.func @transform_1(%arg0: i32, %arg1: i32) -> i32 {
    %c0_i32 = arith.constant 0 : i32
    %c0_i32_0 = arith.constant 0 : i32
    return %c0_i32 : i32
  }
  func.func @transform_2(%arg0: i32, %arg1: i32) -> (i32, i32, i32, i32) {
    %c0_i32 = arith.constant 0 : i32
    %c0_i32_0 = arith.constant 0 : i32
    %c0_i32_1 = arith.constant 0 : i32
    %c0_i32_2 = arith.constant 0 : i32
    return %arg0, %c0_i32, %c0_i32_0, %c0_i32_1 : i32, i32, i32, i32
  }
}

</mosaic_0001>

<llo_original>
// kernel: tpu_custom_call.1
$region0: #{tpu_custom_call.1}
  #allocation0 [shape = 'u32[]', space=smem, size = 0x4, offset = 0x4, fixed_abs, tag = 'smem constant byte address 0x4 - core index']
  #allocation1 [shape = 'u32[144,128]{1,0:T(1,128)}', space=vmem, size = 0x12000, scoped, tag = 'internal scratch']
  #allocation2 [shape = 'f32[16,16]{1,0:T(8,128)}', space=vmem, size = 0x2000, scoped, tag = 'scratch operand']
  #allocation3 [shape = 'f32[16,16]{1,0:T(8,128)}', space=vmem, size = 0x2000, scoped, tag = 'scratch operand']
  #allocation4 [shape = 'f32[2,27,147]{2,1,0:T(8,128)}', space=vmem, size = 0x10000, scoped, tag = 'scratch operand']
  %s0 = inlined_call_operand.hbm [shape: f32[2,4,16,16], index: 0, kind: input, shape index: {}]
  %s1 = inlined_call_operand.vmem [shape: f32[98], index: 1, kind: input, shape index: {}]
  %s2 = inlined_call_operand.hbm [shape: f32[2,1,16,16], index: 2, kind: output, shape index: {}]
  %s3 = sld [smem:[#allocation0]]
  $region57: #{tpu_custom_call.1} parent=0
    _
  %s5 = ssub.s32 1, %s3
  %s6 = scalar_select 0, %s5, %s3
  $region1: #{tpu_custom_call.1} parent=0
    #allocation5 [shape = 'u8[65536]{0}', space=vmem, size = 0x10000, scoped, tag = 'input window, operand 0']
    #allocation6 [shape = 's32[2]{0}', space=sflag, size = 0x8, scoped, tag = 'scoped memory for tpu_custom_call.1']
    #allocation7 [shape = 's32[2]{0}', space=sflag, size = 0x8, scoped, tag = 'scoped memory for tpu_custom_call.1']
    #allocation8 [shape = 's32[2]{0}', space=sflag, size = 0x8, scoped, tag = 'scoped memory for tpu_custom_call.1']
    #allocation9 [shape = 'u8[512]{0}', space=smem, size = 0x200, scoped, tag = 'input window, operand 1, single buffered']
    #allocation10 [shape = 'u8[16384]{0}', space=vmem, size = 0x4000, scoped, tag = 'output window, operand 0']
    %7 = vsyncpa [#allocation6], 0
    %s8 = scalar_lea.sflag [#allocation6], 1
    %9 = vsyncpa %s8, 0
    %10 = vsyncpa [#allocation8], 0
    %11 = vsyncpa [#allocation7], 0
    %s12 = scalar_lea.sflag [#allocation7], 1
    %13 = vsyncpa %s12, 0
    loop: start=0, step=1, limit=4
    $region2: #{tpu_custom_call.1} parent=1 // loop_pre_header
      _
    $region3: #{tpu_custom_call.1} parent=1 // loop_header
      %s15 = sphi 0, %s19
      %p16 = scmp.ge.s32.totalorder %s15, 4
      %s22 = sphi 0, %s34
      %s23 = sphi 0, %s30
      %s24 = sphi 0, %s22
      %s25 = sphi 0, %s23
      %s26 = sphi 0, %s24
      %s27 = sphi 0, %s25
      %s39 = sphi 0, %s41
      %s42 = sphi 0, %s39
      %s43 = sphi 0, %s42
      %s59 = sphi 0, %s43
      %s63 = sphi 0, %s63
      %s65 = sphi 0, %s63
      %s66 = sphi 0, %s65
      %s80 = sphi 0, %s66
      %s86 = sphi 0, %s88
      %s89 = sphi 0, %s86
      %s90 = sphi 0, %s89
      %s106 = sphi 0, %s90
    $region4: #{tpu_custom_call.1} parent=1 // loop_header_branch
      %18 = sbr.rel (%p16) target = $region8
    $region5: #{tpu_custom_call.1} parent=1 // loop_body
      %s20 = ssub.s32 %s15, 1
      %s21 = ssub.s32 %s15, 2
      %s28 = sadd.s32 1, %s23
      %p29 = scmp.ge.s32.totalorder %s28, 1
      %s30 = scalar_select %p29, 0, %s28
      %s31 = sadd.s32 1, %s22
      %s32 = scalar_select %p29, %s31, %s22
      %p33 = scmp.ge.s32.totalorder %s32, 2
      %s34 = scalar_select %p33, 0, %s32
      %s35 = ssub.s32 %s22, %s34
      %s36 = ssub.s32 %s23, %s30
      %s37 = sor.u32 %s35, %s36
      %p38 = scmp.eq.s32.totalorder %s37, 0
      %s40 = sadd.s32 %s39, 1
      %s41 = scalar_select %p38, %s39, %s40
      %p44 = pneg %p38
      %p45 = scmp.eq.s32.totalorder %s15, 1
      %p46 = por %p44, %p45
      %p47 = scmp.ne.s32.totalorder %s39, %s42
      %p48 = scmp.eq.s32.totalorder %s15, 0
      %p49 = por %p47, %p48
      %p50 = scmp.ne.s32.totalorder %s39, %s42
      %p51 = scmp.eq.s32.totalorder %s20, 1
      %p52 = por %p50, %p51
      %p53 = scmp.ne.s32.totalorder %s42, %s43
      %p54 = scmp.eq.s32.totalorder %s20, 0
      %p55 = por %p53, %p54
      %p56 = scmp.ne.s32.totalorder %s42, %s43
      %p57 = scmp.eq.s32.totalorder %s21, 1
      %p58 = por %p56, %p57
      %p60 = scmp.ne.s32.totalorder %s43, %s59
      %p61 = scmp.eq.s32.totalorder %s21, 0
      %p62 = por %p60, %p61
      %s64 = sadd.s32 %s63, 1
      %p67 = scmp.eq.s32.totalorder %s15, 1
      %p68 = scmp.ne.s32.totalorder %s63, %s65
      %p69 = scmp.eq.s32.totalorder %s15, 0
      %p70 = por %p68, %p69
      %p71 = scmp.ne.s32.totalorder %s63, %s65
      %p72 = scmp.eq.s32.totalorder %s20, 1
      %p73 = por %p71, %p72
      %p74 = scmp.ne.s32.totalorder %s65, %s66
      %p75 = scmp.eq.s32.totalorder %s20, 0
      %p76 = por %p74, %p75
      %p77 = scmp.ne.s32.totalorder %s65, %s66
      %p78 = scmp.eq.s32.totalorder %s21, 1
      %p79 = por %p77, %p78
      %p81 = scmp.ne.s32.totalorder %s66, %s80
      %p82 = scmp.eq.s32.totalorder %s21, 0
      %p83 = por %p81, %p82
      %s84 = ssub.s32 %s22, %s34
      %p85 = scmp.eq.s32.totalorder %s84, 0
      %s87 = sadd.s32 %s86, 1
      %s88 = scalar_select %p85, %s86, %s87
      %p91 = pneg %p85
      %p92 = scmp.eq.s32.totalorder %s15, 1
      %p93 = por %p91, %p92
      %p94 = scmp.ne.s32.totalorder %s86, %s89
      %p95 = scmp.eq.s32.totalorder %s15, 0
      %p96 = por %p94, %p95
      %p97 = scmp.ne.s32.totalorder %s86, %s89
      %p98 = scmp.eq.s32.totalorder %s20, 1
      %p99 = por %p97, %p98
      %p100 = scmp.ne.s32.totalorder %s89, %s90
      %p101 = scmp.eq.s32.totalorder %s20, 0
      %p102 = por %p100, %p101
      %p103 = scmp.ne.s32.totalorder %s89, %s90
      %p104 = scmp.eq.s32.totalorder %s21, 1
      %p105 = por %p103, %p104
      %p107 = scmp.ne.s32.totalorder %s90, %s106
      %p108 = scmp.eq.s32.totalorder %s21, 0
      %p109 = por %p107, %p108
      %p110 = scmp.le.s32.totalorder 1, %s15
      %p111 = scmp.lt.s32.totalorder %s15, 3
      %p112 = pnand %p110, %p111
      %p113 = pneg %p112
      // Predicated region
      $region9: #{tpu_custom_call.1} parent=5 // pred_check
        _
      $region10: #{tpu_custom_call.1} parent=5 // pred_check_branch
        %115 = sbr.rel (%p112) target = $region12
      $region11: #{tpu_custom_call.1} parent=5 // pred_region
        %s116 = ssub.s32 %s15, 1
        // Predicated region
        $region13: #{tpu_custom_call.1} parent=11 // pred_check
          %p117 = pneg %p76
        $region14: #{tpu_custom_call.1} parent=11 // pred_check_branch
          %119 = sbr.rel (%p117) target = $region16
        $region15: #{tpu_custom_call.1} parent=11 // pred_region
          %s121 = ssub.s32 16, 16
          %122 = vsyncadd [#allocation8], %s121
          %s124 = sshll.u32 %s1, 4
          %s125 = int_to_ptr.vmem [resolvable:$true] %s124
          %127 = dma.vmem_to_smem %s125, 16, [#allocation9], [#allocation8]
        $region16: #{tpu_custom_call.1} parent=11 // pred_fallthru
          _
      $region12: #{tpu_custom_call.1} parent=5 // pred_fallthru
        _
      %p128 = scmp.lt.s32.totalorder %s15, 2
      // Predicated region
      $region17: #{tpu_custom_call.1} parent=5 // pred_check
        %p129 = pneg %p128
      $region18: #{tpu_custom_call.1} parent=5 // pred_check_branch
        %131 = sbr.rel (%p129) target = $region20
      $region19: #{tpu_custom_call.1} parent=5 // pred_region
        // Predicated region
        $region21: #{tpu_custom_call.1} parent=19 // pred_check
          %p132 = pneg %p49
        $region22: #{tpu_custom_call.1} parent=19 // pred_check_branch
          %134 = sbr.rel (%p132) target = $region24
        $region23: #{tpu_custom_call.1} parent=19 // pred_region
          %s135 = sand.u32 %s39, 1
          %s136 = scalar_lea.sflag [#allocation6], %s135
          %s137 = sand.u32 %s39, 1
          %s138 = smul.addr %s137, 64
          %s139 = scalar_lea.vmem [#allocation5], %s138
          %s140 = smul.u32 4, %s23
          %s142 = ssub.s32 1024, 1024
          %143 = vsyncadd %s136, %s142
          %s144 = smul.addr %s140, 2
          %s145 = smul.addr %s22, 8
          %s146 = sadd.s32 %s144, %s145
          %s147 = smul.addr %s146, 128
          %s148 = scalar_lea.hbm %s0, %s147
          %s149 = sshll.u32 %s139, 4
          %s150 = int_to_ptr.vmem [resolvable:$true] %s149
          %155 = dma.hbm_to_vmem [thread:$0]  %s148, 1024, %s150, %s136, 128, 128, 8
        $region24: #{tpu_custom_call.1} parent=19 // pred_fallthru
          _
      $region20: #{tpu_custom_call.1} parent=5 // pred_fallthru
        _
      %p156 = scmp.le.s32.totalorder 1, %s15
      %p157 = scmp.lt.s32.totalorder %s15, 3
      %p158 = pnand %p156, %p157
      %p159 = pneg %p158
      // Predicated region
      $region25: #{tpu_custom_call.1} parent=5 // pred_check
        _
      $region26: #{tpu_custom_call.1} parent=5 // pred_check_branch
        %161 = sbr.rel (%p158) target = $region28
      $region27: #{tpu_custom_call.1} parent=5 // pred_region
        %s162 = ssub.s32 %s15, 1
        %s163 = sand.u32 %s42, 1
        %s164 = scalar_lea.sflag [#allocation6], %s163
        %s165 = sand.u32 %s42, 1
        %s166 = smul.addr %s165, 64
        %s167 = scalar_lea.vmem [#allocation5], %s166
        // Predicated region
        $region29: #{tpu_custom_call.1} parent=27 // pred_check
          %p168 = pneg %p55
        $region30: #{tpu_custom_call.1} parent=27 // pred_check_branch
          %170 = sbr.rel (%p168) target = $region32
        $region31: #{tpu_custom_call.1} parent=27 // pred_region
          %171 = dma.done %s164, 1024
        $region32: #{tpu_custom_call.1} parent=27 // pred_fallthru
          _
        // Predicated region
        $region33: #{tpu_custom_call.1} parent=27 // pred_check
          %p172 = pneg %p76
        $region34: #{tpu_custom_call.1} parent=27 // pred_check_branch
          %174 = sbr.rel (%p172) target = $region36
        $region35: #{tpu_custom_call.1} parent=27 // pred_region
          %175 = dma.done [#allocation8], 16
        $region36: #{tpu_custom_call.1} parent=27 // pred_fallthru
          _
        %176 = sfence
        %s177 = sand.u32 %s42, 1
        %s178 = scalar_lea.sflag [#allocation6], %s177
        %s179 = sand.u32 %s42, 1
        %s180 = smul.addr %s179, 64
        %s181 = scalar_lea.vmem [#allocation5], %s180
        %p182 = pneg %p55
        %p183 = pneg %p52
        %p184 = pneg %p76
        %p185 = pneg %p73
        %p186 = pneg %p102
        %p187 = pneg %p99
        %s188 = sand.u32 %s89, 1
        %s189 = scalar_lea.sflag [#allocation7], %s188
        %s190 = sand.u32 %s89, 1
        %s191 = smul.addr %s190, 16
        %s192 = scalar_lea.vmem [#allocation10], %s191
        %s193 = smul.u32 4, %s25
        %p194 = scmp.eq.s32.totalorder %s25, 0
        // Predicated region
        $region37: #{tpu_custom_call.1} parent=27 // pred_check
          %p195 = pneg %p194
        $region38: #{tpu_custom_call.1} parent=27 // pred_check_branch
          %197 = sbr.rel (%p195) target = $region40
        $region39: #{tpu_custom_call.1} parent=27 // pred_region
          %vm198 = vcmask 130048
          %199 = vst.msk [vmem:[#allocation2] sm:$0xff] %vm198, 0.0
          %200 = vst.msk [vmem:[#allocation2 + $0x8] sm:$0xff] %vm198, 0.0
          %201 = vst.msk [vmem:[#allocation3] sm:$0xff] %vm198, -inf
          %202 = vst.msk [vmem:[#allocation3 + $0x8] sm:$0xff] %vm198, -inf
        $region40: #{tpu_custom_call.1} parent=27 // pred_fallthru
          _
        %v203 = vld [vmem:[%s167] sm:$0xff]
        %v204 = vld [vmem:[%s167 + $0x8] sm:$0xff]
        %s205 = scalar_lea.vmem %s167, 16 [#allocation5]
        %v206 = vld [vmem:[%s205] sm:$0xff]
        %v207 = vld [vmem:[%s205 + $0x8] sm:$0xff]
        %v208 = vadd.f32 %v203, %v206
        %v209 = vadd.f32 %v204, %v207
        %v210 = vmax.f32 %v203, %v206
        %v211 = vmax.f32 %v204, %v207
        %s212 = scalar_lea.vmem %s167, 32 [#allocation5]
        %v213 = vld [vmem:[%s212] sm:$0xff]
        %v214 = vld [vmem:[%s212 + $0x8] sm:$0xff]
        %v215 = vadd.f32 %v208, %v213
        %v216 = vadd.f32 %v209, %v214
        %v217 = vmax.f32 %v210, %v213
        %v218 = vmax.f32 %v211, %v214
        %s219 = scalar_lea.vmem %s167, 48 [#allocation5]
        %v220 = vld [vmem:[%s219] sm:$0xff]
        %v221 = vld [vmem:[%s219 + $0x8] sm:$0xff]
        %v222 = vadd.f32 %v215, %v220
        %v223 = vadd.f32 %v216, %v221
        %v224 = vmax.f32 %v217, %v220
        %v225 = vmax.f32 %v218, %v221
        %v226 = vld [vmem:[#allocation2] sm:$0xff]
        %v227 = vld [vmem:[#allocation2 + $0x8] sm:$0xff]
        %v228 = vadd.f32 %v226, %v222
        %v229 = vadd.f32 %v227, %v223
        %vm230 = vcmask 130048
        %231 = vst.msk [vmem:[#allocation2] sm:$0xff] %vm230, %v228
        %232 = vst.msk [vmem:[#allocation2 + $0x8] sm:$0xff] %vm230, %v229
        %v233 = vld [vmem:[#allocation3] sm:$0xff]
        %v234 = vld [vmem:[#allocation3 + $0x8] sm:$0xff]
        %v235 = vmax.f32 %v233, %v224
        %v236 = vmax.f32 %v234, %v225
        %237 = vst.msk [vmem:[#allocation3] sm:$0xff] %vm230, %v235
        %238 = vst.msk [vmem:[#allocation3 + $0x8] sm:$0xff] %vm230, %v236
        // Predicated region
        $region41: #{tpu_custom_call.1} parent=27 // pred_check
          %p239 = pneg %p194
        $region42: #{tpu_custom_call.1} parent=27 // pred_check_branch
          %241 = sbr.rel (%p239) target = $region44
        $region43: #{tpu_custom_call.1} parent=27 // pred_region
          %v242 = vld [vmem:[#allocation2] sm:$0xff]
          %v243 = vld [vmem:[#allocation2 + $0x8] sm:$0xff]
          %v244 = vmul.f32 %v242, 0.25
          %v245 = vmul.f32 %v243, 0.25
          %v246 = vld [vmem:[#allocation3] sm:$0xff]
          %v247 = vld [vmem:[#allocation3 + $0x8] sm:$0xff]
          %248 = vst [vmem:[#allocation4] sm:$0xff] 0.0
          %vm249 = vcmask 154624
          %250 = vst.msk [vmem:[#allocation4 + $0x8] sm:$0xff] %vm249, 0.0
          %251 = vst [vmem:[#allocation4 + $0x10] sm:$0xff] 0.0
          %252 = vst.msk [vmem:[#allocation4 + $0x18] sm:$0xff] %vm249, 0.0
          %253 = vst [vmem:[#allocation4 + $0x20] sm:$0xff] 0.0
          %254 = vst.msk [vmem:[#allocation4 + $0x28] sm:$0xff] %vm249, 0.0
          %255 = vst [vmem:[#allocation4 + $0x30] sm:$0x7] 0.0
          %vm256 = vcmask 149504
          %257 = vst.msk [vmem:[#allocation4 + $0x38] sm:$0x7] %vm256, 0.0
          %258 = vst [vmem:[#allocation4 + $0x40] sm:$0xff] 0.0
          %259 = vst.msk [vmem:[#allocation4 + $0x48] sm:$0xff] %vm249, 0.0
          %260 = vst [vmem:[#allocation4 + $0x50] sm:$0xff] 0.0
          %261 = vst.msk [vmem:[#allocation4 + $0x58] sm:$0xff] %vm249, 0.0
          %262 = vst [vmem:[#allocation4 + $0x60] sm:$0xff] 0.0
          %263 = vst.msk [vmem:[#allocation4 + $0x68] sm:$0xff] %vm249, 0.0
          %264 = vst [vmem:[#allocation4 + $0x70] sm:$0x7] 0.0
          %265 = vst.msk [vmem:[#allocation4 + $0x78] sm:$0x7] %vm256, 0.0
          %266 = vst.msk [vmem:[#allocation4 + $0x18] sm:$0xff] %vm230, %v244
          %267 = vst.msk [vmem:[#allocation4 + $0x28] sm:$0xff] %vm230, %v245
          %s268 = scalar_lea.vmem [#allocation4], 64
          %269 = vst.msk [vmem:[%s268 + $0x18] sm:$0xff] %vm230, %v246
          %270 = vst.msk [vmem:[%s268 + $0x28] sm:$0xff] %vm230, %v247
          %s271 = sld [smem:[#allocation9]]
          %v272 = vld [vmem:[#allocation4] sm:$0xe0]
          %v273 = vld [vmem:[#allocation4 + $0x8] sm:$0xe0]
          %v274 = vld [vmem:[#allocation4 + $0x10] sm:$0xff]
          %v275 = vld [vmem:[#allocation4 + $0x18] sm:$0xff]
          %v276 = vld [vmem:[#allocation4 + $0x20] sm:$0x1f]
          %v277 = vld [vmem:[#allocation4 + $0x28] sm:$0x1f]
          %v278 = vstv %s271
          %v279 = vmul.f32 %v278, %v272
          %v280 = vmul.f32 %v278, %v273
          %v281 = vmul.f32 %v278, %v274
          %v282 = vmul.f32 %v278, %v275
          %v283 = vmul.f32 %v278, %v276
          %v284 = vmul.f32 %v278, %v277
          %v285 = vadd.f32 %v279, 0.0
          %v286 = vadd.f32 %v280, 0.0
          %v287 = vadd.f32 %v281, 0.0
          %v288 = vadd.f32 %v282, 0.0
          %v289 = vadd.f32 %v283, 0.0
          %v290 = vadd.f32 %v284, 0.0
          %s291 = sld [smem:[#allocation9 + $0x1]]
          %v292 = vstv %s291
          %v293 = vmul.f32 %v292, %v272
          %v294 = vmul.f32 %v292, %v273
          %v295 = vmul.f32 %v292, %v274
          %v296 = vmul.f32 %v292, %v275
          %v297 = vmul.f32 %v292, %v276
          %v298 = vmul.f32 %v292, %v277
          %305 = vrot.lane.b32.xlu0 %v293, 127
          %v306 = vpop.permute.xlu0 %305
          %307 = vrot.lane.b32.xlu0 %v294, 127
          %v308 = vpop.permute.xlu0 %307
          %309 = vrot.lane.b32.xlu0 %v295, 127
          %v310 = vpop.permute.xlu0 %309
          %311 = vrot.lane.b32.xlu0 %v296, 127
          %v312 = vpop.permute.xlu0 %311
          %313 = vrot.lane.b32.xlu0 %v297, 127
          %v314 = vpop.permute.xlu0 %313
          %315 = vrot.lane.b32.xlu0 %v298, 127
          %v316 = vpop.permute.xlu0 %315
          %vm317 = vcmask 1039360
          %v318 = vsel %vm317, %v306, %v308
          %v319 = vsel %vm317, %v310, %v312
          %v320 = vsel %vm317, %v314, %v316
          %v327 = vadd.f32 %v285, %v318
          %v328 = vadd.f32 %v286, %v308
          %v329 = vadd.f32 %v287, %v319
          %v330 = vadd.f32 %v288, %v312
          %v331 = vadd.f32 %v289, %v320
          %v332 = vadd.f32 %v290, %v316
          %s333 = sld [smem:[#allocation9 + $0x2]]
          %v334 = vstv %s333
          %v335 = vmul.f32 %v334, %v272
          %v336 = vmul.f32 %v334, %v273
          %v337 = vmul.f32 %v334, %v274
          %v338 = vmul.f32 %v334, %v275
          %v339 = vmul.f32 %v334, %v276
          %v340 = vmul.f32 %v334, %v277
          %347 = vrot.lane.b32.xlu0 %v335, 126
          %v348 = vpop.permute.xlu0 %347
          %349 = vrot.lane.b32.xlu0 %v336, 126
          %v350 = vpop.permute.xlu0 %349
          %351 = vrot.lane.b32.xlu0 %v337, 126
          %v352 = vpop.permute.xlu0 %351
          %353 = vrot.lane.b32.xlu0 %v338, 126
          %v354 = vpop.permute.xlu0 %353
          %355 = vrot.lane.b32.xlu0 %v339, 126
          %v356 = vpop.permute.xlu0 %355
          %357 = vrot.lane.b32.xlu0 %v340, 126
          %v358 = vpop.permute.xlu0 %357
          %vm359 = vcmask 1031168
          %v360 = vsel %vm359, %v348, %v350
          %v361 = vsel %vm359, %v352, %v354
          %v362 = vsel %vm359, %v356, %v358
          %v369 = vadd.f32 %v327, %v360
          %v370 = vadd.f32 %v328, %v350
          %v371 = vadd.f32 %v329, %v361
          %v372 = vadd.f32 %v330, %v354
          %v373 = vadd.f32 %v331, %v362
          %v374 = vadd.f32 %v332, %v358
          %s375 = sld [smem:[#allocation9 + $0x3]]
          %v376 = vstv %s375
          %v377 = vmul.f32 %v376, %v273
          %v378 = vmul.f32 %v376, %v275
          %v379 = vmul.f32 %v376, %v277
          %383 = vrot.lane.b32.xlu0 %v377, 125
          %v384 = vpop.permute.xlu0 %383
          %385 = vrot.lane.b32.xlu0 %v378, 125
          %v386 = vpop.permute.xlu0 %385
          %387 = vrot.lane.b32.xlu0 %v379, 125
          %v388 = vpop.permute.xlu0 %387
          %v392 = vadd.f32 %v369, %v384
          %v393 = vadd.f32 %v370, %v384
          %v394 = vadd.f32 %v371, %v386
          %v395 = vadd.f32 %v372, %v386
          %v396 = vadd.f32 %v373, %v388
          %v397 = vadd.f32 %v374, %v388
          %s398 = sld [smem:[#allocation9 + $0x4]]
          %v399 = vstv %s398
          %v400 = vmul.f32 %v399, %v273
          %v401 = vmul.f32 %v399, %v275
          %v402 = vmul.f32 %v399, %v277
          %406 = vrot.lane.b32.xlu0 %v400, 124
          %v407 = vpop.permute.xlu0 %406
          %408 = vrot.lane.b32.xlu0 %v401, 124
          %v409 = vpop.permute.xlu0 %408
          %410 = vrot.lane.b32.xlu0 %v402, 124
          %v411 = vpop.permute.xlu0 %410
          %v415 = vadd.f32 %v392, %v407
          %v416 = vadd.f32 %v393, %v407
          %v417 = vadd.f32 %v394, %v409
          %v418 = vadd.f32 %v395, %v409
          %v419 = vadd.f32 %v396, %v411
          %v420 = vadd.f32 %v397, %v411
          %s421 = sld [smem:[#allocation9 + $0x5]]
          %v422 = vstv %s421
          %v423 = vmul.f32 %v422, %v273
          %v424 = vmul.f32 %v422, %v275
          %v425 = vmul.f32 %v422, %v277
          %429 = vrot.lane.b32.xlu0 %v423, 123
          %v430 = vpop.permute.xlu0 %429
          %431 = vrot.lane.b32.xlu0 %v424, 123
          %v432 = vpop.permute.xlu0 %431
          %433 = vrot.lane.b32.xlu0 %v425, 123
          %v434 = vpop.permute.xlu0 %433
          %v438 = vadd.f32 %v415, %v430
          %v439 = vadd.f32 %v416, %v430
          %v440 = vadd.f32 %v417, %v432
          %v441 = vadd.f32 %v418, %v432
          %v442 = vadd.f32 %v419, %v434
          %v443 = vadd.f32 %v420, %v434
          %s444 = sld [smem:[#allocation9 + $0x6]]
          %v445 = vstv %s444
          %v446 = vmul.f32 %v445, %v273
          %v447 = vmul.f32 %v445, %v275
          %v448 = vmul.f32 %v445, %v277
          %452 = vrot.lane.b32.xlu0 %v446, 122
          %v453 = vpop.permute.xlu0 %452
          %454 = vrot.lane.b32.xlu0 %v447, 122
          %v455 = vpop.permute.xlu0 %454
          %456 = vrot.lane.b32.xlu0 %v448, 122
          %v457 = vpop.permute.xlu0 %456
          %v461 = vadd.f32 %v438, %v453
          %v462 = vadd.f32 %v439, %v453
          %v463 = vadd.f32 %v440, %v455
          %v464 = vadd.f32 %v441, %v455
          %v465 = vadd.f32 %v442, %v457
          %v466 = vadd.f32 %v443, %v457
          %s467 = sld [smem:[#allocation9 + $0x7]]
          %v468 = vld [vmem:[#allocation4] sm:$0xc0]
          %v469 = vld [vmem:[#allocation4 + $0x8] sm:$0xc0]
          %v470 = vld [vmem:[#allocation4 + $0x20] sm:$0x3f]
          %v471 = vld [vmem:[#allocation4 + $0x28] sm:$0x3f]
          %v472 = vstv %s467
          %v473 = vmul.f32 %v472, %v468
          %v474 = vmul.f32 %v472, %v469
          %v475 = vmul.f32 %v472, %v274
          %v476 = vmul.f32 %v472, %v275
          %v477 = vmul.f32 %v472, %v470
          %v478 = vmul.f32 %v472, %v471
          %vm485 = vcmask 1046528
          %v486 = vrot.slane %v473, 1
          %v487 = vrot.slane %v475, 1
          %v488 = vsel %vm485, %v486, %v487
          %v489 = vrot.slane %v474, 1
          %v490 = vrot.slane %v476, 1
          %v491 = vsel %vm485, %v489, %v490
          %v492 = vrot.slane %v477, 1
          %v493 = vsel %vm485, %v487, %v492
          %v494 = vrot.slane %v478, 1
          %v495 = vsel %vm485, %v490, %v494
          %v502 = vadd.f32 %v461, %v488
          %v503 = vadd.f32 %v462, %v491
          %v504 = vadd.f32 %v463, %v493
          %v505 = vadd.f32 %v464, %v495
          %v506 = vadd.f32 %v465, %v492
          %v507 = vadd.f32 %v466, %v494
          %s508 = sld [smem:[#allocation9 + $0x8]]
          %v509 = vstv %s508
          %v510 = vmul.f32 %v509, %v468
          %v511 = vmul.f32 %v509, %v469
          %v512 = vmul.f32 %v509, %v274
          %v513 = vmul.f32 %v509, %v275
          %v514 = vmul.f32 %v509, %v470
          %v515 = vmul.f32 %v509, %v471
          %v522 = vrot.slane %v510, 1
          %v523 = vrot.slane %v512, 1
          %v524 = vsel %vm485, %v522, %v523
          %v525 = vrot.slane %v511, 1
          %v526 = vrot.slane %v513, 1
          %v527 = vsel %vm485, %v525, %v526
          %v528 = vrot.slane %v514, 1
          %v529 = vsel %vm485, %v523, %v528
          %v530 = vrot.slane %v515, 1
          %v531 = vsel %vm485, %v526, %v530
          %532 = vrot.lane.b32.xlu0 %v524, 127
          %v533 = vpop.permute.xlu0 %532
          %534 = vrot.lane.b32.xlu0 %v527, 127
          %v535 = vpop.permute.xlu0 %534
          %536 = vrot.lane.b32.xlu0 %v529, 127
          %v537 = vpop.permute.xlu0 %536
          %538 = vrot.lane.b32.xlu0 %v531, 127
          %v539 = vpop.permute.xlu0 %538
          %540 = vrot.lane.b32.xlu0 %v528, 127
          %v541 = vpop.permute.xlu0 %540
          %542 = vrot.lane.b32.xlu0 %v530, 127
          %v543 = vpop.permute.xlu0 %542
          %v544 = vsel %vm317, %v533, %v535
          %v545 = vsel %vm317, %v537, %v539
          %v546 = vsel %vm317, %v541, %v543
          %v553 = vadd.f32 %v502, %v544
          %v554 = vadd.f32 %v503, %v535
          %v555 = vadd.f32 %v504, %v545
          %v556 = vadd.f32 %v505, %v539
          %v557 = vadd.f32 %v506, %v546
          %v558 = vadd.f32 %v507, %v543
          %s559 = sld [smem:[#allocation9 + $0x9]]
          %v560 = vstv %s559
          %v561 = vmul.f32 %v560, %v468
          %v562 = vmul.f32 %v560, %v469
          %v563 = vmul.f32 %v560, %v274
          %v564 = vmul.f32 %v560, %v275
          %v565 = vmul.f32 %v560, %v470
          %v566 = vmul.f32 %v560, %v471
          %v573 = vrot.slane %v561, 1
          %v574 = vrot.slane %v563, 1
          %v575 = vsel %vm485, %v573, %v574
          %v576 = vrot.slane %v562, 1
          %v577 = vrot.slane %v564, 1
          %v578 = vsel %vm485, %v576, %v577
          %v579 = vrot.slane %v565, 1
          %v580 = vsel %vm485, %v574, %v579
          %v581 = vrot.slane %v566, 1
          %v582 = vsel %vm485, %v577, %v581
          %583 = vrot.lane.b32.xlu0 %v575, 126
          %v584 = vpop.permute.xlu0 %583
          %585 = vrot.lane.b32.xlu0 %v578, 126
          %v586 = vpop.permute.xlu0 %585
          %587 = vrot.lane.b32.xlu0 %v580, 126
          %v588 = vpop.permute.xlu0 %587
          %589 = vrot.lane.b32.xlu0 %v582, 126
          %v590 = vpop.permute.xlu0 %589
          %591 = vrot.lane.b32.xlu0 %v579, 126
          %v592 = vpop.permute.xlu0 %591
          %593 = vrot.lane.b32.xlu0 %v581, 126
          %v594 = vpop.permute.xlu0 %593
          %v595 = vsel %vm359, %v584, %v586
          %v596 = vsel %vm359, %v588, %v590
          %v597 = vsel %vm359, %v592, %v594
          %v604 = vadd.f32 %v553, %v595
          %v605 = vadd.f32 %v554, %v586
          %v606 = vadd.f32 %v555, %v596
          %v607 = vadd.f32 %v556, %v590
          %v608 = vadd.f32 %v557, %v597
          %v609 = vadd.f32 %v558, %v594
          %s610 = sld [smem:[#allocation9 + $0xa]]
          %v611 = vstv %s610
          %v612 = vmul.f32 %v611, %v469
          %v613 = vmul.f32 %v611, %v275
          %v614 = vmul.f32 %v611, %v471
          %v618 = vrot.slane %v612, 1
          %v619 = vrot.slane %v613, 1
          %v620 = vsel %vm485, %v618, %v619
          %v621 = vrot.slane %v614, 1
          %v622 = vsel %vm485, %v619, %v621
          %623 = vrot.lane.b32.xlu0 %v620, 125
          %v624 = vpop.permute.xlu0 %623
          %625 = vrot.lane.b32.xlu0 %v622, 125
          %v626 = vpop.permute.xlu0 %625
          %627 = vrot.lane.b32.xlu0 %v621, 125
          %v628 = vpop.permute.xlu0 %627
          %v632 = vadd.f32 %v604, %v624
          %v633 = vadd.f32 %v605, %v624
          %v634 = vadd.f32 %v606, %v626
          %v635 = vadd.f32 %v607, %v626
          %v636 = vadd.f32 %v608, %v628
          %v637 = vadd.f32 %v609, %v628
          %s638 = sld [smem:[#allocation9 + $0xb]]
          %v639 = vstv %s638
          %v640 = vmul.f32 %v639, %v469
          %v641 = vmul.f32 %v639, %v275
          %v642 = vmul.f32 %v639, %v471
          %v646 = vrot.slane %v640, 1
          %v647 = vrot.slane %v641, 1
          %v648 = vsel %vm485, %v646, %v647
          %v649 = vrot.slane %v642, 1
          %v650 = vsel %vm485, %v647, %v649
          %651 = vrot.lane.b32.xlu0 %v648, 124
          %v652 = vpop.permute.xlu0 %651
          %653 = vrot.lane.b32.xlu0 %v650, 124
          %v654 = vpop.permute.xlu0 %653
          %655 = vrot.lane.b32.xlu0 %v649, 124
          %v656 = vpop.permute.xlu0 %655
          %v660 = vadd.f32 %v632, %v652
          %v661 = vadd.f32 %v633, %v652
          %v662 = vadd.f32 %v634, %v654
          %v663 = vadd.f32 %v635, %v654
          %v664 = vadd.f32 %v636, %v656
          %v665 = vadd.f32 %v637, %v656
          %s666 = sld [smem:[#allocation9 + $0xc]]
          %v667 = vstv %s666
          %v668 = vmul.f32 %v667, %v469
          %v669 = vmul.f32 %v667, %v275
          %v670 = vmul.f32 %v667, %v471
          %v674 = vrot.slane %v668, 1
          %v675 = vrot.slane %v669, 1
          %v676 = vsel %vm485, %v674, %v675
          %v677 = vrot.slane %v670, 1
          %v678 = vsel %vm485, %v675, %v677
          %679 = vrot.lane.b32.xlu0 %v676, 123
          %v680 = vpop.permute.xlu0 %679
          %681 = vrot.lane.b32.xlu0 %v678, 123
          %v682 = vpop.permute.xlu0 %681
          %683 = vrot.lane.b32.xlu0 %v677, 123
          %v684 = vpop.permute.xlu0 %683
          %v688 = vadd.f32 %v660, %v680
          %v689 = vadd.f32 %v661, %v680
          %v690 = vadd.f32 %v662, %v682
          %v691 = vadd.f32 %v663, %v682
          %v692 = vadd.f32 %v664, %v684
          %v693 = vadd.f32 %v665, %v684
          %s694 = sld [smem:[#allocation9 + $0xd]]
          %v695 = vstv %s694
          %v696 = vmul.f32 %v695, %v469
          %v697 = vmul.f32 %v695, %v275
          %v698 = vmul.f32 %v695, %v471
          %v702 = vrot.slane %v696, 1
          %v703 = vrot.slane %v697, 1
          %v704 = vsel %vm485, %v702, %v703
          %v705 = vrot.slane %v698, 1
          %v706 = vsel %vm485, %v703, %v705
          %707 = vrot.lane.b32.xlu0 %v704, 122
          %v708 = vpop.permute.xlu0 %707
          %709 = vrot.lane.b32.xlu0 %v706, 122
          %v710 = vpop.permute.xlu0 %709
          %711 = vrot.lane.b32.xlu0 %v705, 122
          %v712 = vpop.permute.xlu0 %711
          %v716 = vadd.f32 %v688, %v708
          %v717 = vadd.f32 %v689, %v708
          %v718 = vadd.f32 %v690, %v710
          %v719 = vadd.f32 %v691, %v710
          %v720 = vadd.f32 %v692, %v712
          %v721 = vadd.f32 %v693, %v712
          %s722 = sld [smem:[#allocation9 + $0xe]]
          %v723 = vld [vmem:[#allocation4] sm:$0x80]
          %v724 = vld [vmem:[#allocation4 + $0x8] sm:$0x80]
          %v725 = vld [vmem:[#allocation4 + $0x20] sm:$0x7f]
          %v726 = vld [vmem:[#allocation4 + $0x28] sm:$0x7f]
          %v727 = vstv %s722
          %v728 = vmul.f32 %v727, %v723
          %v729 = vmul.f32 %v727, %v724
          %v730 = vmul.f32 %v727, %v274
          %v731 = vmul.f32 %v727, %v275
          %v732 = vmul.f32 %v727, %v725
          %v733 = vmul.f32 %v727, %v726
          %vm740 = vcmask 1045504
          %v741 = vrot.slane %v728, 2
          %v742 = vrot.slane %v730, 2
          %v743 = vsel %vm740, %v741, %v742
          %v744 = vrot.slane %v729, 2
          %v745 = vrot.slane %v731, 2
          %v746 = vsel %vm740, %v744, %v745
          %v747 = vrot.slane %v732, 2
          %v748 = vsel %vm740, %v742, %v747
          %v749 = vrot.slane %v733, 2
          %v750 = vsel %vm740, %v745, %v749
          %v757 = vadd.f32 %v716, %v743
          %v758 = vadd.f32 %v717, %v746
          %v759 = vadd.f32 %v718, %v748
          %v760 = vadd.f32 %v719, %v750
          %v761 = vadd.f32 %v720, %v747
          %v762 = vadd.f32 %v721, %v749
          %s763 = sld [smem:[#allocation9 + $0xf]]
          %v764 = vstv %s763
          %v765 = vmul.f32 %v764, %v723
          %v766 = vmul.f32 %v764, %v724
          %v767 = vmul.f32 %v764, %v274
          %v768 = vmul.f32 %v764, %v275
          %v769 = vmul.f32 %v764, %v725
          %v770 = vmul.f32 %v764, %v726
          %v777 = vrot.slane %v765, 2
          %v778 = vrot.slane %v767, 2
          %v779 = vsel %vm740, %v777, %v778
          %v780 = vrot.slane %v766, 2
          %v781 = vrot.slane %v768, 2
          %v782 = vsel %vm740, %v780, %v781
          %v783 = vrot.slane %v769, 2
          %v784 = vsel %vm740, %v778, %v783
          %v785 = vrot.slane %v770, 2
          %v786 = vsel %vm740, %v781, %v785
          %787 = vrot.lane.b32.xlu0 %v779, 127
          %v788 = vpop.permute.xlu0 %787
          %789 = vrot.lane.b32.xlu0 %v782, 127
          %v790 = vpop.permute.xlu0 %789
          %791 = vrot.lane.b32.xlu0 %v784, 127
          %v792 = vpop.permute.xlu0 %791
          %793 = vrot.lane.b32.xlu0 %v786, 127
          %v794 = vpop.permute.xlu0 %793
          %795 = vrot.lane.b32.xlu0 %v783, 127
          %v796 = vpop.permute.xlu0 %795
          %797 = vrot.lane.b32.xlu0 %v785, 127
          %v798 = vpop.permute.xlu0 %797
          %v799 = vsel %vm317, %v788, %v790
          %v800 = vsel %vm317, %v792, %v794
          %v801 = vsel %vm317, %v796, %v798
          %v808 = vadd.f32 %v757, %v799
          %v809 = vadd.f32 %v758, %v790
          %v810 = vadd.f32 %v759, %v800
          %v811 = vadd.f32 %v760, %v794
          %v812 = vadd.f32 %v761, %v801
          %v813 = vadd.f32 %v762, %v798
          %s814 = sld [smem:[#allocation9 + $0x10]]
          %v815 = vstv %s814
          %v816 = vmul.f32 %v815, %v723
          %v817 = vmul.f32 %v815, %v724
          %v818 = vmul.f32 %v815, %v274
          %v819 = vmul.f32 %v815, %v275
          %v820 = vmul.f32 %v815, %v725
          %v821 = vmul.f32 %v815, %v726
          %v828 = vrot.slane %v816, 2
          %v829 = vrot.slane %v818, 2
          %v830 = vsel %vm740, %v828, %v829
          %v831 = vrot.slane %v817, 2
          %v832 = vrot.slane %v819, 2
          %v833 = vsel %vm740, %v831, %v832
          %v834 = vrot.slane %v820, 2
          %v835 = vsel %vm740, %v829, %v834
          %v836 = vrot.slane %v821, 2
          %v837 = vsel %vm740, %v832, %v836
          %838 = vrot.lane.b32.xlu0 %v830, 126
          %v839 = vpop.permute.xlu0 %838
          %840 = vrot.lane.b32.xlu0 %v833, 126
          %v841 = vpop.permute.xlu0 %840
          %842 = vrot.lane.b32.xlu0 %v835, 126
          %v843 = vpop.permute.xlu0 %842
          %844 = vrot.lane.b32.xlu0 %v837, 126
          %v845 = vpop.permute.xlu0 %844
          %846 = vrot.lane.b32.xlu0 %v834, 126
          %v847 = vpop.permute.xlu0 %846
          %848 = vrot.lane.b32.xlu0 %v836, 126
          %v849 = vpop.permute.xlu0 %848
          %v850 = vsel %vm359, %v839, %v841
          %v851 = vsel %vm359, %v843, %v845
          %v852 = vsel %vm359, %v847, %v849
          %v859 = vadd.f32 %v808, %v850
          %v860 = vadd.f32 %v809, %v841
          %v861 = vadd.f32 %v810, %v851
          %v862 = vadd.f32 %v811, %v845
          %v863 = vadd.f32 %v812, %v852
          %v864 = vadd.f32 %v813, %v849
          %s865 = sld [smem:[#allocation9 + $0x11]]
          %v866 = vstv %s865
          %v867 = vmul.f32 %v866, %v724
          %v868 = vmul.f32 %v866, %v275
          %v869 = vmul.f32 %v866, %v726
          %v873 = vrot.slane %v867, 2
          %v874 = vrot.slane %v868, 2
          %v875 = vsel %vm740, %v873, %v874
          %v876 = vrot.slane %v869, 2
          %v877 = vsel %vm740, %v874, %v876
          %878 = vrot.lane.b32.xlu0 %v875, 125
          %v879 = vpop.permute.xlu0 %878
          %880 = vrot.lane.b32.xlu0 %v877, 125
          %v881 = vpop.permute.xlu0 %880
          %882 = vrot.lane.b32.xlu0 %v876, 125
          %v883 = vpop.permute.xlu0 %882
          %v887 = vadd.f32 %v859, %v879
          %v888 = vadd.f32 %v860, %v879
          %v889 = vadd.f32 %v861, %v881
          %v890 = vadd.f32 %v862, %v881
          %v891 = vadd.f32 %v863, %v883
          %v892 = vadd.f32 %v864, %v883
          %s893 = sld [smem:[#allocation9 + $0x12]]
          %v894 = vstv %s893
          %v895 = vmul.f32 %v894, %v724
          %v896 = vmul.f32 %v894, %v275
          %v897 = vmul.f32 %v894, %v726
          %v901 = vrot.slane %v895, 2
          %v902 = vrot.slane %v896, 2
          %v903 = vsel %vm740, %v901, %v902
          %v904 = vrot.slane %v897, 2
          %v905 = vsel %vm740, %v902, %v904
          %906 = vrot.lane.b32.xlu0 %v903, 124
          %v907 = vpop.permute.xlu0 %906
          %908 = vrot.lane.b32.xlu0 %v905, 124
          %v909 = vpop.permute.xlu0 %908
          %910 = vrot.lane.b32.xlu0 %v904, 124
          %v911 = vpop.permute.xlu0 %910
          %v915 = vadd.f32 %v887, %v907
          %v916 = vadd.f32 %v888, %v907
          %v917 = vadd.f32 %v889, %v909
          %v918 = vadd.f32 %v890, %v909
          %v919 = vadd.f32 %v891, %v911
          %v920 = vadd.f32 %v892, %v911
          %s921 = sld [smem:[#allocation9 + $0x13]]
          %v922 = vstv %s921
          %v923 = vmul.f32 %v922, %v724
          %v924 = vmul.f32 %v922, %v275
          %v925 = vmul.f32 %v922, %v726
          %v929 = vrot.slane %v923, 2
          %v930 = vrot.slane %v924, 2
          %v931 = vsel %vm740, %v929, %v930
          %v932 = vrot.slane %v925, 2
          %v933 = vsel %vm740, %v930, %v932
          %934 = vrot.lane.b32.xlu0 %v931, 123
          %v935 = vpop.permute.xlu0 %934
          %936 = vrot.lane.b32.xlu0 %v933, 123
          %v937 = vpop.permute.xlu0 %936
          %938 = vrot.lane.b32.xlu0 %v932, 123
          %v939 = vpop.permute.xlu0 %938
          %v943 = vadd.f32 %v915, %v935
          %v944 = vadd.f32 %v916, %v935
          %v945 = vadd.f32 %v917, %v937
          %v946 = vadd.f32 %v918, %v937
          %v947 = vadd.f32 %v919, %v939
          %v948 = vadd.f32 %v920, %v939
          %s949 = sld [smem:[#allocation9 + $0x14]]
          %v950 = vstv %s949
          %v951 = vmul.f32 %v950, %v724
          %v952 = vmul.f32 %v950, %v275
          %v953 = vmul.f32 %v950, %v726
          %v957 = vrot.slane %v951, 2
          %v958 = vrot.slane %v952, 2
          %v959 = vsel %vm740, %v957, %v958
          %v960 = vrot.slane %v953, 2
          %v961 = vsel %vm740, %v958, %v960
          %962 = vrot.lane.b32.xlu0 %v959, 122
          %v963 = vpop.permute.xlu0 %962
          %964 = vrot.lane.b32.xlu0 %v961, 122
          %v965 = vpop.permute.xlu0 %964
          %966 = vrot.lane.b32.xlu0 %v960, 122
          %v967 = vpop.permute.xlu0 %966
          %v971 = vadd.f32 %v943, %v963
          %v972 = vadd.f32 %v944, %v963
          %v973 = vadd.f32 %v945, %v965
          %v974 = vadd.f32 %v946, %v965
          %v975 = vadd.f32 %v947, %v967
          %v976 = vadd.f32 %v948, %v967
          %s977 = sld [smem:[#allocation9 + $0x15]]
          %v978 = vld [vmem:[#allocation4 + $0x20] sm:$0xff]
          %v979 = vld [vmem:[#allocation4 + $0x28] sm:$0xff]
          %v980 = vstv %s977
          %v981 = vmul.f32 %v980, %v274
          %v982 = vmul.f32 %v980, %v275
          %v983 = vmul.f32 %v980, %v978
          %v984 = vmul.f32 %v980, %v979
          %vm989 = vcmask 1044480
          %v990 = vrot.slane %v981, 3
          %v991 = vrot.slane %v982, 3
          %v992 = vrot.slane %v983, 3
          %v993 = vsel %vm989, %v990, %v992
          %v994 = vrot.slane %v984, 3
          %v995 = vsel %vm989, %v991, %v994
          %v1002 = vadd.f32 %v971, %v990
          %v1003 = vadd.f32 %v972, %v991
          %v1004 = vadd.f32 %v973, %v993
          %v1005 = vadd.f32 %v974, %v995
          %v1006 = vadd.f32 %v975, %v992
          %v1007 = vadd.f32 %v976, %v994
          %s1008 = sld [smem:[#allocation9 + $0x16]]
          %v1009 = vstv %s1008
          %v1010 = vmul.f32 %v1009, %v274
          %v1011 = vmul.f32 %v1009, %v275
          %v1012 = vmul.f32 %v1009, %v978
          %v1013 = vmul.f32 %v1009, %v979
          %v1018 = vrot.slane %v1010, 3
          %v1019 = vrot.slane %v1011, 3
          %v1020 = vrot.slane %v1012, 3
          %v1021 = vsel %vm989, %v1018, %v1020
          %v1022 = vrot.slane %v1013, 3
          %v1023 = vsel %vm989, %v1019, %v1022
          %1024 = vrot.lane.b32.xlu0 %v1018, 127
          %v1025 = vpop.permute.xlu0 %1024
          %1026 = vrot.lane.b32.xlu0 %v1019, 127
          %v1027 = vpop.permute.xlu0 %1026
          %1028 = vrot.lane.b32.xlu0 %v1021, 127
          %v1029 = vpop.permute.xlu0 %1028
          %1030 = vrot.lane.b32.xlu0 %v1023, 127
          %v1031 = vpop.permute.xlu0 %1030
          %1032 = vrot.lane.b32.xlu0 %v1020, 127
          %v1033 = vpop.permute.xlu0 %1032
          %1034 = vrot.lane.b32.xlu0 %v1022, 127
          %v1035 = vpop.permute.xlu0 %1034
          %v1036 = vsel %vm317, %v1025, %v1027
          %v1037 = vsel %vm317, %v1029, %v1031
          %v1038 = vsel %vm317, %v1033, %v1035
          %v1045 = vadd.f32 %v1002, %v1036
          %v1046 = vadd.f32 %v1003, %v1027
          %v1047 = vadd.f32 %v1004, %v1037
          %v1048 = vadd.f32 %v1005, %v1031
          %v1049 = vadd.f32 %v1006, %v1038
          %v1050 = vadd.f32 %v1007, %v1035
          %s1051 = sld [smem:[#allocation9 + $0x17]]
          %v1052 = vstv %s1051
          %v1053 = vmul.f32 %v1052, %v274
          %v1054 = vmul.f32 %v1052, %v275
          %v1055 = vmul.f32 %v1052, %v978
          %v1056 = vmul.f32 %v1052, %v979
          %v1061 = vrot.slane %v1053, 3
          %v1062 = vrot.slane %v1054, 3
          %v1063 = vrot.slane %v1055, 3
          %v1064 = vsel %vm989, %v1061, %v1063
          %v1065 = vrot.slane %v1056, 3
          %v1066 = vsel %vm989, %v1062, %v1065
          %1067 = vrot.lane.b32.xlu0 %v1061, 126
          %v1068 = vpop.permute.xlu0 %1067
          %1069 = vrot.lane.b32.xlu0 %v1062, 126
          %v1070 = vpop.permute.xlu0 %1069
          %1071 = vrot.lane.b32.xlu0 %v1064, 126
          %v1072 = vpop.permute.xlu0 %1071
          %1073 = vrot.lane.b32.xlu0 %v1066, 126
          %v1074 = vpop.permute.xlu0 %1073
          %1075 = vrot.lane.b32.xlu0 %v1063, 126
          %v1076 = vpop.permute.xlu0 %1075
          %1077 = vrot.lane.b32.xlu0 %v1065, 126
          %v1078 = vpop.permute.xlu0 %1077
          %v1079 = vsel %vm359, %v1068, %v1070
          %v1080 = vsel %vm359, %v1072, %v1074
          %v1081 = vsel %vm359, %v1076, %v1078
          %v1088 = vadd.f32 %v1045, %v1079
          %v1089 = vadd.f32 %v1046, %v1070
          %v1090 = vadd.f32 %v1047, %v1080
          %v1091 = vadd.f32 %v1048, %v1074
          %v1092 = vadd.f32 %v1049, %v1081
          %v1093 = vadd.f32 %v1050, %v1078
          %s1094 = sld [smem:[#allocation9 + $0x18]]
          %v1095 = vstv %s1094
          %v1096 = vmul.f32 %v1095, %v275
          %v1097 = vmul.f32 %v1095, %v979
          %v1100 = vrot.slane %v1096, 3
          %v1101 = vrot.slane %v1097, 3
          %v1102 = vsel %vm989, %v1100, %v1101
          %1103 = vrot.lane.b32.xlu0 %v1100, 125
          %v1104 = vpop.permute.xlu0 %1103
          %1105 = vrot.lane.b32.xlu0 %v1102, 125
          %v1106 = vpop.permute.xlu0 %1105
          %1107 = vrot.lane.b32.xlu0 %v1101, 125
          %v1108 = vpop.permute.xlu0 %1107
          %v1112 = vadd.f32 %v1088, %v1104
          %v1113 = vadd.f32 %v1089, %v1104
          %v1114 = vadd.f32 %v1090, %v1106
          %v1115 = vadd.f32 %v1091, %v1106
          %v1116 = vadd.f32 %v1092, %v1108
          %v1117 = vadd.f32 %v1093, %v1108
          %s1118 = sld [smem:[#allocation9 + $0x19]]
          %v1119 = vstv %s1118
          %v1120 = vmul.f32 %v1119, %v275
          %v1121 = vmul.f32 %v1119, %v979
          %v1124 = vrot.slane %v1120, 3
          %v1125 = vrot.slane %v1121, 3
          %v1126 = vsel %vm989, %v1124, %v1125
          %1127 = vrot.lane.b32.xlu0 %v1124, 124
          %v1128 = vpop.permute.xlu0 %1127
          %1129 = vrot.lane.b32.xlu0 %v1126, 124
          %v1130 = vpop.permute.xlu0 %1129
          %1131 = vrot.lane.b32.xlu0 %v1125, 124
          %v1132 = vpop.permute.xlu0 %1131
          %v1136 = vadd.f32 %v1112, %v1128
          %v1137 = vadd.f32 %v1113, %v1128
          %v1138 = vadd.f32 %v1114, %v1130
          %v1139 = vadd.f32 %v1115, %v1130
          %v1140 = vadd.f32 %v1116, %v1132
          %v1141 = vadd.f32 %v1117, %v1132
          %s1142 = sld [smem:[#allocation9 + $0x1a]]
          %v1143 = vstv %s1142
          %v1144 = vmul.f32 %v1143, %v275
          %v1145 = vmul.f32 %v1143, %v979
          %v1148 = vrot.slane %v1144, 3
          %v1149 = vrot.slane %v1145, 3
          %v1150 = vsel %vm989, %v1148, %v1149
          %1151 = vrot.lane.b32.xlu0 %v1148, 123
          %v1152 = vpop.permute.xlu0 %1151
          %1153 = vrot.lane.b32.xlu0 %v1150, 123
          %v1154 = vpop.permute.xlu0 %1153
          %1155 = vrot.lane.b32.xlu0 %v1149, 123
          %v1156 = vpop.permute.xlu0 %1155
          %v1160 = vadd.f32 %v1136, %v1152
          %v1161 = vadd.f32 %v1137, %v1152
          %v1162 = vadd.f32 %v1138, %v1154
          %v1163 = vadd.f32 %v1139, %v1154
          %v1164 = vadd.f32 %v1140, %v1156
          %v1165 = vadd.f32 %v1141, %v1156
          %s1166 = sld [smem:[#allocation9 + $0x1b]]
          %v1167 = vstv %s1166
          %v1168 = vmul.f32 %v1167, %v275
          %v1169 = vmul.f32 %v1167, %v979
          %v1172 = vrot.slane %v1168, 3
          %v1173 = vrot.slane %v1169, 3
          %v1174 = vsel %vm989, %v1172, %v1173
          %1175 = vrot.lane.b32.xlu0 %v1172, 122
          %v1176 = vpop.permute.xlu0 %1175
          %1177 = vrot.lane.b32.xlu0 %v1174, 122
          %v1178 = vpop.permute.xlu0 %1177
          %1179 = vrot.lane.b32.xlu0 %v1173, 122
          %v1180 = vpop.permute.xlu0 %1179
          %v1184 = vadd.f32 %v1160, %v1176
          %v1185 = vadd.f32 %v1161, %v1176
          %v1186 = vadd.f32 %v1162, %v1178
          %v1187 = vadd.f32 %v1163, %v1178
          %v1188 = vadd.f32 %v1164, %v1180
          %v1189 = vadd.f32 %v1165, %v1180
          %s1190 = sld [smem:[#allocation9 + $0x1c]]
          %v1191 = vld [vmem:[#allocation4 + $0x10] sm:$0xfe]
          %v1192 = vld [vmem:[#allocation4 + $0x18] sm:$0xfe]
          %v1193 = vld [vmem:[#allocation4 + $0x20] sm:$0xff]
          %v1194 = vld [vmem:[#allocation4 + $0x28] sm:$0xff]
          %v1195 = vld [vmem:[#allocation4 + $0x30] sm:$0x1]
          %v1196 = vld [vmem:[#allocation4 + $0x38] sm:$0x1]
          %v1197 = vstv %s1190
          %v1198 = vmul.f32 %v1197, %v1191
          %v1199 = vmul.f32 %v1197, %v1192
          %v1200 = vmul.f32 %v1197, %v1193
          %v1201 = vmul.f32 %v1197, %v1194
          %v1202 = vmul.f32 %v1197, %v1195
          %v1203 = vmul.f32 %v1197, %v1196
          %vm1210 = vcmask 1043456
          %v1211 = vrot.slane %v1198, 4
          %v1212 = vrot.slane %v1199, 4
          %v1213 = vrot.slane %v1200, 4
          %v1214 = vsel %vm1210, %v1211, %v1213
          %v1215 = vrot.slane %v1201, 4
          %v1216 = vsel %vm1210, %v1212, %v1215
          %v1217 = vrot.slane %v1202, 4
          %v1218 = vsel %vm1210, %v1213, %v1217
          %v1219 = vrot.slane %v1203, 4
          %v1220 = vsel %vm1210, %v1215, %v1219
          %v1227 = vadd.f32 %v1184, %v1211
          %v1228 = vadd.f32 %v1185, %v1212
          %v1229 = vadd.f32 %v1186, %v1214
          %v1230 = vadd.f32 %v1187, %v1216
          %v1231 = vadd.f32 %v1188, %v1218
          %v1232 = vadd.f32 %v1189, %v1220
          %s1233 = sld [smem:[#allocation9 + $0x1d]]
          %v1234 = vstv %s1233
          %v1235 = vmul.f32 %v1234, %v1191
          %v1236 = vmul.f32 %v1234, %v1192
          %v1237 = vmul.f32 %v1234, %v1193
          %v1238 = vmul.f32 %v1234, %v1194
          %v1239 = vmul.f32 %v1234, %v1195
          %v1240 = vmul.f32 %v1234, %v1196
          %v1247 = vrot.slane %v1235, 4
          %v1248 = vrot.slane %v1236, 4
          %v1249 = vrot.slane %v1237, 4
          %v1250 = vsel %vm1210, %v1247, %v1249
          %v1251 = vrot.slane %v1238, 4
          %v1252 = vsel %vm1210, %v1248, %v1251
          %v1253 = vrot.slane %v1239, 4
          %v1254 = vsel %vm1210, %v1249, %v1253
          %v1255 = vrot.slane %v1240, 4
          %v1256 = vsel %vm1210, %v1251, %v1255
          %1257 = vrot.lane.b32.xlu0 %v1247, 127
          %v1258 = vpop.permute.xlu0 %1257
          %1259 = vrot.lane.b32.xlu0 %v1248, 127
          %v1260 = vpop.permute.xlu0 %1259
          %1261 = vrot.lane.b32.xlu0 %v1250, 127
          %v1262 = vpop.permute.xlu0 %1261
          %1263 = vrot.lane.b32.xlu0 %v1252, 127
          %v1264 = vpop.permute.xlu0 %1263
          %1265 = vrot.lane.b32.xlu0 %v1254, 127
          %v1266 = vpop.permute.xlu0 %1265
          %1267 = vrot.lane.b32.xlu0 %v1256, 127
          %v1268 = vpop.permute.xlu0 %1267
          %v1269 = vsel %vm317, %v1258, %v1260
          %v1270 = vsel %vm317, %v1262, %v1264
          %v1271 = vsel %vm317, %v1266, %v1268
          %v1278 = vadd.f32 %v1227, %v1269
          %v1279 = vadd.f32 %v1228, %v1260
          %v1280 = vadd.f32 %v1229, %v1270
          %v1281 = vadd.f32 %v1230, %v1264
          %v1282 = vadd.f32 %v1231, %v1271
          %v1283 = vadd.f32 %v1232, %v1268
          %s1284 = sld [smem:[#allocation9 + $0x1e]]
          %v1285 = vstv %s1284
          %v1286 = vmul.f32 %v1285, %v1191
          %v1287 = vmul.f32 %v1285, %v1192
          %v1288 = vmul.f32 %v1285, %v1193
          %v1289 = vmul.f32 %v1285, %v1194
          %v1290 = vmul.f32 %v1285, %v1195
          %v1291 = vmul.f32 %v1285, %v1196
          %v1298 = vrot.slane %v1286, 4
          %v1299 = vrot.slane %v1287, 4
          %v1300 = vrot.slane %v1288, 4
          %v1301 = vsel %vm1210, %v1298, %v1300
          %v1302 = vrot.slane %v1289, 4
          %v1303 = vsel %vm1210, %v1299, %v1302
          %v1304 = vrot.slane %v1290, 4
          %v1305 = vsel %vm1210, %v1300, %v1304
          %v1306 = vrot.slane %v1291, 4
          %v1307 = vsel %vm1210, %v1302, %v1306
          %1308 = vrot.lane.b32.xlu0 %v1298, 126
          %v1309 = vpop.permute.xlu0 %1308
          %1310 = vrot.lane.b32.xlu0 %v1299, 126
          %v1311 = vpop.permute.xlu0 %1310
          %1312 = vrot.lane.b32.xlu0 %v1301, 126
          %v1313 = vpop.permute.xlu0 %1312
          %1314 = vrot.lane.b32.xlu0 %v1303, 126
          %v1315 = vpop.permute.xlu0 %1314
          %1316 = vrot.lane.b32.xlu0 %v1305, 126
          %v1317 = vpop.permute.xlu0 %1316
          %1318 = vrot.lane.b32.xlu0 %v1307, 126
          %v1319 = vpop.permute.xlu0 %1318
          %v1320 = vsel %vm359, %v1309, %v1311
          %v1321 = vsel %vm359, %v1313, %v1315
          %v1322 = vsel %vm359, %v1317, %v1319
          %v1329 = vadd.f32 %v1278, %v1320
          %v1330 = vadd.f32 %v1279, %v1311
          %v1331 = vadd.f32 %v1280, %v1321
          %v1332 = vadd.f32 %v1281, %v1315
          %v1333 = vadd.f32 %v1282, %v1322
          %v1334 = vadd.f32 %v1283, %v1319
          %s1335 = sld [smem:[#allocation9 + $0x1f]]
          %v1336 = vstv %s1335
          %v1337 = vmul.f32 %v1336, %v1192
          %v1338 = vmul.f32 %v1336, %v1194
          %v1339 = vmul.f32 %v1336, %v1196
          %v1343 = vrot.slane %v1337, 4
          %v1344 = vrot.slane %v1338, 4
          %v1345 = vsel %vm1210, %v1343, %v1344
          %v1346 = vrot.slane %v1339, 4
          %v1347 = vsel %vm1210, %v1344, %v1346
          %1348 = vrot.lane.b32.xlu0 %v1343, 125
          %v1349 = vpop.permute.xlu0 %1348
          %1350 = vrot.lane.b32.xlu0 %v1345, 125
          %v1351 = vpop.permute.xlu0 %1350
          %1352 = vrot.lane.b32.xlu0 %v1347, 125
          %v1353 = vpop.permute.xlu0 %1352
          %v1357 = vadd.f32 %v1329, %v1349
          %v1358 = vadd.f32 %v1330, %v1349
          %v1359 = vadd.f32 %v1331, %v1351
          %v1360 = vadd.f32 %v1332, %v1351
          %v1361 = vadd.f32 %v1333, %v1353
          %v1362 = vadd.f32 %v1334, %v1353
          %s1363 = sld [smem:[#allocation9 + $0x20]]
          %v1364 = vstv %s1363
          %v1365 = vmul.f32 %v1364, %v1192
          %v1366 = vmul.f32 %v1364, %v1194
          %v1367 = vmul.f32 %v1364, %v1196
          %v1371 = vrot.slane %v1365, 4
          %v1372 = vrot.slane %v1366, 4
          %v1373 = vsel %vm1210, %v1371, %v1372
          %v1374 = vrot.slane %v1367, 4
          %v1375 = vsel %vm1210, %v1372, %v1374
          %1376 = vrot.lane.b32.xlu0 %v1371, 124
          %v1377 = vpop.permute.xlu0 %1376
          %1378 = vrot.lane.b32.xlu0 %v1373, 124
          %v1379 = vpop.permute.xlu0 %1378
          %1380 = vrot.lane.b32.xlu0 %v1375, 124
          %v1381 = vpop.permute.xlu0 %1380
          %v1385 = vadd.f32 %v1357, %v1377
          %v1386 = vadd.f32 %v1358, %v1377
          %v1387 = vadd.f32 %v1359, %v1379
          %v1388 = vadd.f32 %v1360, %v1379
          %v1389 = vadd.f32 %v1361, %v1381
          %v1390 = vadd.f32 %v1362, %v1381
          %s1391 = sld [smem:[#allocation9 + $0x21]]
          %v1392 = vstv %s1391
          %v1393 = vmul.f32 %v1392, %v1192
          %v1394 = vmul.f32 %v1392, %v1194
          %v1395 = vmul.f32 %v1392, %v1196
          %v1399 = vrot.slane %v1393, 4
          %v1400 = vrot.slane %v1394, 4
          %v1401 = vsel %vm1210, %v1399, %v1400
          %v1402 = vrot.slane %v1395, 4
          %v1403 = vsel %vm1210, %v1400, %v1402
          %1404 = vrot.lane.b32.xlu0 %v1399, 123
          %v1405 = vpop.permute.xlu0 %1404
          %1406 = vrot.lane.b32.xlu0 %v1401, 123
          %v1407 = vpop.permute.xlu0 %1406
          %1408 = vrot.lane.b32.xlu0 %v1403, 123
          %v1409 = vpop.permute.xlu0 %1408
          %v1413 = vadd.f32 %v1385, %v1405
          %v1414 = vadd.f32 %v1386, %v1405
          %v1415 = vadd.f32 %v1387, %v1407
          %v1416 = vadd.f32 %v1388, %v1407
          %v1417 = vadd.f32 %v1389, %v1409
          %v1418 = vadd.f32 %v1390, %v1409
          %s1419 = sld [smem:[#allocation9 + $0x22]]
          %v1420 = vstv %s1419
          %v1421 = vmul.f32 %v1420, %v1192
          %v1422 = vmul.f32 %v1420, %v1194
          %v1423 = vmul.f32 %v1420, %v1196
          %v1427 = vrot.slane %v1421, 4
          %v1428 = vrot.slane %v1422, 4
          %v1429 = vsel %vm1210, %v1427, %v1428
          %v1430 = vrot.slane %v1423, 4
          %v1431 = vsel %vm1210, %v1428, %v1430
          %1432 = vrot.lane.b32.xlu0 %v1427, 122
          %v1433 = vpop.permute.xlu0 %1432
          %1434 = vrot.lane.b32.xlu0 %v1429, 122
          %v1435 = vpop.permute.xlu0 %1434
          %1436 = vrot.lane.b32.xlu0 %v1431, 122
          %v1437 = vpop.permute.xlu0 %1436
          %v1441 = vadd.f32 %v1413, %v1433
          %v1442 = vadd.f32 %v1414, %v1433
          %v1443 = vadd.f32 %v1415, %v1435
          %v1444 = vadd.f32 %v1416, %v1435
          %v1445 = vadd.f32 %v1417, %v1437
          %v1446 = vadd.f32 %v1418, %v1437
          %s1447 = sld [smem:[#allocation9 + $0x23]]
          %v1448 = vld [vmem:[#allocation4 + $0x10] sm:$0xfc]
          %v1449 = vld [vmem:[#allocation4 + $0x18] sm:$0xfc]
          %v1450 = vld [vmem:[#allocation4 + $0x30] sm:$0x3]
          %v1451 = vld [vmem:[#allocation4 + $0x38] sm:$0x3]
          %v1452 = vstv %s1447
          %v1453 = vmul.f32 %v1452, %v1448
          %v1454 = vmul.f32 %v1452, %v1449
          %v1455 = vmul.f32 %v1452, %v1193
          %v1456 = vmul.f32 %v1452, %v1194
          %v1457 = vmul.f32 %v1452, %v1450
          %v1458 = vmul.f32 %v1452, %v1451
          %vm1465 = vcmask 1042432
          %v1466 = vrot.slane %v1453, 5
          %v1467 = vrot.slane %v1454, 5
          %v1468 = vrot.slane %v1455, 5
          %v1469 = vsel %vm1465, %v1466, %v1468
          %v1470 = vrot.slane %v1456, 5
          %v1471 = vsel %vm1465, %v1467, %v1470
          %v1472 = vrot.slane %v1457, 5
          %v1473 = vsel %vm1465, %v1468, %v1472
          %v1474 = vrot.slane %v1458, 5
          %v1475 = vsel %vm1465, %v1470, %v1474
          %v1482 = vadd.f32 %v1441, %v1466
          %v1483 = vadd.f32 %v1442, %v1467
          %v1484 = vadd.f32 %v1443, %v1469
          %v1485 = vadd.f32 %v1444, %v1471
          %v1486 = vadd.f32 %v1445, %v1473
          %v1487 = vadd.f32 %v1446, %v1475
          %s1488 = sld [smem:[#allocation9 + $0x24]]
          %v1489 = vstv %s1488
          %v1490 = vmul.f32 %v1489, %v1448
          %v1491 = vmul.f32 %v1489, %v1449
          %v1492 = vmul.f32 %v1489, %v1193
          %v1493 = vmul.f32 %v1489, %v1194
          %v1494 = vmul.f32 %v1489, %v1450
          %v1495 = vmul.f32 %v1489, %v1451
          %v1502 = vrot.slane %v1490, 5
          %v1503 = vrot.slane %v1491, 5
          %v1504 = vrot.slane %v1492, 5
          %v1505 = vsel %vm1465, %v1502, %v1504
          %v1506 = vrot.slane %v1493, 5
          %v1507 = vsel %vm1465, %v1503, %v1506
          %v1508 = vrot.slane %v1494, 5
          %v1509 = vsel %vm1465, %v1504, %v1508
          %v1510 = vrot.slane %v1495, 5
          %v1511 = vsel %vm1465, %v1506, %v1510
          %1512 = vrot.lane.b32.xlu0 %v1502, 127
          %v1513 = vpop.permute.xlu0 %1512
          %1514 = vrot.lane.b32.xlu0 %v1503, 127
          %v1515 = vpop.permute.xlu0 %1514
          %1516 = vrot.lane.b32.xlu0 %v1505, 127
          %v1517 = vpop.permute.xlu0 %1516
          %1518 = vrot.lane.b32.xlu0 %v1507, 127
          %v1519 = vpop.permute.xlu0 %1518
          %1520 = vrot.lane.b32.xlu0 %v1509, 127
          %v1521 = vpop.permute.xlu0 %1520
          %1522 = vrot.lane.b32.xlu0 %v1511, 127
          %v1523 = vpop.permute.xlu0 %1522
          %v1524 = vsel %vm317, %v1513, %v1515
          %v1525 = vsel %vm317, %v1517, %v1519
          %v1526 = vsel %vm317, %v1521, %v1523
          %v1533 = vadd.f32 %v1482, %v1524
          %v1534 = vadd.f32 %v1483, %v1515
          %v1535 = vadd.f32 %v1484, %v1525
          %v1536 = vadd.f32 %v1485, %v1519
          %v1537 = vadd.f32 %v1486, %v1526
          %v1538 = vadd.f32 %v1487, %v1523
          %s1539 = sld [smem:[#allocation9 + $0x25]]
          %v1540 = vstv %s1539
          %v1541 = vmul.f32 %v1540, %v1448
          %v1542 = vmul.f32 %v1540, %v1449
          %v1543 = vmul.f32 %v1540, %v1193
          %v1544 = vmul.f32 %v1540, %v1194
          %v1545 = vmul.f32 %v1540, %v1450
          %v1546 = vmul.f32 %v1540, %v1451
          %v1553 = vrot.slane %v1541, 5
          %v1554 = vrot.slane %v1542, 5
          %v1555 = vrot.slane %v1543, 5
          %v1556 = vsel %vm1465, %v1553, %v1555
          %v1557 = vrot.slane %v1544, 5
          %v1558 = vsel %vm1465, %v1554, %v1557
          %v1559 = vrot.slane %v1545, 5
          %v1560 = vsel %vm1465, %v1555, %v1559
          %v1561 = vrot.slane %v1546, 5
          %v1562 = vsel %vm1465, %v1557, %v1561
          %1563 = vrot.lane.b32.xlu0 %v1553, 126
          %v1564 = vpop.permute.xlu0 %1563
          %1565 = vrot.lane.b32.xlu0 %v1554, 126
          %v1566 = vpop.permute.xlu0 %1565
          %1567 = vrot.lane.b32.xlu0 %v1556, 126
          %v1568 = vpop.permute.xlu0 %1567
          %1569 = vrot.lane.b32.xlu0 %v1558, 126
          %v1570 = vpop.permute.xlu0 %1569
          %1571 = vrot.lane.b32.xlu0 %v1560, 126
          %v1572 = vpop.permute.xlu0 %1571
          %1573 = vrot.lane.b32.xlu0 %v1562, 126
          %v1574 = vpop.permute.xlu0 %1573
          %v1575 = vsel %vm359, %v1564, %v1566
          %v1576 = vsel %vm359, %v1568, %v1570
          %v1577 = vsel %vm359, %v1572, %v1574
          %v1584 = vadd.f32 %v1533, %v1575
          %v1585 = vadd.f32 %v1534, %v1566
          %v1586 = vadd.f32 %v1535, %v1576
          %v1587 = vadd.f32 %v1536, %v1570
          %v1588 = vadd.f32 %v1537, %v1577
          %v1589 = vadd.f32 %v1538, %v1574
          %s1590 = sld [smem:[#allocation9 + $0x26]]
          %v1591 = vstv %s1590
          %v1592 = vmul.f32 %v1591, %v1449
          %v1593 = vmul.f32 %v1591, %v1194
          %v1594 = vmul.f32 %v1591, %v1451
          %v1598 = vrot.slane %v1592, 5
          %v1599 = vrot.slane %v1593, 5
          %v1600 = vsel %vm1465, %v1598, %v1599
          %v1601 = vrot.slane %v1594, 5
          %v1602 = vsel %vm1465, %v1599, %v1601
          %1603 = vrot.lane.b32.xlu0 %v1598, 125
          %v1604 = vpop.permute.xlu0 %1603
          %1605 = vrot.lane.b32.xlu0 %v1600, 125
          %v1606 = vpop.permute.xlu0 %1605
          %1607 = vrot.lane.b32.xlu0 %v1602, 125
          %v1608 = vpop.permute.xlu0 %1607
          %v1612 = vadd.f32 %v1584, %v1604
          %v1613 = vadd.f32 %v1585, %v1604
          %v1614 = vadd.f32 %v1586, %v1606
          %v1615 = vadd.f32 %v1587, %v1606
          %v1616 = vadd.f32 %v1588, %v1608
          %v1617 = vadd.f32 %v1589, %v1608
          %s1618 = sld [smem:[#allocation9 + $0x27]]
          %v1619 = vstv %s1618
          %v1620 = vmul.f32 %v1619, %v1449
          %v1621 = vmul.f32 %v1619, %v1194
          %v1622 = vmul.f32 %v1619, %v1451
          %v1626 = vrot.slane %v1620, 5
          %v1627 = vrot.slane %v1621, 5
          %v1628 = vsel %vm1465, %v1626, %v1627
          %v1629 = vrot.slane %v1622, 5
          %v1630 = vsel %vm1465, %v1627, %v1629
          %1631 = vrot.lane.b32.xlu0 %v1626, 124
          %v1632 = vpop.permute.xlu0 %1631
          %1633 = vrot.lane.b32.xlu0 %v1628, 124
          %v1634 = vpop.permute.xlu0 %1633
          %1635 = vrot.lane.b32.xlu0 %v1630, 124
          %v1636 = vpop.permute.xlu0 %1635
          %v1640 = vadd.f32 %v1612, %v1632
          %v1641 = vadd.f32 %v1613, %v1632
          %v1642 = vadd.f32 %v1614, %v1634
          %v1643 = vadd.f32 %v1615, %v1634
          %v1644 = vadd.f32 %v1616, %v1636
          %v1645 = vadd.f32 %v1617, %v1636
          %s1646 = sld [smem:[#allocation9 + $0x28]]
          %v1647 = vstv %s1646
          %v1648 = vmul.f32 %v1647, %v1449
          %v1649 = vmul.f32 %v1647, %v1194
          %v1650 = vmul.f32 %v1647, %v1451
          %v1654 = vrot.slane %v1648, 5
          %v1655 = vrot.slane %v1649, 5
          %v1656 = vsel %vm1465, %v1654, %v1655
          %v1657 = vrot.slane %v1650, 5
          %v1658 = vsel %vm1465, %v1655, %v1657
          %1659 = vrot.lane.b32.xlu0 %v1654, 123
          %v1660 = vpop.permute.xlu0 %1659
          %1661 = vrot.lane.b32.xlu0 %v1656, 123
          %v1662 = vpop.permute.xlu0 %1661
          %1663 = vrot.lane.b32.xlu0 %v1658, 123
          %v1664 = vpop.permute.xlu0 %1663
          %v1668 = vadd.f32 %v1640, %v1660
          %v1669 = vadd.f32 %v1641, %v1660
          %v1670 = vadd.f32 %v1642, %v1662
          %v1671 = vadd.f32 %v1643, %v1662
          %v1672 = vadd.f32 %v1644, %v1664
          %v1673 = vadd.f32 %v1645, %v1664
          %s1674 = sld [smem:[#allocation9 + $0x29]]
          %v1675 = vstv %s1674
          %v1676 = vmul.f32 %v1675, %v1449
          %v1677 = vmul.f32 %v1675, %v1194
          %v1678 = vmul.f32 %v1675, %v1451
          %v1682 = vrot.slane %v1676, 5
          %v1683 = vrot.slane %v1677, 5
          %v1684 = vsel %vm1465, %v1682, %v1683
          %v1685 = vrot.slane %v1678, 5
          %v1686 = vsel %vm1465, %v1683, %v1685
          %1687 = vrot.lane.b32.xlu0 %v1682, 122
          %v1688 = vpop.permute.xlu0 %1687
          %1689 = vrot.lane.b32.xlu0 %v1684, 122
          %v1690 = vpop.permute.xlu0 %1689
          %1691 = vrot.lane.b32.xlu0 %v1686, 122
          %v1692 = vpop.permute.xlu0 %1691
          %v1696 = vadd.f32 %v1668, %v1688
          %v1697 = vadd.f32 %v1669, %v1688
          %v1698 = vadd.f32 %v1670, %v1690
          %v1699 = vadd.f32 %v1671, %v1690
          %v1700 = vadd.f32 %v1672, %v1692
          %v1701 = vadd.f32 %v1673, %v1692
          %s1702 = sld [smem:[#allocation9 + $0x2a]]
          %v1703 = vld [vmem:[#allocation4 + $0x10] sm:$0xf8]
          %v1704 = vld [vmem:[#allocation4 + $0x18] sm:$0xf8]
          %v1705 = vld [vmem:[#allocation4 + $0x30] sm:$0x7]
          %v1706 = vld [vmem:[#allocation4 + $0x38] sm:$0x7]
          %v1707 = vstv %s1702
          %v1708 = vmul.f32 %v1707, %v1703
          %v1709 = vmul.f32 %v1707, %v1704
          %v1710 = vmul.f32 %v1707, %v1193
          %v1711 = vmul.f32 %v1707, %v1194
          %v1712 = vmul.f32 %v1707, %v1705
          %v1713 = vmul.f32 %v1707, %v1706
          %vm1720 = vcmask 1041408
          %v1721 = vrot.slane %v1708, 6
          %v1722 = vrot.slane %v1709, 6
          %v1723 = vrot.slane %v1710, 6
          %v1724 = vsel %vm1720, %v1721, %v1723
          %v1725 = vrot.slane %v1711, 6
          %v1726 = vsel %vm1720, %v1722, %v1725
          %v1727 = vrot.slane %v1712, 6
          %v1728 = vsel %vm1720, %v1723, %v1727
          %v1729 = vrot.slane %v1713, 6
          %v1730 = vsel %vm1720, %v1725, %v1729
          %v1737 = vadd.f32 %v1696, %v1721
          %v1738 = vadd.f32 %v1697, %v1722
          %v1739 = vadd.f32 %v1698, %v1724
          %v1740 = vadd.f32 %v1699, %v1726
          %v1741 = vadd.f32 %v1700, %v1728
          %v1742 = vadd.f32 %v1701, %v1730
          %s1743 = sld [smem:[#allocation9 + $0x2b]]
          %v1744 = vstv %s1743
          %v1745 = vmul.f32 %v1744, %v1703
          %v1746 = vmul.f32 %v1744, %v1704
          %v1747 = vmul.f32 %v1744, %v1193
          %v1748 = vmul.f32 %v1744, %v1194
          %v1749 = vmul.f32 %v1744, %v1705
          %v1750 = vmul.f32 %v1744, %v1706
          %v1757 = vrot.slane %v1745, 6
          %v1758 = vrot.slane %v1746, 6
          %v1759 = vrot.slane %v1747, 6
          %v1760 = vsel %vm1720, %v1757, %v1759
          %v1761 = vrot.slane %v1748, 6
          %v1762 = vsel %vm1720, %v1758, %v1761
          %v1763 = vrot.slane %v1749, 6
          %v1764 = vsel %vm1720, %v1759, %v1763
          %v1765 = vrot.slane %v1750, 6
          %v1766 = vsel %vm1720, %v1761, %v1765
          %1767 = vrot.lane.b32.xlu0 %v1757, 127
          %v1768 = vpop.permute.xlu0 %1767
          %1769 = vrot.lane.b32.xlu0 %v1758, 127
          %v1770 = vpop.permute.xlu0 %1769
          %1771 = vrot.lane.b32.xlu0 %v1760, 127
          %v1772 = vpop.permute.xlu0 %1771
          %1773 = vrot.lane.b32.xlu0 %v1762, 127
          %v1774 = vpop.permute.xlu0 %1773
          %1775 = vrot.lane.b32.xlu0 %v1764, 127
          %v1776 = vpop.permute.xlu0 %1775
          %1777 = vrot.lane.b32.xlu0 %v1766, 127
          %v1778 = vpop.permute.xlu0 %1777
          %v1779 = vsel %vm317, %v1768, %v1770
          %v1780 = vsel %vm317, %v1772, %v1774
          %v1781 = vsel %vm317, %v1776, %v1778
          %v1788 = vadd.f32 %v1737, %v1779
          %v1789 = vadd.f32 %v1738, %v1770
          %v1790 = vadd.f32 %v1739, %v1780
          %v1791 = vadd.f32 %v1740, %v1774
          %v1792 = vadd.f32 %v1741, %v1781
          %v1793 = vadd.f32 %v1742, %v1778
          %s1794 = sld [smem:[#allocation9 + $0x2c]]
          %v1795 = vstv %s1794
          %v1796 = vmul.f32 %v1795, %v1703
          %v1797 = vmul.f32 %v1795, %v1704
          %v1798 = vmul.f32 %v1795, %v1193
          %v1799 = vmul.f32 %v1795, %v1194
          %v1800 = vmul.f32 %v1795, %v1705
          %v1801 = vmul.f32 %v1795, %v1706
          %v1808 = vrot.slane %v1796, 6
          %v1809 = vrot.slane %v1797, 6
          %v1810 = vrot.slane %v1798, 6
          %v1811 = vsel %vm1720, %v1808, %v1810
          %v1812 = vrot.slane %v1799, 6
          %v1813 = vsel %vm1720, %v1809, %v1812
          %v1814 = vrot.slane %v1800, 6
          %v1815 = vsel %vm1720, %v1810, %v1814
          %v1816 = vrot.slane %v1801, 6
          %v1817 = vsel %vm1720, %v1812, %v1816
          %1818 = vrot.lane.b32.xlu0 %v1808, 126
          %v1819 = vpop.permute.xlu0 %1818
          %1820 = vrot.lane.b32.xlu0 %v1809, 126
          %v1821 = vpop.permute.xlu0 %1820
          %1822 = vrot.lane.b32.xlu0 %v1811, 126
          %v1823 = vpop.permute.xlu0 %1822
          %1824 = vrot.lane.b32.xlu0 %v1813, 126
          %v1825 = vpop.permute.xlu0 %1824
          %1826 = vrot.lane.b32.xlu0 %v1815, 126
          %v1827 = vpop.permute.xlu0 %1826
          %1828 = vrot.lane.b32.xlu0 %v1817, 126
          %v1829 = vpop.permute.xlu0 %1828
          %v1830 = vsel %vm359, %v1819, %v1821
          %v1831 = vsel %vm359, %v1823, %v1825
          %v1832 = vsel %vm359, %v1827, %v1829
          %v1839 = vadd.f32 %v1788, %v1830
          %v1840 = vadd.f32 %v1789, %v1821
          %v1841 = vadd.f32 %v1790, %v1831
          %v1842 = vadd.f32 %v1791, %v1825
          %v1843 = vadd.f32 %v1792, %v1832
          %v1844 = vadd.f32 %v1793, %v1829
          %s1845 = sld [smem:[#allocation9 + $0x2d]]
          %v1846 = vstv %s1845
          %v1847 = vmul.f32 %v1846, %v1704
          %v1848 = vmul.f32 %v1846, %v1194
          %v1849 = vmul.f32 %v1846, %v1706
          %v1853 = vrot.slane %v1847, 6
          %v1854 = vrot.slane %v1848, 6
          %v1855 = vsel %vm1720, %v1853, %v1854
          %v1856 = vrot.slane %v1849, 6
          %v1857 = vsel %vm1720, %v1854, %v1856
          %1858 = vrot.lane.b32.xlu0 %v1853, 125
          %v1859 = vpop.permute.xlu0 %1858
          %1860 = vrot.lane.b32.xlu0 %v1855, 125
          %v1861 = vpop.permute.xlu0 %1860
          %1862 = vrot.lane.b32.xlu0 %v1857, 125
          %v1863 = vpop.permute.xlu0 %1862
          %v1867 = vadd.f32 %v1839, %v1859
          %v1868 = vadd.f32 %v1840, %v1859
          %v1869 = vadd.f32 %v1841, %v1861
          %v1870 = vadd.f32 %v1842, %v1861
          %v1871 = vadd.f32 %v1843, %v1863
          %v1872 = vadd.f32 %v1844, %v1863
          %s1873 = sld [smem:[#allocation9 + $0x2e]]
          %v1874 = vstv %s1873
          %v1875 = vmul.f32 %v1874, %v1704
          %v1876 = vmul.f32 %v1874, %v1194
          %v1877 = vmul.f32 %v1874, %v1706
          %v1881 = vrot.slane %v1875, 6
          %v1882 = vrot.slane %v1876, 6
          %v1883 = vsel %vm1720, %v1881, %v1882
          %v1884 = vrot.slane %v1877, 6
          %v1885 = vsel %vm1720, %v1882, %v1884
          %1886 = vrot.lane.b32.xlu0 %v1881, 124
          %v1887 = vpop.permute.xlu0 %1886
          %1888 = vrot.lane.b32.xlu0 %v1883, 124
          %v1889 = vpop.permute.xlu0 %1888
          %1890 = vrot.lane.b32.xlu0 %v1885, 124
          %v1891 = vpop.permute.xlu0 %1890
          %v1895 = vadd.f32 %v1867, %v1887
          %v1896 = vadd.f32 %v1868, %v1887
          %v1897 = vadd.f32 %v1869, %v1889
          %v1898 = vadd.f32 %v1870, %v1889
          %v1899 = vadd.f32 %v1871, %v1891
          %v1900 = vadd.f32 %v1872, %v1891
          %s1901 = sld [smem:[#allocation9 + $0x2f]]
          %v1902 = vstv %s1901
          %v1903 = vmul.f32 %v1902, %v1704
          %v1904 = vmul.f32 %v1902, %v1194
          %v1905 = vmul.f32 %v1902, %v1706
          %v1909 = vrot.slane %v1903, 6
          %v1910 = vrot.slane %v1904, 6
          %v1911 = vsel %vm1720, %v1909, %v1910
          %v1912 = vrot.slane %v1905, 6
          %v1913 = vsel %vm1720, %v1910, %v1912
          %1914 = vrot.lane.b32.xlu0 %v1909, 123
          %v1915 = vpop.permute.xlu0 %1914
          %1916 = vrot.lane.b32.xlu0 %v1911, 123
          %v1917 = vpop.permute.xlu0 %1916
          %1918 = vrot.lane.b32.xlu0 %v1913, 123
          %v1919 = vpop.permute.xlu0 %1918
          %v1923 = vadd.f32 %v1895, %v1915
          %v1924 = vadd.f32 %v1896, %v1915
          %v1925 = vadd.f32 %v1897, %v1917
          %v1926 = vadd.f32 %v1898, %v1917
          %v1927 = vadd.f32 %v1899, %v1919
          %v1928 = vadd.f32 %v1900, %v1919
          %s1929 = sld [smem:[#allocation9 + $0x30]]
          %v1930 = vstv %s1929
          %v1931 = vmul.f32 %v1930, %v1704
          %v1932 = vmul.f32 %v1930, %v1194
          %v1933 = vmul.f32 %v1930, %v1706
          %v1937 = vrot.slane %v1931, 6
          %v1938 = vrot.slane %v1932, 6
          %v1939 = vsel %vm1720, %v1937, %v1938
          %v1940 = vrot.slane %v1933, 6
          %v1941 = vsel %vm1720, %v1938, %v1940
          %1942 = vrot.lane.b32.xlu0 %v1937, 122
          %v1943 = vpop.permute.xlu0 %1942
          %1944 = vrot.lane.b32.xlu0 %v1939, 122
          %v1945 = vpop.permute.xlu0 %1944
          %1946 = vrot.lane.b32.xlu0 %v1941, 122
          %v1947 = vpop.permute.xlu0 %1946
          %v1951 = vadd.f32 %v1923, %v1943
          %v1952 = vadd.f32 %v1924, %v1943
          %v1953 = vadd.f32 %v1925, %v1945
          %v1954 = vadd.f32 %v1926, %v1945
          %v1955 = vadd.f32 %v1927, %v1947
          %v1956 = vadd.f32 %v1928, %v1947
          %s1957 = sld [smem:[#allocation9 + $0x31]]
          %v1958 = vld [vmem:[%s268] sm:$0xe0]
          %v1959 = vld [vmem:[%s268 + $0x8] sm:$0xe0]
          %v1960 = vld [vmem:[%s268 + $0x10] sm:$0xff]
          %v1961 = vld [vmem:[%s268 + $0x18] sm:$0xff]
          %v1962 = vld [vmem:[%s268 + $0x20] sm:$0x1f]
          %v1963 = vld [vmem:[%s268 + $0x28] sm:$0x1f]
          %v1964 = vstv %s1957
          %v1965 = vmul.f32 %v1964, %v1958
          %v1966 = vmul.f32 %v1964, %v1959
          %v1967 = vmul.f32 %v1964, %v1960
          %v1968 = vmul.f32 %v1964, %v1961
          %v1969 = vmul.f32 %v1964, %v1962
          %v1970 = vmul.f32 %v1964, %v1963
          %v1971 = vadd.f32 %v1951, %v1965
          %v1972 = vadd.f32 %v1952, %v1966
          %v1973 = vadd.f32 %v1953, %v1967
          %v1974 = vadd.f32 %v1954, %v1968
          %v1975 = vadd.f32 %v1955, %v1969
          %v1976 = vadd.f32 %v1956, %v1970
          %s1977 = sld [smem:[#allocation9 + $0x32]]
          %v1978 = vstv %s1977
          %v1979 = vmul.f32 %v1978, %v1958
          %v1980 = vmul.f32 %v1978, %v1959
          %v1981 = vmul.f32 %v1978, %v1960
          %v1982 = vmul.f32 %v1978, %v1961
          %v1983 = vmul.f32 %v1978, %v1962
          %v1984 = vmul.f32 %v1978, %v1963
          %1991 = vrot.lane.b32.xlu0 %v1979, 127
          %v1992 = vpop.permute.xlu0 %1991
          %1993 = vrot.lane.b32.xlu0 %v1980, 127
          %v1994 = vpop.permute.xlu0 %1993
          %1995 = vrot.lane.b32.xlu0 %v1981, 127
          %v1996 = vpop.permute.xlu0 %1995
          %1997 = vrot.lane.b32.xlu0 %v1982, 127
          %v1998 = vpop.permute.xlu0 %1997
          %1999 = vrot.lane.b32.xlu0 %v1983, 127
          %v2000 = vpop.permute.xlu0 %1999
          %2001 = vrot.lane.b32.xlu0 %v1984, 127
          %v2002 = vpop.permute.xlu0 %2001
          %v2003 = vsel %vm317, %v1992, %v1994
          %v2004 = vsel %vm317, %v1996, %v1998
          %v2005 = vsel %vm317, %v2000, %v2002
          %v2012 = vadd.f32 %v1971, %v2003
          %v2013 = vadd.f32 %v1972, %v1994
          %v2014 = vadd.f32 %v1973, %v2004
          %v2015 = vadd.f32 %v1974, %v1998
          %v2016 = vadd.f32 %v1975, %v2005
          %v2017 = vadd.f32 %v1976, %v2002
          %s2018 = sld [smem:[#allocation9 + $0x33]]
          %v2019 = vstv %s2018
          %v2020 = vmul.f32 %v2019, %v1958
          %v2021 = vmul.f32 %v2019, %v1959
          %v2022 = vmul.f32 %v2019, %v1960
          %v2023 = vmul.f32 %v2019, %v1961
          %v2024 = vmul.f32 %v2019, %v1962
          %v2025 = vmul.f32 %v2019, %v1963
          %2032 = vrot.lane.b32.xlu0 %v2020, 126
          %v2033 = vpop.permute.xlu0 %2032
          %2034 = vrot.lane.b32.xlu0 %v2021, 126
          %v2035 = vpop.permute.xlu0 %2034
          %2036 = vrot.lane.b32.xlu0 %v2022, 126
          %v2037 = vpop.permute.xlu0 %2036
          %2038 = vrot.lane.b32.xlu0 %v2023, 126
          %v2039 = vpop.permute.xlu0 %2038
          %2040 = vrot.lane.b32.xlu0 %v2024, 126
          %v2041 = vpop.permute.xlu0 %2040
          %2042 = vrot.lane.b32.xlu0 %v2025, 126
          %v2043 = vpop.permute.xlu0 %2042
          %v2044 = vsel %vm359, %v2033, %v2035
          %v2045 = vsel %vm359, %v2037, %v2039
          %v2046 = vsel %vm359, %v2041, %v2043
          %v2053 = vadd.f32 %v2012, %v2044
          %v2054 = vadd.f32 %v2013, %v2035
          %v2055 = vadd.f32 %v2014, %v2045
          %v2056 = vadd.f32 %v2015, %v2039
          %v2057 = vadd.f32 %v2016, %v2046
          %v2058 = vadd.f32 %v2017, %v2043
          %s2059 = sld [smem:[#allocation9 + $0x34]]
          %v2060 = vstv %s2059
          %v2061 = vmul.f32 %v2060, %v1959
          %v2062 = vmul.f32 %v2060, %v1961
          %v2063 = vmul.f32 %v2060, %v1963
          %2067 = vrot.lane.b32.xlu0 %v2061, 125
          %v2068 = vpop.permute.xlu0 %2067
          %2069 = vrot.lane.b32.xlu0 %v2062, 125
          %v2070 = vpop.permute.xlu0 %2069
          %2071 = vrot.lane.b32.xlu0 %v2063, 125
          %v2072 = vpop.permute.xlu0 %2071
          %v2076 = vadd.f32 %v2053, %v2068
          %v2077 = vadd.f32 %v2054, %v2068
          %v2078 = vadd.f32 %v2055, %v2070
          %v2079 = vadd.f32 %v2056, %v2070
          %v2080 = vadd.f32 %v2057, %v2072
          %v2081 = vadd.f32 %v2058, %v2072
          %s2082 = sld [smem:[#allocation9 + $0x35]]
          %v2083 = vstv %s2082
          %v2084 = vmul.f32 %v2083, %v1959
          %v2085 = vmul.f32 %v2083, %v1961
          %v2086 = vmul.f32 %v2083, %v1963
          %2090 = vrot.lane.b32.xlu0 %v2084, 124
          %v2091 = vpop.permute.xlu0 %2090
          %2092 = vrot.lane.b32.xlu0 %v2085, 124
          %v2093 = vpop.permute.xlu0 %2092
          %2094 = vrot.lane.b32.xlu0 %v2086, 124
          %v2095 = vpop.permute.xlu0 %2094
          %v2099 = vadd.f32 %v2076, %v2091
          %v2100 = vadd.f32 %v2077, %v2091
          %v2101 = vadd.f32 %v2078, %v2093
          %v2102 = vadd.f32 %v2079, %v2093
          %v2103 = vadd.f32 %v2080, %v2095
          %v2104 = vadd.f32 %v2081, %v2095
          %s2105 = sld [smem:[#allocation9 + $0x36]]
          %v2106 = vstv %s2105
          %v2107 = vmul.f32 %v2106, %v1959
          %v2108 = vmul.f32 %v2106, %v1961
          %v2109 = vmul.f32 %v2106, %v1963
          %2113 = vrot.lane.b32.xlu0 %v2107, 123
          %v2114 = vpop.permute.xlu0 %2113
          %2115 = vrot.lane.b32.xlu0 %v2108, 123
          %v2116 = vpop.permute.xlu0 %2115
          %2117 = vrot.lane.b32.xlu0 %v2109, 123
          %v2118 = vpop.permute.xlu0 %2117
          %v2122 = vadd.f32 %v2099, %v2114
          %v2123 = vadd.f32 %v2100, %v2114
          %v2124 = vadd.f32 %v2101, %v2116
          %v2125 = vadd.f32 %v2102, %v2116
          %v2126 = vadd.f32 %v2103, %v2118
          %v2127 = vadd.f32 %v2104, %v2118
          %s2128 = sld [smem:[#allocation9 + $0x37]]
          %v2129 = vstv %s2128
          %v2130 = vmul.f32 %v2129, %v1959
          %v2131 = vmul.f32 %v2129, %v1961
          %v2132 = vmul.f32 %v2129, %v1963
          %2136 = vrot.lane.b32.xlu0 %v2130, 122
          %v2137 = vpop.permute.xlu0 %2136
          %2138 = vrot.lane.b32.xlu0 %v2131, 122
          %v2139 = vpop.permute.xlu0 %2138
          %2140 = vrot.lane.b32.xlu0 %v2132, 122
          %v2141 = vpop.permute.xlu0 %2140
          %v2145 = vadd.f32 %v2122, %v2137
          %v2146 = vadd.f32 %v2123, %v2137
          %v2147 = vadd.f32 %v2124, %v2139
          %v2148 = vadd.f32 %v2125, %v2139
          %v2149 = vadd.f32 %v2126, %v2141
          %v2150 = vadd.f32 %v2127, %v2141
          %s2151 = sld [smem:[#allocation9 + $0x38]]
          %v2152 = vld [vmem:[%s268] sm:$0xc0]
          %v2153 = vld [vmem:[%s268 + $0x8] sm:$0xc0]
          %v2154 = vld [vmem:[%s268 + $0x20] sm:$0x3f]
          %v2155 = vld [vmem:[%s268 + $0x28] sm:$0x3f]
          %v2156 = vstv %s2151
          %v2157 = vmul.f32 %v2156, %v2152
          %v2158 = vmul.f32 %v2156, %v2153
          %v2159 = vmul.f32 %v2156, %v1960
          %v2160 = vmul.f32 %v2156, %v1961
          %v2161 = vmul.f32 %v2156, %v2154
          %v2162 = vmul.f32 %v2156, %v2155
          %v2169 = vrot.slane %v2157, 1
          %v2170 = vrot.slane %v2159, 1
          %v2171 = vsel %vm485, %v2169, %v2170
          %v2172 = vrot.slane %v2158, 1
          %v2173 = vrot.slane %v2160, 1
          %v2174 = vsel %vm485, %v2172, %v2173
          %v2175 = vrot.slane %v2161, 1
          %v2176 = vsel %vm485, %v2170, %v2175
          %v2177 = vrot.slane %v2162, 1
          %v2178 = vsel %vm485, %v2173, %v2177
          %v2185 = vadd.f32 %v2145, %v2171
          %v2186 = vadd.f32 %v2146, %v2174
          %v2187 = vadd.f32 %v2147, %v2176
          %v2188 = vadd.f32 %v2148, %v2178
          %v2189 = vadd.f32 %v2149, %v2175
          %v2190 = vadd.f32 %v2150, %v2177
          %s2191 = sld [smem:[#allocation9 + $0x39]]
          %v2192 = vstv %s2191
          %v2193 = vmul.f32 %v2192, %v2152
          %v2194 = vmul.f32 %v2192, %v2153
          %v2195 = vmul.f32 %v2192, %v1960
          %v2196 = vmul.f32 %v2192, %v1961
          %v2197 = vmul.f32 %v2192, %v2154
          %v2198 = vmul.f32 %v2192, %v2155
          %v2205 = vrot.slane %v2193, 1
          %v2206 = vrot.slane %v2195, 1
          %v2207 = vsel %vm485, %v2205, %v2206
          %v2208 = vrot.slane %v2194, 1
          %v2209 = vrot.slane %v2196, 1
          %v2210 = vsel %vm485, %v2208, %v2209
          %v2211 = vrot.slane %v2197, 1
          %v2212 = vsel %vm485, %v2206, %v2211
          %v2213 = vrot.slane %v2198, 1
          %v2214 = vsel %vm485, %v2209, %v2213
          %2215 = vrot.lane.b32.xlu0 %v2207, 127
          %v2216 = vpop.permute.xlu0 %2215
          %2217 = vrot.lane.b32.xlu0 %v2210, 127
          %v2218 = vpop.permute.xlu0 %2217
          %2219 = vrot.lane.b32.xlu0 %v2212, 127
          %v2220 = vpop.permute.xlu0 %2219
          %2221 = vrot.lane.b32.xlu0 %v2214, 127
          %v2222 = vpop.permute.xlu0 %2221
          %2223 = vrot.lane.b32.xlu0 %v2211, 127
          %v2224 = vpop.permute.xlu0 %2223
          %2225 = vrot.lane.b32.xlu0 %v2213, 127
          %v2226 = vpop.permute.xlu0 %2225
          %v2227 = vsel %vm317, %v2216, %v2218
          %v2228 = vsel %vm317, %v2220, %v2222
          %v2229 = vsel %vm317, %v2224, %v2226
          %v2236 = vadd.f32 %v2185, %v2227
          %v2237 = vadd.f32 %v2186, %v2218
          %v2238 = vadd.f32 %v2187, %v2228
          %v2239 = vadd.f32 %v2188, %v2222
          %v2240 = vadd.f32 %v2189, %v2229
          %v2241 = vadd.f32 %v2190, %v2226
          %s2242 = sld [smem:[#allocation9 + $0x3a]]
          %v2243 = vstv %s2242
          %v2244 = vmul.f32 %v2243, %v2152
          %v2245 = vmul.f32 %v2243, %v2153
          %v2246 = vmul.f32 %v2243, %v1960
          %v2247 = vmul.f32 %v2243, %v1961
          %v2248 = vmul.f32 %v2243, %v2154
          %v2249 = vmul.f32 %v2243, %v2155
          %v2256 = vrot.slane %v2244, 1
          %v2257 = vrot.slane %v2246, 1
          %v2258 = vsel %vm485, %v2256, %v2257
          %v2259 = vrot.slane %v2245, 1
          %v2260 = vrot.slane %v2247, 1
          %v2261 = vsel %vm485, %v2259, %v2260
          %v2262 = vrot.slane %v2248, 1
          %v2263 = vsel %vm485, %v2257, %v2262
          %v2264 = vrot.slane %v2249, 1
          %v2265 = vsel %vm485, %v2260, %v2264
          %2266 = vrot.lane.b32.xlu0 %v2258, 126
          %v2267 = vpop.permute.xlu0 %2266
          %2268 = vrot.lane.b32.xlu0 %v2261, 126
          %v2269 = vpop.permute.xlu0 %2268
          %2270 = vrot.lane.b32.xlu0 %v2263, 126
          %v2271 = vpop.permute.xlu0 %2270
          %2272 = vrot.lane.b32.xlu0 %v2265, 126
          %v2273 = vpop.permute.xlu0 %2272
          %2274 = vrot.lane.b32.xlu0 %v2262, 126
          %v2275 = vpop.permute.xlu0 %2274
          %2276 = vrot.lane.b32.xlu0 %v2264, 126
          %v2277 = vpop.permute.xlu0 %2276
          %v2278 = vsel %vm359, %v2267, %v2269
          %v2279 = vsel %vm359, %v2271, %v2273
          %v2280 = vsel %vm359, %v2275, %v2277
          %v2287 = vadd.f32 %v2236, %v2278
          %v2288 = vadd.f32 %v2237, %v2269
          %v2289 = vadd.f32 %v2238, %v2279
          %v2290 = vadd.f32 %v2239, %v2273
          %v2291 = vadd.f32 %v2240, %v2280
          %v2292 = vadd.f32 %v2241, %v2277
          %s2293 = sld [smem:[#allocation9 + $0x3b]]
          %v2294 = vstv %s2293
          %v2295 = vmul.f32 %v2294, %v2153
          %v2296 = vmul.f32 %v2294, %v1961
          %v2297 = vmul.f32 %v2294, %v2155
          %v2301 = vrot.slane %v2295, 1
          %v2302 = vrot.slane %v2296, 1
          %v2303 = vsel %vm485, %v2301, %v2302
          %v2304 = vrot.slane %v2297, 1
          %v2305 = vsel %vm485, %v2302, %v2304
          %2306 = vrot.lane.b32.xlu0 %v2303, 125
          %v2307 = vpop.permute.xlu0 %2306
          %2308 = vrot.lane.b32.xlu0 %v2305, 125
          %v2309 = vpop.permute.xlu0 %2308
          %2310 = vrot.lane.b32.xlu0 %v2304, 125
          %v2311 = vpop.permute.xlu0 %2310
          %v2315 = vadd.f32 %v2287, %v2307
          %v2316 = vadd.f32 %v2288, %v2307
          %v2317 = vadd.f32 %v2289, %v2309
          %v2318 = vadd.f32 %v2290, %v2309
          %v2319 = vadd.f32 %v2291, %v2311
          %v2320 = vadd.f32 %v2292, %v2311
          %s2321 = sld [smem:[#allocation9 + $0x3c]]
          %v2322 = vstv %s2321
          %v2323 = vmul.f32 %v2322, %v2153
          %v2324 = vmul.f32 %v2322, %v1961
          %v2325 = vmul.f32 %v2322, %v2155
          %v2329 = vrot.slane %v2323, 1
          %v2330 = vrot.slane %v2324, 1
          %v2331 = vsel %vm485, %v2329, %v2330
          %v2332 = vrot.slane %v2325, 1
          %v2333 = vsel %vm485, %v2330, %v2332
          %2334 = vrot.lane.b32.xlu0 %v2331, 124
          %v2335 = vpop.permute.xlu0 %2334
          %2336 = vrot.lane.b32.xlu0 %v2333, 124
          %v2337 = vpop.permute.xlu0 %2336
          %2338 = vrot.lane.b32.xlu0 %v2332, 124
          %v2339 = vpop.permute.xlu0 %2338
          %v2343 = vadd.f32 %v2315, %v2335
          %v2344 = vadd.f32 %v2316, %v2335
          %v2345 = vadd.f32 %v2317, %v2337
          %v2346 = vadd.f32 %v2318, %v2337
          %v2347 = vadd.f32 %v2319, %v2339
          %v2348 = vadd.f32 %v2320, %v2339
          %s2349 = sld [smem:[#allocation9 + $0x3d]]
          %v2350 = vstv %s2349
          %v2351 = vmul.f32 %v2350, %v2153
          %v2352 = vmul.f32 %v2350, %v1961
          %v2353 = vmul.f32 %v2350, %v2155
          %v2357 = vrot.slane %v2351, 1
          %v2358 = vrot.slane %v2352, 1
          %v2359 = vsel %vm485, %v2357, %v2358
          %v2360 = vrot.slane %v2353, 1
          %v2361 = vsel %vm485, %v2358, %v2360
          %2362 = vrot.lane.b32.xlu0 %v2359, 123
          %v2363 = vpop.permute.xlu0 %2362
          %2364 = vrot.lane.b32.xlu0 %v2361, 123
          %v2365 = vpop.permute.xlu0 %2364
          %2366 = vrot.lane.b32.xlu0 %v2360, 123
          %v2367 = vpop.permute.xlu0 %2366
          %v2371 = vadd.f32 %v2343, %v2363
          %v2372 = vadd.f32 %v2344, %v2363
          %v2373 = vadd.f32 %v2345, %v2365
          %v2374 = vadd.f32 %v2346, %v2365
          %v2375 = vadd.f32 %v2347, %v2367
          %v2376 = vadd.f32 %v2348, %v2367
          %s2377 = sld [smem:[#allocation9 + $0x3e]]
          %v2378 = vstv %s2377
          %v2379 = vmul.f32 %v2378, %v2153
          %v2380 = vmul.f32 %v2378, %v1961
          %v2381 = vmul.f32 %v2378, %v2155
          %v2385 = vrot.slane %v2379, 1
          %v2386 = vrot.slane %v2380, 1
          %v2387 = vsel %vm485, %v2385, %v2386
          %v2388 = vrot.slane %v2381, 1
          %v2389 = vsel %vm485, %v2386, %v2388
          %2390 = vrot.lane.b32.xlu0 %v2387, 122
          %v2391 = vpop.permute.xlu0 %2390
          %2392 = vrot.lane.b32.xlu0 %v2389, 122
          %v2393 = vpop.permute.xlu0 %2392
          %2394 = vrot.lane.b32.xlu0 %v2388, 122
          %v2395 = vpop.permute.xlu0 %2394
          %v2399 = vadd.f32 %v2371, %v2391
          %v2400 = vadd.f32 %v2372, %v2391
          %v2401 = vadd.f32 %v2373, %v2393
          %v2402 = vadd.f32 %v2374, %v2393
          %v2403 = vadd.f32 %v2375, %v2395
          %v2404 = vadd.f32 %v2376, %v2395
          %s2405 = sld [smem:[#allocation9 + $0x3f]]
          %v2406 = vld [vmem:[%s268] sm:$0x80]
          %v2407 = vld [vmem:[%s268 + $0x8] sm:$0x80]
          %v2408 = vld [vmem:[%s268 + $0x20] sm:$0x7f]
          %v2409 = vld [vmem:[%s268 + $0x28] sm:$0x7f]
          %v2410 = vstv %s2405
          %v2411 = vmul.f32 %v2410, %v2406
          %v2412 = vmul.f32 %v2410, %v2407
          %v2413 = vmul.f32 %v2410, %v1960
          %v2414 = vmul.f32 %v2410, %v1961
          %v2415 = vmul.f32 %v2410, %v2408
          %v2416 = vmul.f32 %v2410, %v2409
          %v2423 = vrot.slane %v2411, 2
          %v2424 = vrot.slane %v2413, 2
          %v2425 = vsel %vm740, %v2423, %v2424
          %v2426 = vrot.slane %v2412, 2
          %v2427 = vrot.slane %v2414, 2
          %v2428 = vsel %vm740, %v2426, %v2427
          %v2429 = vrot.slane %v2415, 2
          %v2430 = vsel %vm740, %v2424, %v2429
          %v2431 = vrot.slane %v2416, 2
          %v2432 = vsel %vm740, %v2427, %v2431
          %v2439 = vadd.f32 %v2399, %v2425
          %v2440 = vadd.f32 %v2400, %v2428
          %v2441 = vadd.f32 %v2401, %v2430
          %v2442 = vadd.f32 %v2402, %v2432
          %v2443 = vadd.f32 %v2403, %v2429
          %v2444 = vadd.f32 %v2404, %v2431
          %s2445 = sld [smem:[#allocation9 + $0x40]]
          %v2446 = vstv %s2445
          %v2447 = vmul.f32 %v2446, %v2406
          %v2448 = vmul.f32 %v2446, %v2407
          %v2449 = vmul.f32 %v2446, %v1960
          %v2450 = vmul.f32 %v2446, %v1961
          %v2451 = vmul.f32 %v2446, %v2408
          %v2452 = vmul.f32 %v2446, %v2409
          %v2459 = vrot.slane %v2447, 2
          %v2460 = vrot.slane %v2449, 2
          %v2461 = vsel %vm740, %v2459, %v2460
          %v2462 = vrot.slane %v2448, 2
          %v2463 = vrot.slane %v2450, 2
          %v2464 = vsel %vm740, %v2462, %v2463
          %v2465 = vrot.slane %v2451, 2
          %v2466 = vsel %vm740, %v2460, %v2465
          %v2467 = vrot.slane %v2452, 2
          %v2468 = vsel %vm740, %v2463, %v2467
          %2469 = vrot.lane.b32.xlu0 %v2461, 127
          %v2470 = vpop.permute.xlu0 %2469
          %2471 = vrot.lane.b32.xlu0 %v2464, 127
          %v2472 = vpop.permute.xlu0 %2471
          %2473 = vrot.lane.b32.xlu0 %v2466, 127
          %v2474 = vpop.permute.xlu0 %2473
          %2475 = vrot.lane.b32.xlu0 %v2468, 127
          %v2476 = vpop.permute.xlu0 %2475
          %2477 = vrot.lane.b32.xlu0 %v2465, 127
          %v2478 = vpop.permute.xlu0 %2477
          %2479 = vrot.lane.b32.xlu0 %v2467, 127
          %v2480 = vpop.permute.xlu0 %2479
          %v2481 = vsel %vm317, %v2470, %v2472
          %v2482 = vsel %vm317, %v2474, %v2476
          %v2483 = vsel %vm317, %v2478, %v2480
          %v2490 = vadd.f32 %v2439, %v2481
          %v2491 = vadd.f32 %v2440, %v2472
          %v2492 = vadd.f32 %v2441, %v2482
          %v2493 = vadd.f32 %v2442, %v2476
          %v2494 = vadd.f32 %v2443, %v2483
          %v2495 = vadd.f32 %v2444, %v2480
          %s2496 = sld [smem:[#allocation9 + $0x41]]
          %v2497 = vstv %s2496
          %v2498 = vmul.f32 %v2497, %v2406
          %v2499 = vmul.f32 %v2497, %v2407
          %v2500 = vmul.f32 %v2497, %v1960
          %v2501 = vmul.f32 %v2497, %v1961
          %v2502 = vmul.f32 %v2497, %v2408
          %v2503 = vmul.f32 %v2497, %v2409
          %v2510 = vrot.slane %v2498, 2
          %v2511 = vrot.slane %v2500, 2
          %v2512 = vsel %vm740, %v2510, %v2511
          %v2513 = vrot.slane %v2499, 2
          %v2514 = vrot.slane %v2501, 2
          %v2515 = vsel %vm740, %v2513, %v2514
          %v2516 = vrot.slane %v2502, 2
          %v2517 = vsel %vm740, %v2511, %v2516
          %v2518 = vrot.slane %v2503, 2
          %v2519 = vsel %vm740, %v2514, %v2518
          %2520 = vrot.lane.b32.xlu0 %v2512, 126
          %v2521 = vpop.permute.xlu0 %2520
          %2522 = vrot.lane.b32.xlu0 %v2515, 126
          %v2523 = vpop.permute.xlu0 %2522
          %2524 = vrot.lane.b32.xlu0 %v2517, 126
          %v2525 = vpop.permute.xlu0 %2524
          %2526 = vrot.lane.b32.xlu0 %v2519, 126
          %v2527 = vpop.permute.xlu0 %2526
          %2528 = vrot.lane.b32.xlu0 %v2516, 126
          %v2529 = vpop.permute.xlu0 %2528
          %2530 = vrot.lane.b32.xlu0 %v2518, 126
          %v2531 = vpop.permute.xlu0 %2530
          %v2532 = vsel %vm359, %v2521, %v2523
          %v2533 = vsel %vm359, %v2525, %v2527
          %v2534 = vsel %vm359, %v2529, %v2531
          %v2541 = vadd.f32 %v2490, %v2532
          %v2542 = vadd.f32 %v2491, %v2523
          %v2543 = vadd.f32 %v2492, %v2533
          %v2544 = vadd.f32 %v2493, %v2527
          %v2545 = vadd.f32 %v2494, %v2534
          %v2546 = vadd.f32 %v2495, %v2531
          %s2547 = sld [smem:[#allocation9 + $0x42]]
          %v2548 = vstv %s2547
          %v2549 = vmul.f32 %v2548, %v2407
          %v2550 = vmul.f32 %v2548, %v1961
          %v2551 = vmul.f32 %v2548, %v2409
          %v2555 = vrot.slane %v2549, 2
          %v2556 = vrot.slane %v2550, 2
          %v2557 = vsel %vm740, %v2555, %v2556
          %v2558 = vrot.slane %v2551, 2
          %v2559 = vsel %vm740, %v2556, %v2558
          %2560 = vrot.lane.b32.xlu0 %v2557, 125
          %v2561 = vpop.permute.xlu0 %2560
          %2562 = vrot.lane.b32.xlu0 %v2559, 125
          %v2563 = vpop.permute.xlu0 %2562
          %2564 = vrot.lane.b32.xlu0 %v2558, 125
          %v2565 = vpop.permute.xlu0 %2564
          %v2569 = vadd.f32 %v2541, %v2561
          %v2570 = vadd.f32 %v2542, %v2561
          %v2571 = vadd.f32 %v2543, %v2563
          %v2572 = vadd.f32 %v2544, %v2563
          %v2573 = vadd.f32 %v2545, %v2565
          %v2574 = vadd.f32 %v2546, %v2565
          %s2575 = sld [smem:[#allocation9 + $0x43]]
          %v2576 = vstv %s2575
          %v2577 = vmul.f32 %v2576, %v2407
          %v2578 = vmul.f32 %v2576, %v1961
          %v2579 = vmul.f32 %v2576, %v2409
          %v2583 = vrot.slane %v2577, 2
          %v2584 = vrot.slane %v2578, 2
          %v2585 = vsel %vm740, %v2583, %v2584
          %v2586 = vrot.slane %v2579, 2
          %v2587 = vsel %vm740, %v2584, %v2586
          %2588 = vrot.lane.b32.xlu0 %v2585, 124
          %v2589 = vpop.permute.xlu0 %2588
          %2590 = vrot.lane.b32.xlu0 %v2587, 124
          %v2591 = vpop.permute.xlu0 %2590
          %2592 = vrot.lane.b32.xlu0 %v2586, 124
          %v2593 = vpop.permute.xlu0 %2592
          %v2597 = vadd.f32 %v2569, %v2589
          %v2598 = vadd.f32 %v2570, %v2589
          %v2599 = vadd.f32 %v2571, %v2591
          %v2600 = vadd.f32 %v2572, %v2591
          %v2601 = vadd.f32 %v2573, %v2593
          %v2602 = vadd.f32 %v2574, %v2593
          %s2603 = sld [smem:[#allocation9 + $0x44]]
          %v2604 = vstv %s2603
          %v2605 = vmul.f32 %v2604, %v2407
          %v2606 = vmul.f32 %v2604, %v1961
          %v2607 = vmul.f32 %v2604, %v2409
          %v2611 = vrot.slane %v2605, 2
          %v2612 = vrot.slane %v2606, 2
          %v2613 = vsel %vm740, %v2611, %v2612
          %v2614 = vrot.slane %v2607, 2
          %v2615 = vsel %vm740, %v2612, %v2614
          %2616 = vrot.lane.b32.xlu0 %v2613, 123
          %v2617 = vpop.permute.xlu0 %2616
          %2618 = vrot.lane.b32.xlu0 %v2615, 123
          %v2619 = vpop.permute.xlu0 %2618
          %2620 = vrot.lane.b32.xlu0 %v2614, 123
          %v2621 = vpop.permute.xlu0 %2620
          %v2625 = vadd.f32 %v2597, %v2617
          %v2626 = vadd.f32 %v2598, %v2617
          %v2627 = vadd.f32 %v2599, %v2619
          %v2628 = vadd.f32 %v2600, %v2619
          %v2629 = vadd.f32 %v2601, %v2621
          %v2630 = vadd.f32 %v2602, %v2621
          %s2631 = sld [smem:[#allocation9 + $0x45]]
          %v2632 = vstv %s2631
          %v2633 = vmul.f32 %v2632, %v2407
          %v2634 = vmul.f32 %v2632, %v1961
          %v2635 = vmul.f32 %v2632, %v2409
          %v2639 = vrot.slane %v2633, 2
          %v2640 = vrot.slane %v2634, 2
          %v2641 = vsel %vm740, %v2639, %v2640
          %v2642 = vrot.slane %v2635, 2
          %v2643 = vsel %vm740, %v2640, %v2642
          %2644 = vrot.lane.b32.xlu0 %v2641, 122
          %v2645 = vpop.permute.xlu0 %2644
          %2646 = vrot.lane.b32.xlu0 %v2643, 122
          %v2647 = vpop.permute.xlu0 %2646
          %2648 = vrot.lane.b32.xlu0 %v2642, 122
          %v2649 = vpop.permute.xlu0 %2648
          %v2653 = vadd.f32 %v2625, %v2645
          %v2654 = vadd.f32 %v2626, %v2645
          %v2655 = vadd.f32 %v2627, %v2647
          %v2656 = vadd.f32 %v2628, %v2647
          %v2657 = vadd.f32 %v2629, %v2649
          %v2658 = vadd.f32 %v2630, %v2649
          %s2659 = sld [smem:[#allocation9 + $0x46]]
          %v2660 = vld [vmem:[%s268 + $0x20] sm:$0xff]
          %v2661 = vld [vmem:[%s268 + $0x28] sm:$0xff]
          %v2662 = vstv %s2659
          %v2663 = vmul.f32 %v2662, %v1960
          %v2664 = vmul.f32 %v2662, %v1961
          %v2665 = vmul.f32 %v2662, %v2660
          %v2666 = vmul.f32 %v2662, %v2661
          %v2671 = vrot.slane %v2663, 3
          %v2672 = vrot.slane %v2664, 3
          %v2673 = vrot.slane %v2665, 3
          %v2674 = vsel %vm989, %v2671, %v2673
          %v2675 = vrot.slane %v2666, 3
          %v2676 = vsel %vm989, %v2672, %v2675
          %v2683 = vadd.f32 %v2653, %v2671
          %v2684 = vadd.f32 %v2654, %v2672
          %v2685 = vadd.f32 %v2655, %v2674
          %v2686 = vadd.f32 %v2656, %v2676
          %v2687 = vadd.f32 %v2657, %v2673
          %v2688 = vadd.f32 %v2658, %v2675
          %s2689 = sld [smem:[#allocation9 + $0x47]]
          %v2690 = vstv %s2689
          %v2691 = vmul.f32 %v2690, %v1960
          %v2692 = vmul.f32 %v2690, %v1961
          %v2693 = vmul.f32 %v2690, %v2660
          %v2694 = vmul.f32 %v2690, %v2661
          %v2699 = vrot.slane %v2691, 3
          %v2700 = vrot.slane %v2692, 3
          %v2701 = vrot.slane %v2693, 3
          %v2702 = vsel %vm989, %v2699, %v2701
          %v2703 = vrot.slane %v2694, 3
          %v2704 = vsel %vm989, %v2700, %v2703
          %2705 = vrot.lane.b32.xlu0 %v2699, 127
          %v2706 = vpop.permute.xlu0 %2705
          %2707 = vrot.lane.b32.xlu0 %v2700, 127
          %v2708 = vpop.permute.xlu0 %2707
          %2709 = vrot.lane.b32.xlu0 %v2702, 127
          %v2710 = vpop.permute.xlu0 %2709
          %2711 = vrot.lane.b32.xlu0 %v2704, 127
          %v2712 = vpop.permute.xlu0 %2711
          %2713 = vrot.lane.b32.xlu0 %v2701, 127
          %v2714 = vpop.permute.xlu0 %2713
          %2715 = vrot.lane.b32.xlu0 %v2703, 127
          %v2716 = vpop.permute.xlu0 %2715
          %v2717 = vsel %vm317, %v2706, %v2708
          %v2718 = vsel %vm317, %v2710, %v2712
          %v2719 = vsel %vm317, %v2714, %v2716
          %v2726 = vadd.f32 %v2683, %v2717
          %v2727 = vadd.f32 %v2684, %v2708
          %v2728 = vadd.f32 %v2685, %v2718
          %v2729 = vadd.f32 %v2686, %v2712
          %v2730 = vadd.f32 %v2687, %v2719
          %v2731 = vadd.f32 %v2688, %v2716
          %s2732 = sld [smem:[#allocation9 + $0x48]]
          %v2733 = vstv %s2732
          %v2734 = vmul.f32 %v2733, %v1960
          %v2735 = vmul.f32 %v2733, %v1961
          %v2736 = vmul.f32 %v2733, %v2660
          %v2737 = vmul.f32 %v2733, %v2661
          %v2742 = vrot.slane %v2734, 3
          %v2743 = vrot.slane %v2735, 3
          %v2744 = vrot.slane %v2736, 3
          %v2745 = vsel %vm989, %v2742, %v2744
          %v2746 = vrot.slane %v2737, 3
          %v2747 = vsel %vm989, %v2743, %v2746
          %2748 = vrot.lane.b32.xlu0 %v2742, 126
          %v2749 = vpop.permute.xlu0 %2748
          %2750 = vrot.lane.b32.xlu0 %v2743, 126
          %v2751 = vpop.permute.xlu0 %2750
          %2752 = vrot.lane.b32.xlu0 %v2745, 126
          %v2753 = vpop.permute.xlu0 %2752
          %2754 = vrot.lane.b32.xlu0 %v2747, 126
          %v2755 = vpop.permute.xlu0 %2754
          %2756 = vrot.lane.b32.xlu0 %v2744, 126
          %v2757 = vpop.permute.xlu0 %2756
          %2758 = vrot.lane.b32.xlu0 %v2746, 126
          %v2759 = vpop.permute.xlu0 %2758
          %v2760 = vsel %vm359, %v2749, %v2751
          %v2761 = vsel %vm359, %v2753, %v2755
          %v2762 = vsel %vm359, %v2757, %v2759
          %v2769 = vadd.f32 %v2726, %v2760
          %v2770 = vadd.f32 %v2727, %v2751
          %v2771 = vadd.f32 %v2728, %v2761
          %v2772 = vadd.f32 %v2729, %v2755
          %v2773 = vadd.f32 %v2730, %v2762
          %v2774 = vadd.f32 %v2731, %v2759
          %s2775 = sld [smem:[#allocation9 + $0x49]]
          %v2776 = vstv %s2775
          %v2777 = vmul.f32 %v2776, %v1961
          %v2778 = vmul.f32 %v2776, %v2661
          %v2781 = vrot.slane %v2777, 3
          %v2782 = vrot.slane %v2778, 3
          %v2783 = vsel %vm989, %v2781, %v2782
          %2784 = vrot.lane.b32.xlu0 %v2781, 125
          %v2785 = vpop.permute.xlu0 %2784
          %2786 = vrot.lane.b32.xlu0 %v2783, 125
          %v2787 = vpop.permute.xlu0 %2786
          %2788 = vrot.lane.b32.xlu0 %v2782, 125
          %v2789 = vpop.permute.xlu0 %2788
          %v2793 = vadd.f32 %v2769, %v2785
          %v2794 = vadd.f32 %v2770, %v2785
          %v2795 = vadd.f32 %v2771, %v2787
          %v2796 = vadd.f32 %v2772, %v2787
          %v2797 = vadd.f32 %v2773, %v2789
          %v2798 = vadd.f32 %v2774, %v2789
          %s2799 = sld [smem:[#allocation9 + $0x4a]]
          %v2800 = vstv %s2799
          %v2801 = vmul.f32 %v2800, %v1961
          %v2802 = vmul.f32 %v2800, %v2661
          %v2805 = vrot.slane %v2801, 3
          %v2806 = vrot.slane %v2802, 3
          %v2807 = vsel %vm989, %v2805, %v2806
          %2808 = vrot.lane.b32.xlu0 %v2805, 124
          %v2809 = vpop.permute.xlu0 %2808
          %2810 = vrot.lane.b32.xlu0 %v2807, 124
          %v2811 = vpop.permute.xlu0 %2810
          %2812 = vrot.lane.b32.xlu0 %v2806, 124
          %v2813 = vpop.permute.xlu0 %2812
          %v2817 = vadd.f32 %v2793, %v2809
          %v2818 = vadd.f32 %v2794, %v2809
          %v2819 = vadd.f32 %v2795, %v2811
          %v2820 = vadd.f32 %v2796, %v2811
          %v2821 = vadd.f32 %v2797, %v2813
          %v2822 = vadd.f32 %v2798, %v2813
          %s2823 = sld [smem:[#allocation9 + $0x4b]]
          %v2824 = vstv %s2823
          %v2825 = vmul.f32 %v2824, %v1961
          %v2826 = vmul.f32 %v2824, %v2661
          %v2829 = vrot.slane %v2825, 3
          %v2830 = vrot.slane %v2826, 3
          %v2831 = vsel %vm989, %v2829, %v2830
          %2832 = vrot.lane.b32.xlu0 %v2829, 123
          %v2833 = vpop.permute.xlu0 %2832
          %2834 = vrot.lane.b32.xlu0 %v2831, 123
          %v2835 = vpop.permute.xlu0 %2834
          %2836 = vrot.lane.b32.xlu0 %v2830, 123
          %v2837 = vpop.permute.xlu0 %2836
          %v2841 = vadd.f32 %v2817, %v2833
          %v2842 = vadd.f32 %v2818, %v2833
          %v2843 = vadd.f32 %v2819, %v2835
          %v2844 = vadd.f32 %v2820, %v2835
          %v2845 = vadd.f32 %v2821, %v2837
          %v2846 = vadd.f32 %v2822, %v2837
          %s2847 = sld [smem:[#allocation9 + $0x4c]]
          %v2848 = vstv %s2847
          %v2849 = vmul.f32 %v2848, %v1961
          %v2850 = vmul.f32 %v2848, %v2661
          %v2853 = vrot.slane %v2849, 3
          %v2854 = vrot.slane %v2850, 3
          %v2855 = vsel %vm989, %v2853, %v2854
          %2856 = vrot.lane.b32.xlu0 %v2853, 122
          %v2857 = vpop.permute.xlu0 %2856
          %2858 = vrot.lane.b32.xlu0 %v2855, 122
          %v2859 = vpop.permute.xlu0 %2858
          %2860 = vrot.lane.b32.xlu0 %v2854, 122
          %v2861 = vpop.permute.xlu0 %2860
          %v2865 = vadd.f32 %v2841, %v2857
          %v2866 = vadd.f32 %v2842, %v2857
          %v2867 = vadd.f32 %v2843, %v2859
          %v2868 = vadd.f32 %v2844, %v2859
          %v2869 = vadd.f32 %v2845, %v2861
          %v2870 = vadd.f32 %v2846, %v2861
          %s2871 = sld [smem:[#allocation9 + $0x4d]]
          %v2872 = vld [vmem:[%s268 + $0x10] sm:$0xfe]
          %v2873 = vld [vmem:[%s268 + $0x18] sm:$0xfe]
          %v2874 = vld [vmem:[%s268 + $0x20] sm:$0xff]
          %v2875 = vld [vmem:[%s268 + $0x28] sm:$0xff]
          %v2876 = vld [vmem:[%s268 + $0x30] sm:$0x1]
          %v2877 = vld [vmem:[%s268 + $0x38] sm:$0x1]
          %v2878 = vstv %s2871
          %v2879 = vmul.f32 %v2878, %v2872
          %v2880 = vmul.f32 %v2878, %v2873
          %v2881 = vmul.f32 %v2878, %v2874
          %v2882 = vmul.f32 %v2878, %v2875
          %v2883 = vmul.f32 %v2878, %v2876
          %v2884 = vmul.f32 %v2878, %v2877
          %v2891 = vrot.slane %v2879, 4
          %v2892 = vrot.slane %v2880, 4
          %v2893 = vrot.slane %v2881, 4
          %v2894 = vsel %vm1210, %v2891, %v2893
          %v2895 = vrot.slane %v2882, 4
          %v2896 = vsel %vm1210, %v2892, %v2895
          %v2897 = vrot.slane %v2883, 4
          %v2898 = vsel %vm1210, %v2893, %v2897
          %v2899 = vrot.slane %v2884, 4
          %v2900 = vsel %vm1210, %v2895, %v2899
          %v2907 = vadd.f32 %v2865, %v2891
          %v2908 = vadd.f32 %v2866, %v2892
          %v2909 = vadd.f32 %v2867, %v2894
          %v2910 = vadd.f32 %v2868, %v2896
          %v2911 = vadd.f32 %v2869, %v2898
          %v2912 = vadd.f32 %v2870, %v2900
          %s2913 = sld [smem:[#allocation9 + $0x4e]]
          %v2914 = vstv %s2913
          %v2915 = vmul.f32 %v2914, %v2872
          %v2916 = vmul.f32 %v2914, %v2873
          %v2917 = vmul.f32 %v2914, %v2874
          %v2918 = vmul.f32 %v2914, %v2875
          %v2919 = vmul.f32 %v2914, %v2876
          %v2920 = vmul.f32 %v2914, %v2877
          %v2927 = vrot.slane %v2915, 4
          %v2928 = vrot.slane %v2916, 4
          %v2929 = vrot.slane %v2917, 4
          %v2930 = vsel %vm1210, %v2927, %v2929
          %v2931 = vrot.slane %v2918, 4
          %v2932 = vsel %vm1210, %v2928, %v2931
          %v2933 = vrot.slane %v2919, 4
          %v2934 = vsel %vm1210, %v2929, %v2933
          %v2935 = vrot.slane %v2920, 4
          %v2936 = vsel %vm1210, %v2931, %v2935
          %2937 = vrot.lane.b32.xlu0 %v2927, 127
          %v2938 = vpop.permute.xlu0 %2937
          %2939 = vrot.lane.b32.xlu0 %v2928, 127
          %v2940 = vpop.permute.xlu0 %2939
          %2941 = vrot.lane.b32.xlu0 %v2930, 127
          %v2942 = vpop.permute.xlu0 %2941
          %2943 = vrot.lane.b32.xlu0 %v2932, 127
          %v2944 = vpop.permute.xlu0 %2943
          %2945 = vrot.lane.b32.xlu0 %v2934, 127
          %v2946 = vpop.permute.xlu0 %2945
          %2947 = vrot.lane.b32.xlu0 %v2936, 127
          %v2948 = vpop.permute.xlu0 %2947
          %v2949 = vsel %vm317, %v2938, %v2940
          %v2950 = vsel %vm317, %v2942, %v2944
          %v2951 = vsel %vm317, %v2946, %v2948
          %v2958 = vadd.f32 %v2907, %v2949
          %v2959 = vadd.f32 %v2908, %v2940
          %v2960 = vadd.f32 %v2909, %v2950
          %v2961 = vadd.f32 %v2910, %v2944
          %v2962 = vadd.f32 %v2911, %v2951
          %v2963 = vadd.f32 %v2912, %v2948
          %s2964 = sld [smem:[#allocation9 + $0x4f]]
          %v2965 = vstv %s2964
          %v2966 = vmul.f32 %v2965, %v2872
          %v2967 = vmul.f32 %v2965, %v2873
          %v2968 = vmul.f32 %v2965, %v2874
          %v2969 = vmul.f32 %v2965, %v2875
          %v2970 = vmul.f32 %v2965, %v2876
          %v2971 = vmul.f32 %v2965, %v2877
          %v2978 = vrot.slane %v2966, 4
          %v2979 = vrot.slane %v2967, 4
          %v2980 = vrot.slane %v2968, 4
          %v2981 = vsel %vm1210, %v2978, %v2980
          %v2982 = vrot.slane %v2969, 4
          %v2983 = vsel %vm1210, %v2979, %v2982
          %v2984 = vrot.slane %v2970, 4
          %v2985 = vsel %vm1210, %v2980, %v2984
          %v2986 = vrot.slane %v2971, 4
          %v2987 = vsel %vm1210, %v2982, %v2986
          %2988 = vrot.lane.b32.xlu0 %v2978, 126
          %v2989 = vpop.permute.xlu0 %2988
          %2990 = vrot.lane.b32.xlu0 %v2979, 126
          %v2991 = vpop.permute.xlu0 %2990
          %2992 = vrot.lane.b32.xlu0 %v2981, 126
          %v2993 = vpop.permute.xlu0 %2992
          %2994 = vrot.lane.b32.xlu0 %v2983, 126
          %v2995 = vpop.permute.xlu0 %2994
          %2996 = vrot.lane.b32.xlu0 %v2985, 126
          %v2997 = vpop.permute.xlu0 %2996
          %2998 = vrot.lane.b32.xlu0 %v2987, 126
          %v2999 = vpop.permute.xlu0 %2998
          %v3000 = vsel %vm359, %v2989, %v2991
          %v3001 = vsel %vm359, %v2993, %v2995
          %v3002 = vsel %vm359, %v2997, %v2999
          %v3009 = vadd.f32 %v2958, %v3000
          %v3010 = vadd.f32 %v2959, %v2991
          %v3011 = vadd.f32 %v2960, %v3001
          %v3012 = vadd.f32 %v2961, %v2995
          %v3013 = vadd.f32 %v2962, %v3002
          %v3014 = vadd.f32 %v2963, %v2999
          %s3015 = sld [smem:[#allocation9 + $0x50]]
          %v3016 = vstv %s3015
          %v3017 = vmul.f32 %v3016, %v2873
          %v3018 = vmul.f32 %v3016, %v2875
          %v3019 = vmul.f32 %v3016, %v2877
          %v3023 = vrot.slane %v3017, 4
          %v3024 = vrot.slane %v3018, 4
          %v3025 = vsel %vm1210, %v3023, %v3024
          %v3026 = vrot.slane %v3019, 4
          %v3027 = vsel %vm1210, %v3024, %v3026
          %3028 = vrot.lane.b32.xlu0 %v3023, 125
          %v3029 = vpop.permute.xlu0 %3028
          %3030 = vrot.lane.b32.xlu0 %v3025, 125
          %v3031 = vpop.permute.xlu0 %3030
          %3032 = vrot.lane.b32.xlu0 %v3027, 125
          %v3033 = vpop.permute.xlu0 %3032
          %v3037 = vadd.f32 %v3009, %v3029
          %v3038 = vadd.f32 %v3010, %v3029
          %v3039 = vadd.f32 %v3011, %v3031
          %v3040 = vadd.f32 %v3012, %v3031
          %v3041 = vadd.f32 %v3013, %v3033
          %v3042 = vadd.f32 %v3014, %v3033
          %s3043 = sld [smem:[#allocation9 + $0x51]]
          %v3044 = vstv %s3043
          %v3045 = vmul.f32 %v3044, %v2873
          %v3046 = vmul.f32 %v3044, %v2875
          %v3047 = vmul.f32 %v3044, %v2877
          %v3051 = vrot.slane %v3045, 4
          %v3052 = vrot.slane %v3046, 4
          %v3053 = vsel %vm1210, %v3051, %v3052
          %v3054 = vrot.slane %v3047, 4
          %v3055 = vsel %vm1210, %v3052, %v3054
          %3056 = vrot.lane.b32.xlu0 %v3051, 124
          %v3057 = vpop.permute.xlu0 %3056
          %3058 = vrot.lane.b32.xlu0 %v3053, 124
          %v3059 = vpop.permute.xlu0 %3058
          %3060 = vrot.lane.b32.xlu0 %v3055, 124
          %v3061 = vpop.permute.xlu0 %3060
          %v3065 = vadd.f32 %v3037, %v3057
          %v3066 = vadd.f32 %v3038, %v3057
          %v3067 = vadd.f32 %v3039, %v3059
          %v3068 = vadd.f32 %v3040, %v3059
          %v3069 = vadd.f32 %v3041, %v3061
          %v3070 = vadd.f32 %v3042, %v3061
          %s3071 = sld [smem:[#allocation9 + $0x52]]
          %v3072 = vstv %s3071
          %v3073 = vmul.f32 %v3072, %v2873
          %v3074 = vmul.f32 %v3072, %v2875
          %v3075 = vmul.f32 %v3072, %v2877
          %v3079 = vrot.slane %v3073, 4
          %v3080 = vrot.slane %v3074, 4
          %v3081 = vsel %vm1210, %v3079, %v3080
          %v3082 = vrot.slane %v3075, 4
          %v3083 = vsel %vm1210, %v3080, %v3082
          %3084 = vrot.lane.b32.xlu0 %v3079, 123
          %v3085 = vpop.permute.xlu0 %3084
          %3086 = vrot.lane.b32.xlu0 %v3081, 123
          %v3087 = vpop.permute.xlu0 %3086
          %3088 = vrot.lane.b32.xlu0 %v3083, 123
          %v3089 = vpop.permute.xlu0 %3088
          %v3093 = vadd.f32 %v3065, %v3085
          %v3094 = vadd.f32 %v3066, %v3085
          %v3095 = vadd.f32 %v3067, %v3087
          %v3096 = vadd.f32 %v3068, %v3087
          %v3097 = vadd.f32 %v3069, %v3089
          %v3098 = vadd.f32 %v3070, %v3089
          %s3099 = sld [smem:[#allocation9 + $0x53]]
          %v3100 = vstv %s3099
          %v3101 = vmul.f32 %v3100, %v2873
          %v3102 = vmul.f32 %v3100, %v2875
          %v3103 = vmul.f32 %v3100, %v2877
          %v3107 = vrot.slane %v3101, 4
          %v3108 = vrot.slane %v3102, 4
          %v3109 = vsel %vm1210, %v3107, %v3108
          %v3110 = vrot.slane %v3103, 4
          %v3111 = vsel %vm1210, %v3108, %v3110
          %3112 = vrot.lane.b32.xlu0 %v3107, 122
          %v3113 = vpop.permute.xlu0 %3112
          %3114 = vrot.lane.b32.xlu0 %v3109, 122
          %v3115 = vpop.permute.xlu0 %3114
          %3116 = vrot.lane.b32.xlu0 %v3111, 122
          %v3117 = vpop.permute.xlu0 %3116
          %v3121 = vadd.f32 %v3093, %v3113
          %v3122 = vadd.f32 %v3094, %v3113
          %v3123 = vadd.f32 %v3095, %v3115
          %v3124 = vadd.f32 %v3096, %v3115
          %v3125 = vadd.f32 %v3097, %v3117
          %v3126 = vadd.f32 %v3098, %v3117
          %s3127 = sld [smem:[#allocation9 + $0x54]]
          %v3128 = vld [vmem:[%s268 + $0x10] sm:$0xfc]
          %v3129 = vld [vmem:[%s268 + $0x18] sm:$0xfc]
          %v3130 = vld [vmem:[%s268 + $0x30] sm:$0x3]
          %v3131 = vld [vmem:[%s268 + $0x38] sm:$0x3]
          %v3132 = vstv %s3127
          %v3133 = vmul.f32 %v3132, %v3128
          %v3134 = vmul.f32 %v3132, %v3129
          %v3135 = vmul.f32 %v3132, %v2874
          %v3136 = vmul.f32 %v3132, %v2875
          %v3137 = vmul.f32 %v3132, %v3130
          %v3138 = vmul.f32 %v3132, %v3131
          %v3145 = vrot.slane %v3133, 5
          %v3146 = vrot.slane %v3134, 5
          %v3147 = vrot.slane %v3135, 5
          %v3148 = vsel %vm1465, %v3145, %v3147
          %v3149 = vrot.slane %v3136, 5
          %v3150 = vsel %vm1465, %v3146, %v3149
          %v3151 = vrot.slane %v3137, 5
          %v3152 = vsel %vm1465, %v3147, %v3151
          %v3153 = vrot.slane %v3138, 5
          %v3154 = vsel %vm1465, %v3149, %v3153
          %v3161 = vadd.f32 %v3121, %v3145
          %v3162 = vadd.f32 %v3122, %v3146
          %v3163 = vadd.f32 %v3123, %v3148
          %v3164 = vadd.f32 %v3124, %v3150
          %v3165 = vadd.f32 %v3125, %v3152
          %v3166 = vadd.f32 %v3126, %v3154
          %s3167 = sld [smem:[#allocation9 + $0x55]]
          %v3168 = vstv %s3167
          %v3169 = vmul.f32 %v3168, %v3128
          %v3170 = vmul.f32 %v3168, %v3129
          %v3171 = vmul.f32 %v3168, %v2874
          %v3172 = vmul.f32 %v3168, %v2875
          %v3173 = vmul.f32 %v3168, %v3130
          %v3174 = vmul.f32 %v3168, %v3131
          %v3181 = vrot.slane %v3169, 5
          %v3182 = vrot.slane %v3170, 5
          %v3183 = vrot.slane %v3171, 5
          %v3184 = vsel %vm1465, %v3181, %v3183
          %v3185 = vrot.slane %v3172, 5
          %v3186 = vsel %vm1465, %v3182, %v3185
          %v3187 = vrot.slane %v3173, 5
          %v3188 = vsel %vm1465, %v3183, %v3187
          %v3189 = vrot.slane %v3174, 5
          %v3190 = vsel %vm1465, %v3185, %v3189
          %3191 = vrot.lane.b32.xlu0 %v3181, 127
          %v3192 = vpop.permute.xlu0 %3191
          %3193 = vrot.lane.b32.xlu0 %v3182, 127
          %v3194 = vpop.permute.xlu0 %3193
          %3195 = vrot.lane.b32.xlu0 %v3184, 127
          %v3196 = vpop.permute.xlu0 %3195
          %3197 = vrot.lane.b32.xlu0 %v3186, 127
          %v3198 = vpop.permute.xlu0 %3197
          %3199 = vrot.lane.b32.xlu0 %v3188, 127
          %v3200 = vpop.permute.xlu0 %3199
          %3201 = vrot.lane.b32.xlu0 %v3190, 127
          %v3202 = vpop.permute.xlu0 %3201
          %v3203 = vsel %vm317, %v3192, %v3194
          %v3204 = vsel %vm317, %v3196, %v3198
          %v3205 = vsel %vm317, %v3200, %v3202
          %v3212 = vadd.f32 %v3161, %v3203
          %v3213 = vadd.f32 %v3162, %v3194
          %v3214 = vadd.f32 %v3163, %v3204
          %v3215 = vadd.f32 %v3164, %v3198
          %v3216 = vadd.f32 %v3165, %v3205
          %v3217 = vadd.f32 %v3166, %v3202
          %s3218 = sld [smem:[#allocation9 + $0x56]]
          %v3219 = vstv %s3218
          %v3220 = vmul.f32 %v3219, %v3128
          %v3221 = vmul.f32 %v3219, %v3129
          %v3222 = vmul.f32 %v3219, %v2874
          %v3223 = vmul.f32 %v3219, %v2875
          %v3224 = vmul.f32 %v3219, %v3130
          %v3225 = vmul.f32 %v3219, %v3131
          %v3232 = vrot.slane %v3220, 5
          %v3233 = vrot.slane %v3221, 5
          %v3234 = vrot.slane %v3222, 5
          %v3235 = vsel %vm1465, %v3232, %v3234
          %v3236 = vrot.slane %v3223, 5
          %v3237 = vsel %vm1465, %v3233, %v3236
          %v3238 = vrot.slane %v3224, 5
          %v3239 = vsel %vm1465, %v3234, %v3238
          %v3240 = vrot.slane %v3225, 5
          %v3241 = vsel %vm1465, %v3236, %v3240
          %3242 = vrot.lane.b32.xlu0 %v3232, 126
          %v3243 = vpop.permute.xlu0 %3242
          %3244 = vrot.lane.b32.xlu0 %v3233, 126
          %v3245 = vpop.permute.xlu0 %3244
          %3246 = vrot.lane.b32.xlu0 %v3235, 126
          %v3247 = vpop.permute.xlu0 %3246
          %3248 = vrot.lane.b32.xlu0 %v3237, 126
          %v3249 = vpop.permute.xlu0 %3248
          %3250 = vrot.lane.b32.xlu0 %v3239, 126
          %v3251 = vpop.permute.xlu0 %3250
          %3252 = vrot.lane.b32.xlu0 %v3241, 126
          %v3253 = vpop.permute.xlu0 %3252
          %v3254 = vsel %vm359, %v3243, %v3245
          %v3255 = vsel %vm359, %v3247, %v3249
          %v3256 = vsel %vm359, %v3251, %v3253
          %v3263 = vadd.f32 %v3212, %v3254
          %v3264 = vadd.f32 %v3213, %v3245
          %v3265 = vadd.f32 %v3214, %v3255
          %v3266 = vadd.f32 %v3215, %v3249
          %v3267 = vadd.f32 %v3216, %v3256
          %v3268 = vadd.f32 %v3217, %v3253
          %s3269 = sld [smem:[#allocation9 + $0x57]]
          %v3270 = vstv %s3269
          %v3271 = vmul.f32 %v3270, %v3129
          %v3272 = vmul.f32 %v3270, %v2875
          %v3273 = vmul.f32 %v3270, %v3131
          %v3277 = vrot.slane %v3271, 5
          %v3278 = vrot.slane %v3272, 5
          %v3279 = vsel %vm1465, %v3277, %v3278
          %v3280 = vrot.slane %v3273, 5
          %v3281 = vsel %vm1465, %v3278, %v3280
          %3282 = vrot.lane.b32.xlu0 %v3277, 125
          %v3283 = vpop.permute.xlu0 %3282
          %3284 = vrot.lane.b32.xlu0 %v3279, 125
          %v3285 = vpop.permute.xlu0 %3284
          %3286 = vrot.lane.b32.xlu0 %v3281, 125
          %v3287 = vpop.permute.xlu0 %3286
          %v3291 = vadd.f32 %v3263, %v3283
          %v3292 = vadd.f32 %v3264, %v3283
          %v3293 = vadd.f32 %v3265, %v3285
          %v3294 = vadd.f32 %v3266, %v3285
          %v3295 = vadd.f32 %v3267, %v3287
          %v3296 = vadd.f32 %v3268, %v3287
          %s3297 = sld [smem:[#allocation9 + $0x58]]
          %v3298 = vstv %s3297
          %v3299 = vmul.f32 %v3298, %v3129
          %v3300 = vmul.f32 %v3298, %v2875
          %v3301 = vmul.f32 %v3298, %v3131
          %v3305 = vrot.slane %v3299, 5
          %v3306 = vrot.slane %v3300, 5
          %v3307 = vsel %vm1465, %v3305, %v3306
          %v3308 = vrot.slane %v3301, 5
          %v3309 = vsel %vm1465, %v3306, %v3308
          %3310 = vrot.lane.b32.xlu0 %v3305, 124
          %v3311 = vpop.permute.xlu0 %3310
          %3312 = vrot.lane.b32.xlu0 %v3307, 124
          %v3313 = vpop.permute.xlu0 %3312
          %3314 = vrot.lane.b32.xlu0 %v3309, 124
          %v3315 = vpop.permute.xlu0 %3314
          %v3319 = vadd.f32 %v3291, %v3311
          %v3320 = vadd.f32 %v3292, %v3311
          %v3321 = vadd.f32 %v3293, %v3313
          %v3322 = vadd.f32 %v3294, %v3313
          %v3323 = vadd.f32 %v3295, %v3315
          %v3324 = vadd.f32 %v3296, %v3315
          %s3325 = sld [smem:[#allocation9 + $0x59]]
          %v3326 = vstv %s3325
          %v3327 = vmul.f32 %v3326, %v3129
          %v3328 = vmul.f32 %v3326, %v2875
          %v3329 = vmul.f32 %v3326, %v3131
          %v3333 = vrot.slane %v3327, 5
          %v3334 = vrot.slane %v3328, 5
          %v3335 = vsel %vm1465, %v3333, %v3334
          %v3336 = vrot.slane %v3329, 5
          %v3337 = vsel %vm1465, %v3334, %v3336
          %3338 = vrot.lane.b32.xlu0 %v3333, 123
          %v3339 = vpop.permute.xlu0 %3338
          %3340 = vrot.lane.b32.xlu0 %v3335, 123
          %v3341 = vpop.permute.xlu0 %3340
          %3342 = vrot.lane.b32.xlu0 %v3337, 123
          %v3343 = vpop.permute.xlu0 %3342
          %v3347 = vadd.f32 %v3319, %v3339
          %v3348 = vadd.f32 %v3320, %v3339
          %v3349 = vadd.f32 %v3321, %v3341
          %v3350 = vadd.f32 %v3322, %v3341
          %v3351 = vadd.f32 %v3323, %v3343
          %v3352 = vadd.f32 %v3324, %v3343
          %s3353 = sld [smem:[#allocation9 + $0x5a]]
          %v3354 = vstv %s3353
          %v3355 = vmul.f32 %v3354, %v3129
          %v3356 = vmul.f32 %v3354, %v2875
          %v3357 = vmul.f32 %v3354, %v3131
          %v3361 = vrot.slane %v3355, 5
          %v3362 = vrot.slane %v3356, 5
          %v3363 = vsel %vm1465, %v3361, %v3362
          %v3364 = vrot.slane %v3357, 5
          %v3365 = vsel %vm1465, %v3362, %v3364
          %3366 = vrot.lane.b32.xlu0 %v3361, 122
          %v3367 = vpop.permute.xlu0 %3366
          %3368 = vrot.lane.b32.xlu0 %v3363, 122
          %v3369 = vpop.permute.xlu0 %3368
          %3370 = vrot.lane.b32.xlu0 %v3365, 122
          %v3371 = vpop.permute.xlu0 %3370
          %v3375 = vadd.f32 %v3347, %v3367
          %v3376 = vadd.f32 %v3348, %v3367
          %v3377 = vadd.f32 %v3349, %v3369
          %v3378 = vadd.f32 %v3350, %v3369
          %v3379 = vadd.f32 %v3351, %v3371
          %v3380 = vadd.f32 %v3352, %v3371
          %s3381 = sld [smem:[#allocation9 + $0x5b]]
          %v3382 = vld [vmem:[%s268 + $0x10] sm:$0xf8]
          %v3383 = vld [vmem:[%s268 + $0x18] sm:$0xf8]
          %v3384 = vld [vmem:[%s268 + $0x30] sm:$0x7]
          %v3385 = vld [vmem:[%s268 + $0x38] sm:$0x7]
          %v3386 = vstv %s3381
          %v3387 = vmul.f32 %v3386, %v3382
          %v3388 = vmul.f32 %v3386, %v3383
          %v3389 = vmul.f32 %v3386, %v2874
          %v3390 = vmul.f32 %v3386, %v2875
          %v3391 = vmul.f32 %v3386, %v3384
          %v3392 = vmul.f32 %v3386, %v3385
          %v3399 = vrot.slane %v3387, 6
          %v3400 = vrot.slane %v3388, 6
          %v3401 = vrot.slane %v3389, 6
          %v3402 = vsel %vm1720, %v3399, %v3401
          %v3403 = vrot.slane %v3390, 6
          %v3404 = vsel %vm1720, %v3400, %v3403
          %v3405 = vrot.slane %v3391, 6
          %v3406 = vsel %vm1720, %v3401, %v3405
          %v3407 = vrot.slane %v3392, 6
          %v3408 = vsel %vm1720, %v3403, %v3407
          %v3415 = vadd.f32 %v3375, %v3399
          %v3416 = vadd.f32 %v3376, %v3400
          %v3417 = vadd.f32 %v3377, %v3402
          %v3418 = vadd.f32 %v3378, %v3404
          %v3419 = vadd.f32 %v3379, %v3406
          %v3420 = vadd.f32 %v3380, %v3408
          %s3421 = sld [smem:[#allocation9 + $0x5c]]
          %v3422 = vstv %s3421
          %v3423 = vmul.f32 %v3422, %v3382
          %v3424 = vmul.f32 %v3422, %v3383
          %v3425 = vmul.f32 %v3422, %v2874
          %v3426 = vmul.f32 %v3422, %v2875
          %v3427 = vmul.f32 %v3422, %v3384
          %v3428 = vmul.f32 %v3422, %v3385
          %v3435 = vrot.slane %v3423, 6
          %v3436 = vrot.slane %v3424, 6
          %v3437 = vrot.slane %v3425, 6
          %v3438 = vsel %vm1720, %v3435, %v3437
          %v3439 = vrot.slane %v3426, 6
          %v3440 = vsel %vm1720, %v3436, %v3439
          %v3441 = vrot.slane %v3427, 6
          %v3442 = vsel %vm1720, %v3437, %v3441
          %v3443 = vrot.slane %v3428, 6
          %v3444 = vsel %vm1720, %v3439, %v3443
          %3445 = vrot.lane.b32.xlu0 %v3435, 127
          %v3446 = vpop.permute.xlu0 %3445
          %3447 = vrot.lane.b32.xlu0 %v3436, 127
          %v3448 = vpop.permute.xlu0 %3447
          %3449 = vrot.lane.b32.xlu0 %v3438, 127
          %v3450 = vpop.permute.xlu0 %3449
          %3451 = vrot.lane.b32.xlu0 %v3440, 127
          %v3452 = vpop.permute.xlu0 %3451
          %3453 = vrot.lane.b32.xlu0 %v3442, 127
          %v3454 = vpop.permute.xlu0 %3453
          %3455 = vrot.lane.b32.xlu0 %v3444, 127
          %v3456 = vpop.permute.xlu0 %3455
          %v3457 = vsel %vm317, %v3446, %v3448
          %v3458 = vsel %vm317, %v3450, %v3452
          %v3459 = vsel %vm317, %v3454, %v3456
          %v3466 = vadd.f32 %v3415, %v3457
          %v3467 = vadd.f32 %v3416, %v3448
          %v3468 = vadd.f32 %v3417, %v3458
          %v3469 = vadd.f32 %v3418, %v3452
          %v3470 = vadd.f32 %v3419, %v3459
          %v3471 = vadd.f32 %v3420, %v3456
          %s3472 = sld [smem:[#allocation9 + $0x5d]]
          %v3473 = vstv %s3472
          %v3474 = vmul.f32 %v3473, %v3382
          %v3475 = vmul.f32 %v3473, %v3383
          %v3476 = vmul.f32 %v3473, %v2874
          %v3477 = vmul.f32 %v3473, %v2875
          %v3478 = vmul.f32 %v3473, %v3384
          %v3479 = vmul.f32 %v3473, %v3385
          %v3486 = vrot.slane %v3474, 6
          %v3487 = vrot.slane %v3475, 6
          %v3488 = vrot.slane %v3476, 6
          %v3489 = vsel %vm1720, %v3486, %v3488
          %v3490 = vrot.slane %v3477, 6
          %v3491 = vsel %vm1720, %v3487, %v3490
          %v3492 = vrot.slane %v3478, 6
          %v3493 = vsel %vm1720, %v3488, %v3492
          %v3494 = vrot.slane %v3479, 6
          %v3495 = vsel %vm1720, %v3490, %v3494
          %3496 = vrot.lane.b32.xlu0 %v3486, 126
          %v3497 = vpop.permute.xlu0 %3496
          %3498 = vrot.lane.b32.xlu0 %v3487, 126
          %v3499 = vpop.permute.xlu0 %3498
          %3500 = vrot.lane.b32.xlu0 %v3489, 126
          %v3501 = vpop.permute.xlu0 %3500
          %3502 = vrot.lane.b32.xlu0 %v3491, 126
          %v3503 = vpop.permute.xlu0 %3502
          %3504 = vrot.lane.b32.xlu0 %v3493, 126
          %v3505 = vpop.permute.xlu0 %3504
          %3506 = vrot.lane.b32.xlu0 %v3495, 126
          %v3507 = vpop.permute.xlu0 %3506
          %v3508 = vsel %vm359, %v3497, %v3499
          %v3509 = vsel %vm359, %v3501, %v3503
          %v3510 = vsel %vm359, %v3505, %v3507
          %v3517 = vadd.f32 %v3466, %v3508
          %v3518 = vadd.f32 %v3467, %v3499
          %v3519 = vadd.f32 %v3468, %v3509
          %v3520 = vadd.f32 %v3469, %v3503
          %v3521 = vadd.f32 %v3470, %v3510
          %v3522 = vadd.f32 %v3471, %v3507
          %s3523 = sld [smem:[#allocation9 + $0x5e]]
          %v3524 = vstv %s3523
          %v3525 = vmul.f32 %v3524, %v3383
          %v3526 = vmul.f32 %v3524, %v2875
          %v3527 = vmul.f32 %v3524, %v3385
          %v3531 = vrot.slane %v3525, 6
          %v3532 = vrot.slane %v3526, 6
          %v3533 = vsel %vm1720, %v3531, %v3532
          %v3534 = vrot.slane %v3527, 6
          %v3535 = vsel %vm1720, %v3532, %v3534
          %3536 = vrot.lane.b32.xlu0 %v3531, 125
          %v3537 = vpop.permute.xlu0 %3536
          %3538 = vrot.lane.b32.xlu0 %v3533, 125
          %v3539 = vpop.permute.xlu0 %3538
          %3540 = vrot.lane.b32.xlu0 %v3535, 125
          %v3541 = vpop.permute.xlu0 %3540
          %v3545 = vadd.f32 %v3517, %v3537
          %v3546 = vadd.f32 %v3518, %v3537
          %v3547 = vadd.f32 %v3519, %v3539
          %v3548 = vadd.f32 %v3520, %v3539
          %v3549 = vadd.f32 %v3521, %v3541
          %v3550 = vadd.f32 %v3522, %v3541
          %s3551 = sld [smem:[#allocation9 + $0x5f]]
          %v3552 = vstv %s3551
          %v3553 = vmul.f32 %v3552, %v3383
          %v3554 = vmul.f32 %v3552, %v2875
          %v3555 = vmul.f32 %v3552, %v3385
          %v3559 = vrot.slane %v3553, 6
          %v3560 = vrot.slane %v3554, 6
          %v3561 = vsel %vm1720, %v3559, %v3560
          %v3562 = vrot.slane %v3555, 6
          %v3563 = vsel %vm1720, %v3560, %v3562
          %3564 = vrot.lane.b32.xlu0 %v3559, 124
          %v3565 = vpop.permute.xlu0 %3564
          %3566 = vrot.lane.b32.xlu0 %v3561, 124
          %v3567 = vpop.permute.xlu0 %3566
          %3568 = vrot.lane.b32.xlu0 %v3563, 124
          %v3569 = vpop.permute.xlu0 %3568
          %v3573 = vadd.f32 %v3545, %v3565
          %v3574 = vadd.f32 %v3546, %v3565
          %v3575 = vadd.f32 %v3547, %v3567
          %v3576 = vadd.f32 %v3548, %v3567
          %v3577 = vadd.f32 %v3549, %v3569
          %v3578 = vadd.f32 %v3550, %v3569
          %s3579 = sld [smem:[#allocation9 + $0x60]]
          %v3580 = vstv %s3579
          %v3581 = vmul.f32 %v3580, %v3383
          %v3582 = vmul.f32 %v3580, %v2875
          %v3583 = vmul.f32 %v3580, %v3385
          %v3587 = vrot.slane %v3581, 6
          %v3588 = vrot.slane %v3582, 6
          %v3589 = vsel %vm1720, %v3587, %v3588
          %v3590 = vrot.slane %v3583, 6
          %v3591 = vsel %vm1720, %v3588, %v3590
          %3592 = vrot.lane.b32.xlu0 %v3587, 123
          %v3593 = vpop.permute.xlu0 %3592
          %3594 = vrot.lane.b32.xlu0 %v3589, 123
          %v3595 = vpop.permute.xlu0 %3594
          %3596 = vrot.lane.b32.xlu0 %v3591, 123
          %v3597 = vpop.permute.xlu0 %3596
          %v3601 = vadd.f32 %v3573, %v3593
          %v3602 = vadd.f32 %v3574, %v3593
          %v3603 = vadd.f32 %v3575, %v3595
          %v3604 = vadd.f32 %v3576, %v3595
          %v3605 = vadd.f32 %v3577, %v3597
          %v3606 = vadd.f32 %v3578, %v3597
          %s3607 = sld [smem:[#allocation9 + $0x61]]
          %v3608 = vstv %s3607
          %v3609 = vmul.f32 %v3608, %v3383
          %v3610 = vmul.f32 %v3608, %v2875
          %v3611 = vmul.f32 %v3608, %v3385
          %v3615 = vrot.slane %v3609, 6
          %v3616 = vrot.slane %v3610, 6
          %v3617 = vsel %vm1720, %v3615, %v3616
          %v3618 = vrot.slane %v3611, 6
          %v3619 = vsel %vm1720, %v3616, %v3618
          %3620 = vrot.lane.b32.xlu0 %v3615, 122
          %v3621 = vpop.permute.xlu0 %3620
          %3622 = vrot.lane.b32.xlu0 %v3617, 122
          %v3623 = vpop.permute.xlu0 %3622
          %3624 = vrot.lane.b32.xlu0 %v3619, 122
          %v3625 = vpop.permute.xlu0 %3624
          %v3629 = vadd.f32 %v3601, %v3621
          %v3630 = vadd.f32 %v3602, %v3621
          %v3631 = vadd.f32 %v3603, %v3623
          %v3632 = vadd.f32 %v3604, %v3623
          %v3633 = vadd.f32 %v3605, %v3625
          %v3634 = vadd.f32 %v3606, %v3625
          %v3635 = vsub.f32 0.0, %v3629
          %v3636 = vsub.f32 0.0, %v3630
          %v3637 = vsub.f32 0.0, %v3631
          %v3638 = vsub.f32 0.0, %v3632
          %v3639 = vsub.f32 0.0, %v3633
          %v3640 = vsub.f32 0.0, %v3634
          %v3641 = vmul.f32 %v3635, 1.442695
          %v3642 = vpow.pop %v3641
          %v3643 = vmul.f32 %v3636, 1.442695
          %v3644 = vpow.pop %v3643
          %v3645 = vmul.f32 %v3637, 1.442695
          %v3646 = vpow.pop %v3645
          %v3647 = vmul.f32 %v3638, 1.442695
          %v3648 = vpow.pop %v3647
          %v3649 = vmul.f32 %v3639, 1.442695
          %v3650 = vpow.pop %v3649
          %v3651 = vmul.f32 %v3640, 1.442695
          %v3652 = vpow.pop %v3651
          %v3653 = vadd.f32 %v3642, 1.0
          %v3654 = vadd.f32 %v3644, 1.0
          %v3655 = vadd.f32 %v3646, 1.0
          %v3656 = vadd.f32 %v3648, 1.0
          %v3657 = vadd.f32 %v3650, 1.0
          %v3658 = vadd.f32 %v3652, 1.0
          %v3659 = vrcp.pop %v3653
          %v3660 = vmul.f32 1.0, %v3659
          %v3661 = vrcp.pop %v3654
          %v3662 = vmul.f32 1.0, %v3661
          %v3663 = vrcp.pop %v3655
          %v3664 = vmul.f32 1.0, %v3663
          %v3665 = vrcp.pop %v3656
          %v3666 = vmul.f32 1.0, %v3665
          %v3667 = vrcp.pop %v3657
          %v3668 = vmul.f32 1.0, %v3667
          %v3669 = vrcp.pop %v3658
          %v3670 = vmul.f32 1.0, %v3669
          %3677 = vrot.lane.b32.xlu0 %v3660, 3
          %v3678 = vpop.permute.xlu0 %3677
          %3679 = vrot.lane.b32.xlu0 %v3662, 3
          %v3680 = vpop.permute.xlu0 %3679
          %3681 = vrot.lane.b32.xlu0 %v3664, 3
          %v3682 = vpop.permute.xlu0 %3681
          %3683 = vrot.lane.b32.xlu0 %v3666, 3
          %v3684 = vpop.permute.xlu0 %3683
          %3685 = vrot.lane.b32.xlu0 %v3668, 3
          %v3686 = vpop.permute.xlu0 %3685
          %3687 = vrot.lane.b32.xlu0 %v3670, 3
          %v3688 = vpop.permute.xlu0 %3687
          %vm3689 = vcmask 23552
          %v3690 = vsel %vm3689, %v3678, %v3680
          %v3691 = vsel %vm3689, %v3682, %v3684
          %v3692 = vsel %vm3689, %v3686, %v3688
          %vm3696 = vcmask 130053
          %3697 = vst.msk [vmem:[%s192 - $0x5] sm:$0xe0] %vm3696, %v3690
          %3698 = vst.msk [vmem:[%s192 + $0x3] sm:$0xff] %vm230, %v3691
          %vm3699 = vcmask 126976
          %3700 = vst.msk [vmem:[%s192 + $0xb] sm:$0x1f] %vm3699, %v3692
        $region44: #{tpu_custom_call.1} parent=27 // pred_fallthru
          _
        %s3701 = sand.u32 %s89, 1
        %s3702 = scalar_lea.sflag [#allocation7], %s3701
        %s3703 = sand.u32 %s89, 1
        %s3704 = smul.addr %s3703, 16
        %s3705 = scalar_lea.vmem [#allocation10], %s3704
        // Predicated region
        $region45: #{tpu_custom_call.1} parent=27 // pred_check
          %p3706 = pneg %p99
        $region46: #{tpu_custom_call.1} parent=27 // pred_check_branch
          %3708 = sbr.rel (%p3706) target = $region48
        $region47: #{tpu_custom_call.1} parent=27 // pred_region
          %s3710 = ssub.s32 256, 256
          %3711 = vsyncadd %s3702, %s3710
          %s3712 = smul.addr %s24, 2
          %s3713 = smul.addr %s3712, 128
          %s3714 = scalar_lea.hbm %s2, %s3713
          %s3715 = sshll.u32 %s3705, 4
          %s3716 = int_to_ptr.vmem [resolvable:$true] %s3715
          %3721 = dma.vmem_to_hbm [thread:$0]  %s3716, 256, %s3714, %s3702, 128, 128, 8
        $region48: #{tpu_custom_call.1} parent=27 // pred_fallthru
          _
      $region28: #{tpu_custom_call.1} parent=5 // pred_fallthru
        _
      %p3722 = scmp.le.s32.totalorder 2, %s15
      // Predicated region
      $region49: #{tpu_custom_call.1} parent=5 // pred_check
        %p3723 = pneg %p3722
      $region50: #{tpu_custom_call.1} parent=5 // pred_check_branch
        %3725 = sbr.rel (%p3723) target = $region52
      $region51: #{tpu_custom_call.1} parent=5 // pred_region
        %s3726 = ssub.s32 %s15, 2
        // Predicated region
        $region53: #{tpu_custom_call.1} parent=51 // pred_check
          %p3727 = pneg %p105
        $region54: #{tpu_custom_call.1} parent=51 // pred_check_branch
          %3729 = sbr.rel (%p3727) target = $region56
        $region55: #{tpu_custom_call.1} parent=51 // pred_region
          %s3730 = sand.u32 %s90, 1
          %s3731 = scalar_lea.sflag [#allocation7], %s3730
          %s3732 = sand.u32 %s90, 1
          %s3733 = smul.addr %s3732, 16
          %s3734 = scalar_lea.vmem [#allocation10], %s3733
          %3735 = dma.done %s3731, 256
        $region56: #{tpu_custom_call.1} parent=51 // pred_fallthru
          _
      $region52: #{tpu_custom_call.1} parent=5 // pred_fallthru
        _
    $region6: #{tpu_custom_call.1} parent=1 // loop_footer
      %s19 = sadd.s32 1, %s15
    $region7: #{tpu_custom_call.1} parent=1 // loop_footer_branch
      %14 = sbr.rel target = $region3
    $region8: #{tpu_custom_call.1} parent=1 // loop_exit
      _
    %3736 = vsyncpa [#allocation6], 1
    %s3737 = scalar_lea.sflag [#allocation6], 1
    %3738 = vsyncpa %s3737, 1
    %3739 = vsyncpa [#allocation7], 1
    %s3740 = scalar_lea.sflag [#allocation7], 1
    %3741 = vsyncpa %s3740, 1
    %3742 = vsyncpa [#allocation8], 1
    %s3743 = scalar_lea.sflag [#allocation8], 1
    %3744 = vsyncpa %s3743, 1

</llo_original>
